<compile_context>
chip_gen: v7x
topology: tpu7x:2x2x1
jax: 0.10.0
libtpu: 0.0.40
codegen_flags: <defaults>
</compile_context>

<pallas_src>
import jax
import jax.numpy as jnp
from jax import lax
from jax.experimental import pallas as pl
from jax.experimental.pallas import tpu as pltpu


LANE = 128  # TPU lane width; one fused (r|z|n|pad) gate group per direction.


# ---------------------------------------------------------------------------
# Pallas kernel: bidirectional single-layer GRU, returns summed final hiddens.
# ---------------------------------------------------------------------------
def _bigru_kernel(x_ref, keep_ref, wih_ref, bx_ref, whh_f_ref, whh_b_ref,
                  bhn_f_ref, bhn_b_ref, out_ref, xpf_ref, xpb_ref):
    T, BB, E = x_ref.shape
    Gd = whh_f_ref.shape[-1]          # per-direction fused gate width (= LANE)
    H = bhn_f_ref.shape[-1]           # real hidden size (3*H <= Gd)

    # ---- Hoisted input projection (both directions, all 3 gates) -----------
    # One lane-dense bf16 MXU matmul [T*BB, E] @ [E, 2*Gd] (f32 accumulation);
    # input-side biases (b_ih + b_hh for r/z, b_in for n) pre-folded into bx.
    x = x_ref[...].reshape(T * BB, E).astype(jnp.bfloat16)
    proj = jnp.dot(x, wih_ref[...], preferred_element_type=jnp.float32) + bx_ref[...]
    xpf_ref[...] = proj[:, :Gd].reshape(T, BB, Gd)
    xpb_ref[...] = proj[:, Gd:].reshape(T, BB, Gd)

    # Small loop-invariant broadcasts hoisted (JAX does not CSE broadcast_in_dim).
    bhn_f = jnp.broadcast_to(bhn_f_ref[...], (BB, H))   # b_hn stays separate: it is
    bhn_b = jnp.broadcast_to(bhn_b_ref[...], (BB, H))   # multiplied by r.

    def cell(xp_t, h, whh, bhn):
        # PyTorch GRU cell on a single 128-lane gate group [ r | z | n | pad ]:
        #   r = sigmoid(i_r + h_r);  z = sigmoid(i_z + h_z)
        #   n = tanh(i_n + r * (h_n + b_hn));  h' = (1-z)*n + z*h
        # Recurrent matmul: bf16 operands, f32 accumulation, K = real H (=32),
        # a single MXU N-tile per direction per step.
        hp = jnp.dot(h.astype(jnp.bfloat16), whh,
                     preferred_element_type=jnp.float32)          # [BB, Gd]
        r = jax.nn.sigmoid(xp_t[:, :H] + hp[:, :H])
        z = jax.nn.sigmoid(xp_t[:, H:2 * H] + hp[:, H:2 * H])
        n = jnp.tanh(xp_t[:, 2 * H:3 * H] + r * (hp[:, 2 * H:3 * H] + bhn))
        return (1.0 - z) * n + z * h

    def body(i, carry):
        h_f, h_b = carry
        t_f = i                       # forward walks t = 0 .. T-1
        t_b = T - 1 - i               # backward walks t = T-1 .. 0
        # W_hh refs are read inside the body (NOT held across the unrolled loop);
        # the two independent direction chains interleave so MXU/EUP latency overlaps.
        # TODO(synk): for large H make this weight-stationary with
        # pltpu.matmul_push_rhs / matmul_acc_lhs / matmul_pop (whh_f on mxu_index=0,
        # whh_b on mxu_index=1 on v6e/v7x); at H=32 the repacked [32,128] weights make
        # the per-step push cost small, so portable jnp.dot is used here.
        hn_f = cell(xpf_ref[t_f], h_f, whh_f_ref[...], bhn_f)
        hn_b = cell(xpb_ref[t_b], h_b, whh_b_ref[...], bhn_b)
        # pack_padded_sequence semantics via the precomputed {0,1} masks: exact
        # arithmetic blend (m is exactly 0.0 or 1.0, so this equals a select).
        m_f = keep_ref[t_f]
        m_b = keep_ref[t_b]
        h_f = h_f + m_f * (hn_f - h_f)
        h_b = h_b + m_b * (hn_b - h_b)
        return h_f, h_b

    h0 = jnp.zeros((BB, H), jnp.float32)
    # TODO(synk): re-tune unroll (True vs 2/4) per TPU generation once measured.
    h_f, h_b = lax.fori_loop(0, T, body, (h0, h0), unroll=True)

    # take_last_hidden (single layer) + torch.sum over the two directions.
    out_ref[0] = h_f + h_b


# ---------------------------------------------------------------------------
# Parameter re-packing: per-gate [3,*,H] -> one fused 128-lane gate group per
# direction, gate order (r, z, n) preserved, matmul weights stored bf16.
# ---------------------------------------------------------------------------
def pack_gru_params(p, lane=LANE):
    H = p["whh_f"].shape[-1]
    assert 3 * H <= lane, "gate group does not fit one lane group"
    # TODO(synk): for H > ~42 (3*H > 128) fall back to the per-gate lane-padded layout
    # and adopt weight-stationary MXU driving for the recurrence.

    def pad_gates(a):               # [.., 3*H] -> [.., lane]
        return jnp.pad(a, [(0, 0)] * (a.ndim - 1) + [(0, lane - 3 * H)])

    def fuse_w(w3):                 # [3, K, H] -> [K, lane]  ( r | z | n | pad )
        return pad_gates(jnp.concatenate([w3[0], w3[1], w3[2]], axis=-1))

    def fuse_bx(bih, bhh):          # folded input-side bias (b_ir+b_hr | b_iz+b_hz | b_in)
        return pad_gates(jnp.concatenate([bih[0] + bhh[0], bih[1] + bhh[1], bih[2]],
                                         axis=-1))                  # [1, lane]

    return {
        "wih": jnp.concatenate([fuse_w(p["wih_f"]), fuse_w(p["wih_b"])],
                               axis=-1).astype(jnp.bfloat16),        # [E, 2*lane] bf16
        "bx": jnp.concatenate([fuse_bx(p["bih_f"], p["bhh_f"]),
                               fuse_bx(p["bih_b"], p["bhh_b"])], axis=-1),  # [1, 2*lane] f32
        "whh_f": fuse_w(p["whh_f"]).astype(jnp.bfloat16),            # [H, lane] bf16
        "whh_b": fuse_w(p["whh_b"]).astype(jnp.bfloat16),
        "bhn_f": p["bhh_f"][2],                                      # [1, H] f32
        "bhn_b": p["bhh_b"][2],
        "H": H, "Gd": lane,
    }


def bigru_last_hidden(x_tbe, lengths, packed, *, batch_tile=None):
    """x_tbe: [T, B, E] float32, lengths: [B] int32. Returns [1, B, H] float32."""
    T, B, E = x_tbe.shape
    H, Gd = packed["H"], packed["Gd"]
    # Batch tiling: one "parallel" grid axis so v7x can shard tiles across its 2
    # TensorCores.  At production sizes pick batch_tile >= 128 so the MXU M dim is
    # filled (the recurrence is latency-bound at tiny M); batch more sequences per call.
    bb = batch_tile if batch_tile is not None else B
    assert B % bb == 0

    # pack_padded_sequence masks, precomputed once: keep[t, b] = 1.0 iff t < len[b].
    keep = (jnp.arange(T, dtype=jnp.int32)[:, None, None]
            < lengths.astype(jnp.int32)[None, :, None]).astype(jnp.float32)
    keep = jnp.broadcast_to(keep, (T, B, H))
    # TODO(synk): at production sizes pass keep as [T,B,1] (or rebuild it in-kernel from
    # scalar-prefetched lengths) instead of materializing [T,B,H] in HBM.

    flops = 2 * T * B * E * (2 * Gd) + 2 * (2 * T * B * H * Gd)
    transcendentals = 2 * T * B * 3 * H
    bytes_accessed = (4 * (T * B * E + T * B * H + B * H + 2 * Gd + 2 * H)
                      + 2 * (E * 2 * Gd + 2 * H * Gd))

    grid = (B // bb,)
    full = lambda b: (0, 0)
    in_specs = [
        pl.BlockSpec((T, bb, E), lambda b: (0, b, 0)),       # x (batch-tiled)
        pl.BlockSpec((T, bb, H), lambda b: (0, b, 0)),       # precomputed length masks
        pl.BlockSpec((E, 2 * Gd), full),                     # W_ih (both dirs, bf16)
        pl.BlockSpec((1, 2 * Gd), full),                     # folded input-side biases
        pl.BlockSpec((H, Gd), full),                         # W_hh fwd (bf16)
        pl.BlockSpec((H, Gd), full),                         # W_hh bwd (bf16)
        pl.BlockSpec((1, H), full),                          # b_hn fwd
        pl.BlockSpec((1, H), full),                          # b_hn bwd
    ]
    out_specs = pl.BlockSpec((1, bb, H), lambda b: (0, b, 0))

    # TODO(synk): at production T/B/E sizes, stream the input-projection phase (T-chunk
    # grid axis with double-buffered x DMA overlapping x@W_ih), pad E to a multiple of
    # 128 host-side, make the xp scratch bf16, and fuse the embedding gather via
    # scalar-prefetched token ids; re-derive vmem_limit_bytes from v7x's 64 MiB ceiling.
    out = pl.pallas_call(
        _bigru_kernel,
        out_shape=jax.ShapeDtypeStruct((1, B, H), jnp.float32),
        grid_spec=pltpu.PrefetchScalarGridSpec(
            num_scalar_prefetch=0,
            grid=grid,
            in_specs=in_specs,
            out_specs=out_specs,
            scratch_shapes=[pltpu.VMEM((T, bb, Gd), jnp.float32),
                            pltpu.VMEM((T, bb, Gd), jnp.float32)]),
        compiler_params=pltpu.CompilerParams(
            dimension_semantics=("parallel",),
            vmem_limit_bytes=32 * 1024 * 1024),
        cost_estimate=pl.CostEstimate(flops=flops,
                                      transcendentals=transcendentals,
                                      bytes_accessed=bytes_accessed),
    )(x_tbe, keep, packed["wih"], packed["bx"],
      packed["whh_f"], packed["whh_b"], packed["bhn_f"], packed["bhn_b"])
    return out


# ---------------------------------------------------------------------------
# Full forward pass of EncoderRNN (inference): embed -> dropout(p=0) -> biGRU
# ---------------------------------------------------------------------------
def encoder_rnn_forward(token_ids, lengths, embed_table, packed_params, *, batch_tile=None):
    # token_ids: [B, T] int32 ; embed_table: [V, E]
    # Gather directly in [T, B] order so the embedded sequence is time-major (no extra
    # [B,T,E] f32 transpose round-trip through HBM).
    # TODO(synk): fuse the gather into the kernel via scalar-prefetched token ids at
    # production sizes; left in XLA here.
    tok_tb = token_ids.T
    x_tbe = jnp.take(embed_table, tok_tb, axis=0).astype(jnp.float32)   # [T, B, E]
    # embed_dropout has p=0 here (no linear layer, frozen embeddings) -> identity.
    hidden = bigru_last_hidden(x_tbe, lengths, packed_params, batch_tile=batch_tile)
    # EncoderContext: same tensor reused for all four fields.
    return {"decoder_hidden": hidden,
            "decoder_input_concat": hidden,
            "decoder_hidden_concat": hidden,
            "decoder_input_t0": hidden}


# ---------------------------------------------------------------------------
# Pure-JAX reference (original unfused f32 math) for a correctness check.
# ---------------------------------------------------------------------------
def _reference_bigru(x_tbe, lengths, p):
    T, B, E = x_tbe.shape
    lens = lengths.reshape(B, 1)

    def step(h, x_t, wih, whh, bih, bhh):
        i_r = x_t @ wih[0] + bih[0]
        i_z = x_t @ wih[1] + bih[1]
        i_n = x_t @ wih[2] + bih[2]
        h_r = h @ whh[0] + bhh[0]
        h_z = h @ whh[1] + bhh[1]
        h_n = h @ whh[2] + bhh[2]
        r = jax.nn.sigmoid(i_r + h_r)
        z = jax.nn.sigmoid(i_z + h_z)
        n = jnp.tanh(i_n + r * h_n)
        return (1.0 - z) * n + z * h

    H = p["whh_f"].shape[-1]
    h_f = jnp.zeros((B, H), jnp.float32)
    for t in range(T):
        h_new = step(h_f, x_tbe[t], p["wih_f"], p["whh_f"], p["bih_f"], p["bhh_f"])
        h_f = jnp.where(t < lens, h_new, h_f)
    h_b = jnp.zeros((B, H), jnp.float32)
    for t in range(T - 1, -1, -1):
        h_new = step(h_b, x_tbe[t], p["wih_b"], p["whh_b"], p["bih_b"], p["bhh_b"])
        h_b = jnp.where(t < lens, h_new, h_b)
    return (h_f + h_b)[None]


if __name__ == "__main__":
    # Small deterministic config: vocab=50, embed=32, hidden=32, 1 layer, bidirectional GRU.
    V, E, H = 50, 32, 32
    B, T = 16, 8          # B=16 with batch_tile=8 exercises the parallel batch grid.

    key = jax.random.PRNGKey(0)
    keys = jax.random.split(key, 12)

    # Embedding table (frozen, as in train_embeddings=False).
    embed_table = jax.random.normal(keys[0], (V, E), jnp.float32) * 0.1

    # GRU parameters, uniform(-k, k) with k = 1/sqrt(H) like PyTorch's default init.
    k = 1.0 / jnp.sqrt(jnp.float32(H))
    def u(kk, shape):
        return jax.random.uniform(kk, shape, jnp.float32, -k, k)

    gru_params = {
        "wih_f": u(keys[1], (3, E, H)), "whh_f": u(keys[2], (3, H, H)),
        "bih_f": u(keys[3], (3, 1, H)), "bhh_f": u(keys[4], (3, 1, H)),
        "wih_b": u(keys[5], (3, E, H)), "whh_b": u(keys[6], (3, H, H)),
        "bih_b": u(keys[7], (3, 1, H)), "bhh_b": u(keys[8], (3, 1, H)),
    }
    packed = pack_gru_params(gru_params)

    # prev_utterances: padded token ids, lengths sorted descending (pack_padded_sequence contract).
    lengths = jnp.array([8, 8, 7, 7, 6, 6, 5, 5, 4, 4, 3, 3, 2, 2, 1, 1], jnp.int32)
    token_ids = jax.random.randint(keys[9], (B, T), 1, V, jnp.int32)
    pad_mask = jnp.arange(T)[None, :] < lengths[:, None]
    token_ids = jnp.where(pad_mask, token_ids, 0)

    ctx = encoder_rnn_forward(token_ids, lengths, embed_table, packed, batch_tile=8)
    hidden = jax.block_until_ready(ctx["decoder_hidden"])
    assert hidden.shape == (1, B, H)

    # Correctness check against a pure-JAX f32 reference of the same recurrence.
    x_tbe_ref = jnp.take(embed_table, token_ids.T, axis=0)
    ref = _reference_bigru(x_tbe_ref, lengths, gru_params)
    # bf16 matmul operands (f32 accumulation) -> relaxed tolerance vs the f32 reference.
    assert jnp.allclose(hidden, ref, atol=2e-2, rtol=2e-2), "kernel mismatch vs reference"

    # TODO(synk): dropout is a no-op here (p=0 config / eval mode); no RNG path implemented.
    print("KERNEL_OK")
</pallas_src>

<mosaic_0001>
module attributes {stable_mosaic.version = 11 : i64} {
  func.func @_bigru_kernel(%arg0: i32, %arg1: memref<8x8x32xf32, #tpu.memory_space<vmem>>, %arg2: memref<8x8x32xf32, #tpu.memory_space<vmem>>, %arg3: memref<32x256xbf16, #tpu.memory_space<vmem>>, %arg4: memref<1x256xf32, #tpu.memory_space<vmem>>, %arg5: memref<32x128xbf16, #tpu.memory_space<vmem>>, %arg6: memref<32x128xbf16, #tpu.memory_space<vmem>>, %arg7: memref<1x32xf32, #tpu.memory_space<vmem>>, %arg8: memref<1x32xf32, #tpu.memory_space<vmem>>, %arg9: memref<1x8x32xf32, #tpu.memory_space<vmem>>, %arg10: memref<8x8x128xf32, #tpu.memory_space<vmem>>, %arg11: memref<8x8x128xf32, #tpu.memory_space<vmem>>) attributes {dimension_semantics = [#tpu.dimension_semantics<parallel>], iteration_bounds = array<i64: 2>, scalar_prefetch = 0 : i64, scratch_operands = 2 : i64, tpu.core_type = #tpu.core_type<tc>, window_params = [{transform_indices = @transform_0, window_bounds = array<i64: 8, 8, 32>}, {transform_indices = @transform_1, window_bounds = array<i64: 8, 8, 32>}, {pipeline_mode = #tpu.pipeline_mode<synchronous>, transform_indices = @transform_2, window_bounds = array<i64: 32, 256>}, {pipeline_mode = #tpu.pipeline_mode<synchronous>, transform_indices = @transform_3, window_bounds = array<i64: 1, 256>}, {pipeline_mode = #tpu.pipeline_mode<synchronous>, transform_indices = @transform_4, window_bounds = array<i64: 32, 128>}, {pipeline_mode = #tpu.pipeline_mode<synchronous>, transform_indices = @transform_5, window_bounds = array<i64: 32, 128>}, {pipeline_mode = #tpu.pipeline_mode<synchronous>, transform_indices = @transform_6, window_bounds = array<i64: 1, 32>}, {pipeline_mode = #tpu.pipeline_mode<synchronous>, transform_indices = @transform_7, window_bounds = array<i64: 1, 32>}, {transform_indices = @transform_8, window_bounds = array<i64: 1, 8, 32>}]} {
    %c0 = arith.constant 0 : index
    %c0_0 = arith.constant 0 : index
    %c0_1 = arith.constant 0 : index
    %0 = vector.load %arg1[%c0, %c0_0, %c0_1] : memref<8x8x32xf32, #tpu.memory_space<vmem>>, vector<8x8x32xf32>
    %1 = vector.shape_cast %0 : vector<8x8x32xf32> to vector<64x32xf32>
    %2 = arith.truncf %1 : vector<64x32xf32> to vector<64x32xbf16>
    %c0_2 = arith.constant 0 : index
    %c0_3 = arith.constant 0 : index
    %3 = vector.load %arg3[%c0_2, %c0_3] : memref<32x256xbf16, #tpu.memory_space<vmem>>, vector<32x256xbf16>
    %cst = arith.constant dense<0.000000e+00> : vector<64x256xf32>
    %4 = tpu.matmul %2, %3, %cst {dimension_numbers = #tpu.dot_dimension_numbers<[1], [0], [0], [1], [0, 0, 1, 1], [], []>} : vector<64x32xbf16>, vector<32x256xbf16>, vector<64x256xf32> -> vector<64x256xf32>
    %c0_4 = arith.constant 0 : index
    %c0_5 = arith.constant 0 : index
    %5 = vector.load %arg4[%c0_4, %c0_5] : memref<1x256xf32, #tpu.memory_space<vmem>>, vector<1x256xf32>
    %6 = vector.broadcast %5 : vector<1x256xf32> to vector<64x256xf32>
    %7 = arith.addf %4, %6 : vector<64x256xf32>
    %8 = vector.extract_strided_slice %7 {offsets = [0, 0], sizes = [64, 128], strides = [1, 1]} : vector<64x256xf32> to vector<64x128xf32>
    %9 = vector.shape_cast %8 : vector<64x128xf32> to vector<8x8x128xf32>
    %c0_6 = arith.constant 0 : index
    %c0_7 = arith.constant 0 : index
    %c0_8 = arith.constant 0 : index
    %10 = vector.load %arg10[%c0_6, %c0_7, %c0_8] : memref<8x8x128xf32, #tpu.memory_space<vmem>>, vector<8x8x128xf32>
    tpu.vector_store %arg10[%c0_6, %c0_7, %c0_8], %9 {strides = array<i32>} : memref<8x8x128xf32, #tpu.memory_space<vmem>>, vector<8x8x128xf32>,
    %11 = vector.extract_strided_slice %7 {offsets = [0, 128], sizes = [64, 128], strides = [1, 1]} : vector<64x256xf32> to vector<64x128xf32>
    %12 = vector.shape_cast %11 : vector<64x128xf32> to vector<8x8x128xf32>
    %c0_9 = arith.constant 0 : index
    %c0_10 = arith.constant 0 : index
    %c0_11 = arith.constant 0 : index
    %13 = vector.load %arg11[%c0_9, %c0_10, %c0_11] : memref<8x8x128xf32, #tpu.memory_space<vmem>>, vector<8x8x128xf32>
    tpu.vector_store %arg11[%c0_9, %c0_10, %c0_11], %12 {strides = array<i32>} : memref<8x8x128xf32, #tpu.memory_space<vmem>>, vector<8x8x128xf32>,
    %c0_12 = arith.constant 0 : index
    %c0_13 = arith.constant 0 : index
    %14 = vector.load %arg7[%c0_12, %c0_13] : memref<1x32xf32, #tpu.memory_space<vmem>>, vector<1x32xf32>
    %15 = vector.shape_cast %14 : vector<1x32xf32> to vector<1x32xf32>
    %16 = vector.broadcast %15 : vector<1x32xf32> to vector<8x32xf32>
    %c0_14 = arith.constant 0 : index
    %c0_15 = arith.constant 0 : index
    %17 = vector.load %arg8[%c0_14, %c0_15] : memref<1x32xf32, #tpu.memory_space<vmem>>, vector<1x32xf32>
    %18 = vector.shape_cast %17 : vector<1x32xf32> to vector<1x32xf32>
    %19 = vector.broadcast %18 : vector<1x32xf32> to vector<8x32xf32>
    %cst_16 = arith.constant 0.000000e+00 : f32
    %20 = vector.broadcast %cst_16 : f32 to vector<8x32xf32>
    %c0_i32 = arith.constant 0 : i32
    %c7_i32 = arith.constant 7 : i32
    %21 = arith.subi %c7_i32, %c0_i32 : i32
    %22 = arith.index_cast %c0_i32 : i32 to index
    %c0_17 = arith.constant 0 : index
    %c0_18 = arith.constant 0 : index
    %23 = vector.load %arg10[%22, %c0_17, %c0_18] : memref<8x8x128xf32, #tpu.memory_space<vmem>>, vector<1x8x128xf32>
    %24 = vector.shape_cast %23 : vector<1x8x128xf32> to vector<8x128xf32>
    %c0_19 = arith.constant 0 : index
    %c0_20 = arith.constant 0 : index
    %25 = vector.load %arg5[%c0_19, %c0_20] : memref<32x128xbf16, #tpu.memory_space<vmem>>, vector<32x128xbf16>
    %26 = arith.truncf %20 : vector<8x32xf32> to vector<8x32xbf16>
    %cst_21 = arith.constant dense<0.000000e+00> : vector<8x128xf32>
    %27 = tpu.matmul %26, %25, %cst_21 {dimension_numbers = #tpu.dot_dimension_numbers<[1], [0], [0], [1], [0, 0, 1, 1], [], []>} : vector<8x32xbf16>, vector<32x128xbf16>, vector<8x128xf32> -> vector<8x128xf32>
    %28 = vector.extract_strided_slice %24 {offsets = [0, 0], sizes = [8, 32], strides = [1, 1]} : vector<8x128xf32> to vector<8x32xf32>
    %29 = vector.extract_strided_slice %27 {offsets = [0, 0], sizes = [8, 32], strides = [1, 1]} : vector<8x128xf32> to vector<8x32xf32>
    %30 = arith.addf %28, %29 : vector<8x32xf32>
    %31 = arith.negf %30 : vector<8x32xf32>
    %32 = math.exp %31 : vector<8x32xf32>
    %cst_22 = arith.constant 1.000000e+00 : f32
    %33 = vector.broadcast %cst_22 : f32 to vector<8x32xf32>
    %34 = arith.addf %33, %32 : vector<8x32xf32>
    %35 = arith.divf %33, %34 : vector<8x32xf32>
    %36 = vector.extract_strided_slice %24 {offsets = [0, 32], sizes = [8, 32], strides = [1, 1]} : vector<8x128xf32> to vector<8x32xf32>
    %37 = vector.extract_strided_slice %27 {offsets = [0, 32], sizes = [8, 32], strides = [1, 1]} : vector<8x128xf32> to vector<8x32xf32>
    %38 = arith.addf %36, %37 : vector<8x32xf32>
    %39 = arith.negf %38 : vector<8x32xf32>
    %40 = math.exp %39 : vector<8x32xf32>
    %cst_23 = arith.constant 1.000000e+00 : f32
    %41 = vector.broadcast %cst_23 : f32 to vector<8x32xf32>
    %42 = arith.addf %41, %40 : vector<8x32xf32>
    %43 = arith.divf %41, %42 : vector<8x32xf32>
    %44 = vector.extract_strided_slice %24 {offsets = [0, 64], sizes = [8, 32], strides = [1, 1]} : vector<8x128xf32> to vector<8x32xf32>
    %45 = vector.extract_strided_slice %27 {offsets = [0, 64], sizes = [8, 32], strides = [1, 1]} : vector<8x128xf32> to vector<8x32xf32>
    %46 = arith.addf %45, %16 : vector<8x32xf32>
    %47 = arith.mulf %35, %46 : vector<8x32xf32>
    %48 = arith.addf %44, %47 : vector<8x32xf32>
    %49 = math.tanh %48 : vector<8x32xf32>
    %cst_24 = arith.constant 1.000000e+00 : f32
    %50 = vector.broadcast %cst_24 : f32 to vector<8x32xf32>
    %51 = arith.subf %50, %43 : vector<8x32xf32>
    %52 = arith.mulf %51, %49 : vector<8x32xf32>
    %53 = arith.mulf %43, %20 : vector<8x32xf32>
    %54 = arith.addf %52, %53 : vector<8x32xf32>
    %55 = arith.index_cast %21 : i32 to index
    %c0_25 = arith.constant 0 : index
    %c0_26 = arith.constant 0 : index
    %56 = vector.load %arg11[%55, %c0_25, %c0_26] : memref<8x8x128xf32, #tpu.memory_space<vmem>>, vector<1x8x128xf32>
    %57 = vector.shape_cast %56 : vector<1x8x128xf32> to vector<8x128xf32>
    %c0_27 = arith.constant 0 : index
    %c0_28 = arith.constant 0 : index
    %58 = vector.load %arg6[%c0_27, %c0_28] : memref<32x128xbf16, #tpu.memory_space<vmem>>, vector<32x128xbf16>
    %59 = arith.truncf %20 : vector<8x32xf32> to vector<8x32xbf16>
    %cst_29 = arith.constant dense<0.000000e+00> : vector<8x128xf32>
    %60 = tpu.matmul %59, %58, %cst_29 {dimension_numbers = #tpu.dot_dimension_numbers<[1], [0], [0], [1], [0, 0, 1, 1], [], []>} : vector<8x32xbf16>, vector<32x128xbf16>, vector<8x128xf32> -> vector<8x128xf32>
    %61 = vector.extract_strided_slice %57 {offsets = [0, 0], sizes = [8, 32], strides = [1, 1]} : vector<8x128xf32> to vector<8x32xf32>
    %62 = vector.extract_strided_slice %60 {offsets = [0, 0], sizes = [8, 32], strides = [1, 1]} : vector<8x128xf32> to vector<8x32xf32>
    %63 = arith.addf %61, %62 : vector<8x32xf32>
    %64 = arith.negf %63 : vector<8x32xf32>
    %65 = math.exp %64 : vector<8x32xf32>
    %cst_30 = arith.constant 1.000000e+00 : f32
    %66 = vector.broadcast %cst_30 : f32 to vector<8x32xf32>
    %67 = arith.addf %66, %65 : vector<8x32xf32>
    %68 = arith.divf %66, %67 : vector<8x32xf32>
    %69 = vector.extract_strided_slice %57 {offsets = [0, 32], sizes = [8, 32], strides = [1, 1]} : vector<8x128xf32> to vector<8x32xf32>
    %70 = vector.extract_strided_slice %60 {offsets = [0, 32], sizes = [8, 32], strides = [1, 1]} : vector<8x128xf32> to vector<8x32xf32>
    %71 = arith.addf %69, %70 : vector<8x32xf32>
    %72 = arith.negf %71 : vector<8x32xf32>
    %73 = math.exp %72 : vector<8x32xf32>
    %cst_31 = arith.constant 1.000000e+00 : f32
    %74 = vector.broadcast %cst_31 : f32 to vector<8x32xf32>
    %75 = arith.addf %74, %73 : vector<8x32xf32>
    %76 = arith.divf %74, %75 : vector<8x32xf32>
    %77 = vector.extract_strided_slice %57 {offsets = [0, 64], sizes = [8, 32], strides = [1, 1]} : vector<8x128xf32> to vector<8x32xf32>
    %78 = vector.extract_strided_slice %60 {offsets = [0, 64], sizes = [8, 32], strides = [1, 1]} : vector<8x128xf32> to vector<8x32xf32>
    %79 = arith.addf %78, %19 : vector<8x32xf32>
    %80 = arith.mulf %68, %79 : vector<8x32xf32>
    %81 = arith.addf %77, %80 : vector<8x32xf32>
    %82 = math.tanh %81 : vector<8x32xf32>
    %cst_32 = arith.constant 1.000000e+00 : f32
    %83 = vector.broadcast %cst_32 : f32 to vector<8x32xf32>
    %84 = arith.subf %83, %76 : vector<8x32xf32>
    %85 = arith.mulf %84, %82 : vector<8x32xf32>
    %86 = arith.mulf %76, %20 : vector<8x32xf32>
    %87 = arith.addf %85, %86 : vector<8x32xf32>
    %88 = arith.index_cast %c0_i32 : i32 to index
    %c0_33 = arith.constant 0 : index
    %c0_34 = arith.constant 0 : index
    %89 = vector.load %arg2[%88, %c0_33, %c0_34] : memref<8x8x32xf32, #tpu.memory_space<vmem>>, vector<1x8x32xf32>
    %90 = vector.shape_cast %89 : vector<1x8x32xf32> to vector<8x32xf32>
    %91 = arith.index_cast %21 : i32 to index
    %c0_35 = arith.constant 0 : index
    %c0_36 = arith.constant 0 : index
    %92 = vector.load %arg2[%91, %c0_35, %c0_36] : memref<8x8x32xf32, #tpu.memory_space<vmem>>, vector<1x8x32xf32>
    %93 = vector.shape_cast %92 : vector<1x8x32xf32> to vector<8x32xf32>
    %94 = arith.subf %54, %20 : vector<8x32xf32>
    %95 = arith.mulf %90, %94 : vector<8x32xf32>
    %96 = arith.addf %20, %95 : vector<8x32xf32>
    %97 = arith.subf %87, %20 : vector<8x32xf32>
    %98 = arith.mulf %93, %97 : vector<8x32xf32>
    %99 = arith.addf %20, %98 : vector<8x32xf32>
    %c1_i32 = arith.constant 1 : i32
    %c7_i32_37 = arith.constant 7 : i32
    %100 = arith.subi %c7_i32_37, %c1_i32 : i32
    %101 = arith.index_cast %c1_i32 : i32 to index
    %c0_38 = arith.constant 0 : index
    %c0_39 = arith.constant 0 : index
    %102 = vector.load %arg10[%101, %c0_38, %c0_39] : memref<8x8x128xf32, #tpu.memory_space<vmem>>, vector<1x8x128xf32>
    %103 = vector.shape_cast %102 : vector<1x8x128xf32> to vector<8x128xf32>
    %c0_40 = arith.constant 0 : index
    %c0_41 = arith.constant 0 : index
    %104 = vector.load %arg5[%c0_40, %c0_41] : memref<32x128xbf16, #tpu.memory_space<vmem>>, vector<32x128xbf16>
    %105 = arith.truncf %96 : vector<8x32xf32> to vector<8x32xbf16>
    %cst_42 = arith.constant dense<0.000000e+00> : vector<8x128xf32>
    %106 = tpu.matmul %105, %104, %cst_42 {dimension_numbers = #tpu.dot_dimension_numbers<[1], [0], [0], [1], [0, 0, 1, 1], [], []>} : vector<8x32xbf16>, vector<32x128xbf16>, vector<8x128xf32> -> vector<8x128xf32>
    %107 = vector.extract_strided_slice %103 {offsets = [0, 0], sizes = [8, 32], strides = [1, 1]} : vector<8x128xf32> to vector<8x32xf32>
    %108 = vector.extract_strided_slice %106 {offsets = [0, 0], sizes = [8, 32], strides = [1, 1]} : vector<8x128xf32> to vector<8x32xf32>
    %109 = arith.addf %107, %108 : vector<8x32xf32>
    %110 = arith.negf %109 : vector<8x32xf32>
    %111 = math.exp %110 : vector<8x32xf32>
    %cst_43 = arith.constant 1.000000e+00 : f32
    %112 = vector.broadcast %cst_43 : f32 to vector<8x32xf32>
    %113 = arith.addf %112, %111 : vector<8x32xf32>
    %114 = arith.divf %112, %113 : vector<8x32xf32>
    %115 = vector.extract_strided_slice %103 {offsets = [0, 32], sizes = [8, 32], strides = [1, 1]} : vector<8x128xf32> to vector<8x32xf32>
    %116 = vector.extract_strided_slice %106 {offsets = [0, 32], sizes = [8, 32], strides = [1, 1]} : vector<8x128xf32> to vector<8x32xf32>
    %117 = arith.addf %115, %116 : vector<8x32xf32>
    %118 = arith.negf %117 : vector<8x32xf32>
    %119 = math.exp %118 : vector<8x32xf32>
    %cst_44 = arith.constant 1.000000e+00 : f32
    %120 = vector.broadcast %cst_44 : f32 to vector<8x32xf32>
    %121 = arith.addf %120, %119 : vector<8x32xf32>
    %122 = arith.divf %120, %121 : vector<8x32xf32>
    %123 = vector.extract_strided_slice %103 {offsets = [0, 64], sizes = [8, 32], strides = [1, 1]} : vector<8x128xf32> to vector<8x32xf32>
    %124 = vector.extract_strided_slice %106 {offsets = [0, 64], sizes = [8, 32], strides = [1, 1]} : vector<8x128xf32> to vector<8x32xf32>
    %125 = arith.addf %124, %16 : vector<8x32xf32>
    %126 = arith.mulf %114, %125 : vector<8x32xf32>
    %127 = arith.addf %123, %126 : vector<8x32xf32>
    %128 = math.tanh %127 : vector<8x32xf32>
    %cst_45 = arith.constant 1.000000e+00 : f32
    %129 = vector.broadcast %cst_45 : f32 to vector<8x32xf32>
    %130 = arith.subf %129, %122 : vector<8x32xf32>
    %131 = arith.mulf %130, %128 : vector<8x32xf32>
    %132 = arith.mulf %122, %96 : vector<8x32xf32>
    %133 = arith.addf %131, %132 : vector<8x32xf32>
    %134 = arith.index_cast %100 : i32 to index
    %c0_46 = arith.constant 0 : index
    %c0_47 = arith.constant 0 : index
    %135 = vector.load %arg11[%134, %c0_46, %c0_47] : memref<8x8x128xf32, #tpu.memory_space<vmem>>, vector<1x8x128xf32>
    %136 = vector.shape_cast %135 : vector<1x8x128xf32> to vector<8x128xf32>
    %c0_48 = arith.constant 0 : index
    %c0_49 = arith.constant 0 : index
    %137 = vector.load %arg6[%c0_48, %c0_49] : memref<32x128xbf16, #tpu.memory_space<vmem>>, vector<32x128xbf16>
    %138 = arith.truncf %99 : vector<8x32xf32> to vector<8x32xbf16>
    %cst_50 = arith.constant dense<0.000000e+00> : vector<8x128xf32>
    %139 = tpu.matmul %138, %137, %cst_50 {dimension_numbers = #tpu.dot_dimension_numbers<[1], [0], [0], [1], [0, 0, 1, 1], [], []>} : vector<8x32xbf16>, vector<32x128xbf16>, vector<8x128xf32> -> vector<8x128xf32>
    %140 = vector.extract_strided_slice %136 {offsets = [0, 0], sizes = [8, 32], strides = [1, 1]} : vector<8x128xf32> to vector<8x32xf32>
    %141 = vector.extract_strided_slice %139 {offsets = [0, 0], sizes = [8, 32], strides = [1, 1]} : vector<8x128xf32> to vector<8x32xf32>
    %142 = arith.addf %140, %141 : vector<8x32xf32>
    %143 = arith.negf %142 : vector<8x32xf32>
    %144 = math.exp %143 : vector<8x32xf32>
    %cst_51 = arith.constant 1.000000e+00 : f32
    %145 = vector.broadcast %cst_51 : f32 to vector<8x32xf32>
    %146 = arith.addf %145, %144 : vector<8x32xf32>
    %147 = arith.divf %145, %146 : vector<8x32xf32>
    %148 = vector.extract_strided_slice %136 {offsets = [0, 32], sizes = [8, 32], strides = [1, 1]} : vector<8x128xf32> to vector<8x32xf32>
    %149 = vector.extract_strided_slice %139 {offsets = [0, 32], sizes = [8, 32], strides = [1, 1]} : vector<8x128xf32> to vector<8x32xf32>
    %150 = arith.addf %148, %149 : vector<8x32xf32>
    %151 = arith.negf %150 : vector<8x32xf32>
    %152 = math.exp %151 : vector<8x32xf32>
    %cst_52 = arith.constant 1.000000e+00 : f32
    %153 = vector.broadcast %cst_52 : f32 to vector<8x32xf32>
    %154 = arith.addf %153, %152 : vector<8x32xf32>
    %155 = arith.divf %153, %154 : vector<8x32xf32>
    %156 = vector.extract_strided_slice %136 {offsets = [0, 64], sizes = [8, 32], strides = [1, 1]} : vector<8x128xf32> to vector<8x32xf32>
    %157 = vector.extract_strided_slice %139 {offsets = [0, 64], sizes = [8, 32], strides = [1, 1]} : vector<8x128xf32> to vector<8x32xf32>
    %158 = arith.addf %157, %19 : vector<8x32xf32>
    %159 = arith.mulf %147, %158 : vector<8x32xf32>
    %160 = arith.addf %156, %159 : vector<8x32xf32>
    %161 = math.tanh %160 : vector<8x32xf32>
    %cst_53 = arith.constant 1.000000e+00 : f32
    %162 = vector.broadcast %cst_53 : f32 to vector<8x32xf32>
    %163 = arith.subf %162, %155 : vector<8x32xf32>
    %164 = arith.mulf %163, %161 : vector<8x32xf32>
    %165 = arith.mulf %155, %99 : vector<8x32xf32>
    %166 = arith.addf %164, %165 : vector<8x32xf32>
    %167 = arith.index_cast %c1_i32 : i32 to index
    %c0_54 = arith.constant 0 : index
    %c0_55 = arith.constant 0 : index
    %168 = vector.load %arg2[%167, %c0_54, %c0_55] : memref<8x8x32xf32, #tpu.memory_space<vmem>>, vector<1x8x32xf32>
    %169 = vector.shape_cast %168 : vector<1x8x32xf32> to vector<8x32xf32>
    %170 = arith.index_cast %100 : i32 to index
    %c0_56 = arith.constant 0 : index
    %c0_57 = arith.constant 0 : index
    %171 = vector.load %arg2[%170, %c0_56, %c0_57] : memref<8x8x32xf32, #tpu.memory_space<vmem>>, vector<1x8x32xf32>
    %172 = vector.shape_cast %171 : vector<1x8x32xf32> to vector<8x32xf32>
    %173 = arith.subf %133, %96 : vector<8x32xf32>
    %174 = arith.mulf %169, %173 : vector<8x32xf32>
    %175 = arith.addf %96, %174 : vector<8x32xf32>
    %176 = arith.subf %166, %99 : vector<8x32xf32>
    %177 = arith.mulf %172, %176 : vector<8x32xf32>
    %178 = arith.addf %99, %177 : vector<8x32xf32>
    %c2_i32 = arith.constant 2 : i32
    %c7_i32_58 = arith.constant 7 : i32
    %179 = arith.subi %c7_i32_58, %c2_i32 : i32
    %180 = arith.index_cast %c2_i32 : i32 to index
    %c0_59 = arith.constant 0 : index
    %c0_60 = arith.constant 0 : index
    %181 = vector.load %arg10[%180, %c0_59, %c0_60] : memref<8x8x128xf32, #tpu.memory_space<vmem>>, vector<1x8x128xf32>
    %182 = vector.shape_cast %181 : vector<1x8x128xf32> to vector<8x128xf32>
    %c0_61 = arith.constant 0 : index
    %c0_62 = arith.constant 0 : index
    %183 = vector.load %arg5[%c0_61, %c0_62] : memref<32x128xbf16, #tpu.memory_space<vmem>>, vector<32x128xbf16>
    %184 = arith.truncf %175 : vector<8x32xf32> to vector<8x32xbf16>
    %cst_63 = arith.constant dense<0.000000e+00> : vector<8x128xf32>
    %185 = tpu.matmul %184, %183, %cst_63 {dimension_numbers = #tpu.dot_dimension_numbers<[1], [0], [0], [1], [0, 0, 1, 1], [], []>} : vector<8x32xbf16>, vector<32x128xbf16>, vector<8x128xf32> -> vector<8x128xf32>
    %186 = vector.extract_strided_slice %182 {offsets = [0, 0], sizes = [8, 32], strides = [1, 1]} : vector<8x128xf32> to vector<8x32xf32>
    %187 = vector.extract_strided_slice %185 {offsets = [0, 0], sizes = [8, 32], strides = [1, 1]} : vector<8x128xf32> to vector<8x32xf32>
    %188 = arith.addf %186, %187 : vector<8x32xf32>
    %189 = arith.negf %188 : vector<8x32xf32>
    %190 = math.exp %189 : vector<8x32xf32>
    %cst_64 = arith.constant 1.000000e+00 : f32
    %191 = vector.broadcast %cst_64 : f32 to vector<8x32xf32>
    %192 = arith.addf %191, %190 : vector<8x32xf32>
    %193 = arith.divf %191, %192 : vector<8x32xf32>
    %194 = vector.extract_strided_slice %182 {offsets = [0, 32], sizes = [8, 32], strides = [1, 1]} : vector<8x128xf32> to vector<8x32xf32>
    %195 = vector.extract_strided_slice %185 {offsets = [0, 32], sizes = [8, 32], strides = [1, 1]} : vector<8x128xf32> to vector<8x32xf32>
    %196 = arith.addf %194, %195 : vector<8x32xf32>
    %197 = arith.negf %196 : vector<8x32xf32>
    %198 = math.exp %197 : vector<8x32xf32>
    %cst_65 = arith.constant 1.000000e+00 : f32
    %199 = vector.broadcast %cst_65 : f32 to vector<8x32xf32>
    %200 = arith.addf %199, %198 : vector<8x32xf32>
    %201 = arith.divf %199, %200 : vector<8x32xf32>
    %202 = vector.extract_strided_slice %182 {offsets = [0, 64], sizes = [8, 32], strides = [1, 1]} : vector<8x128xf32> to vector<8x32xf32>
    %203 = vector.extract_strided_slice %185 {offsets = [0, 64], sizes = [8, 32], strides = [1, 1]} : vector<8x128xf32> to vector<8x32xf32>
    %204 = arith.addf %203, %16 : vector<8x32xf32>
    %205 = arith.mulf %193, %204 : vector<8x32xf32>
    %206 = arith.addf %202, %205 : vector<8x32xf32>
    %207 = math.tanh %206 : vector<8x32xf32>
    %cst_66 = arith.constant 1.000000e+00 : f32
    %208 = vector.broadcast %cst_66 : f32 to vector<8x32xf32>
    %209 = arith.subf %208, %201 : vector<8x32xf32>
    %210 = arith.mulf %209, %207 : vector<8x32xf32>
    %211 = arith.mulf %201, %175 : vector<8x32xf32>
    %212 = arith.addf %210, %211 : vector<8x32xf32>
    %213 = arith.index_cast %179 : i32 to index
    %c0_67 = arith.constant 0 : index
    %c0_68 = arith.constant 0 : index
    %214 = vector.load %arg11[%213, %c0_67, %c0_68] : memref<8x8x128xf32, #tpu.memory_space<vmem>>, vector<1x8x128xf32>
    %215 = vector.shape_cast %214 : vector<1x8x128xf32> to vector<8x128xf32>
    %c0_69 = arith.constant 0 : index
    %c0_70 = arith.constant 0 : index
    %216 = vector.load %arg6[%c0_69, %c0_70] : memref<32x128xbf16, #tpu.memory_space<vmem>>, vector<32x128xbf16>
    %217 = arith.truncf %178 : vector<8x32xf32> to vector<8x32xbf16>
    %cst_71 = arith.constant dense<0.000000e+00> : vector<8x128xf32>
    %218 = tpu.matmul %217, %216, %cst_71 {dimension_numbers = #tpu.dot_dimension_numbers<[1], [0], [0], [1], [0, 0, 1, 1], [], []>} : vector<8x32xbf16>, vector<32x128xbf16>, vector<8x128xf32> -> vector<8x128xf32>
    %219 = vector.extract_strided_slice %215 {offsets = [0, 0], sizes = [8, 32], strides = [1, 1]} : vector<8x128xf32> to vector<8x32xf32>
    %220 = vector.extract_strided_slice %218 {offsets = [0, 0], sizes = [8, 32], strides = [1, 1]} : vector<8x128xf32> to vector<8x32xf32>
    %221 = arith.addf %219, %220 : vector<8x32xf32>
    %222 = arith.negf %221 : vector<8x32xf32>
    %223 = math.exp %222 : vector<8x32xf32>
    %cst_72 = arith.constant 1.000000e+00 : f32
    %224 = vector.broadcast %cst_72 : f32 to vector<8x32xf32>
    %225 = arith.addf %224, %223 : vector<8x32xf32>
    %226 = arith.divf %224, %225 : vector<8x32xf32>
    %227 = vector.extract_strided_slice %215 {offsets = [0, 32], sizes = [8, 32], strides = [1, 1]} : vector<8x128xf32> to vector<8x32xf32>
    %228 = vector.extract_strided_slice %218 {offsets = [0, 32], sizes = [8, 32], strides = [1, 1]} : vector<8x128xf32> to vector<8x32xf32>
    %229 = arith.addf %227, %228 : vector<8x32xf32>
    %230 = arith.negf %229 : vector<8x32xf32>
    %231 = math.exp %230 : vector<8x32xf32>
    %cst_73 = arith.constant 1.000000e+00 : f32
    %232 = vector.broadcast %cst_73 : f32 to vector<8x32xf32>
    %233 = arith.addf %232, %231 : vector<8x32xf32>
    %234 = arith.divf %232, %233 : vector<8x32xf32>
    %235 = vector.extract_strided_slice %215 {offsets = [0, 64], sizes = [8, 32], strides = [1, 1]} : vector<8x128xf32> to vector<8x32xf32>
    %236 = vector.extract_strided_slice %218 {offsets = [0, 64], sizes = [8, 32], strides = [1, 1]} : vector<8x128xf32> to vector<8x32xf32>
    %237 = arith.addf %236, %19 : vector<8x32xf32>
    %238 = arith.mulf %226, %237 : vector<8x32xf32>
    %239 = arith.addf %235, %238 : vector<8x32xf32>
    %240 = math.tanh %239 : vector<8x32xf32>
    %cst_74 = arith.constant 1.000000e+00 : f32
    %241 = vector.broadcast %cst_74 : f32 to vector<8x32xf32>
    %242 = arith.subf %241, %234 : vector<8x32xf32>
    %243 = arith.mulf %242, %240 : vector<8x32xf32>
    %244 = arith.mulf %234, %178 : vector<8x32xf32>
    %245 = arith.addf %243, %244 : vector<8x32xf32>
    %246 = arith.index_cast %c2_i32 : i32 to index
    %c0_75 = arith.constant 0 : index
    %c0_76 = arith.constant 0 : index
    %247 = vector.load %arg2[%246, %c0_75, %c0_76] : memref<8x8x32xf32, #tpu.memory_space<vmem>>, vector<1x8x32xf32>
    %248 = vector.shape_cast %247 : vector<1x8x32xf32> to vector<8x32xf32>
    %249 = arith.index_cast %179 : i32 to index
    %c0_77 = arith.constant 0 : index
    %c0_78 = arith.constant 0 : index
    %250 = vector.load %arg2[%249, %c0_77, %c0_78] : memref<8x8x32xf32, #tpu.memory_space<vmem>>, vector<1x8x32xf32>
    %251 = vector.shape_cast %250 : vector<1x8x32xf32> to vector<8x32xf32>
    %252 = arith.subf %212, %175 : vector<8x32xf32>
    %253 = arith.mulf %248, %252 : vector<8x32xf32>
    %254 = arith.addf %175, %253 : vector<8x32xf32>
    %255 = arith.subf %245, %178 : vector<8x32xf32>
    %256 = arith.mulf %251, %255 : vector<8x32xf32>
    %257 = arith.addf %178, %256 : vector<8x32xf32>
    %c3_i32 = arith.constant 3 : i32
    %c7_i32_79 = arith.constant 7 : i32
    %258 = arith.subi %c7_i32_79, %c3_i32 : i32
    %259 = arith.index_cast %c3_i32 : i32 to index
    %c0_80 = arith.constant 0 : index
    %c0_81 = arith.constant 0 : index
    %260 = vector.load %arg10[%259, %c0_80, %c0_81] : memref<8x8x128xf32, #tpu.memory_space<vmem>>, vector<1x8x128xf32>
    %261 = vector.shape_cast %260 : vector<1x8x128xf32> to vector<8x128xf32>
    %c0_82 = arith.constant 0 : index
    %c0_83 = arith.constant 0 : index
    %262 = vector.load %arg5[%c0_82, %c0_83] : memref<32x128xbf16, #tpu.memory_space<vmem>>, vector<32x128xbf16>
    %263 = arith.truncf %254 : vector<8x32xf32> to vector<8x32xbf16>
    %cst_84 = arith.constant dense<0.000000e+00> : vector<8x128xf32>
    %264 = tpu.matmul %263, %262, %cst_84 {dimension_numbers = #tpu.dot_dimension_numbers<[1], [0], [0], [1], [0, 0, 1, 1], [], []>} : vector<8x32xbf16>, vector<32x128xbf16>, vector<8x128xf32> -> vector<8x128xf32>
    %265 = vector.extract_strided_slice %261 {offsets = [0, 0], sizes = [8, 32], strides = [1, 1]} : vector<8x128xf32> to vector<8x32xf32>
    %266 = vector.extract_strided_slice %264 {offsets = [0, 0], sizes = [8, 32], strides = [1, 1]} : vector<8x128xf32> to vector<8x32xf32>
    %267 = arith.addf %265, %266 : vector<8x32xf32>
    %268 = arith.negf %267 : vector<8x32xf32>
    %269 = math.exp %268 : vector<8x32xf32>
    %cst_85 = arith.constant 1.000000e+00 : f32
    %270 = vector.broadcast %cst_85 : f32 to vector<8x32xf32>
    %271 = arith.addf %270, %269 : vector<8x32xf32>
    %272 = arith.divf %270, %271 : vector<8x32xf32>
    %273 = vector.extract_strided_slice %261 {offsets = [0, 32], sizes = [8, 32], strides = [1, 1]} : vector<8x128xf32> to vector<8x32xf32>
    %274 = vector.extract_strided_slice %264 {offsets = [0, 32], sizes = [8, 32], strides = [1, 1]} : vector<8x128xf32> to vector<8x32xf32>
    %275 = arith.addf %273, %274 : vector<8x32xf32>
    %276 = arith.negf %275 : vector<8x32xf32>
    %277 = math.exp %276 : vector<8x32xf32>
    %cst_86 = arith.constant 1.000000e+00 : f32
    %278 = vector.broadcast %cst_86 : f32 to vector<8x32xf32>
    %279 = arith.addf %278, %277 : vector<8x32xf32>
    %280 = arith.divf %278, %279 : vector<8x32xf32>
    %281 = vector.extract_strided_slice %261 {offsets = [0, 64], sizes = [8, 32], strides = [1, 1]} : vector<8x128xf32> to vector<8x32xf32>
    %282 = vector.extract_strided_slice %264 {offsets = [0, 64], sizes = [8, 32], strides = [1, 1]} : vector<8x128xf32> to vector<8x32xf32>
    %283 = arith.addf %282, %16 : vector<8x32xf32>
    %284 = arith.mulf %272, %283 : vector<8x32xf32>
    %285 = arith.addf %281, %284 : vector<8x32xf32>
    %286 = math.tanh %285 : vector<8x32xf32>
    %cst_87 = arith.constant 1.000000e+00 : f32
    %287 = vector.broadcast %cst_87 : f32 to vector<8x32xf32>
    %288 = arith.subf %287, %280 : vector<8x32xf32>
    %289 = arith.mulf %288, %286 : vector<8x32xf32>
    %290 = arith.mulf %280, %254 : vector<8x32xf32>
    %291 = arith.addf %289, %290 : vector<8x32xf32>
    %292 = arith.index_cast %258 : i32 to index
    %c0_88 = arith.constant 0 : index
    %c0_89 = arith.constant 0 : index
    %293 = vector.load %arg11[%292, %c0_88, %c0_89] : memref<8x8x128xf32, #tpu.memory_space<vmem>>, vector<1x8x128xf32>
    %294 = vector.shape_cast %293 : vector<1x8x128xf32> to vector<8x128xf32>
    %c0_90 = arith.constant 0 : index
    %c0_91 = arith.constant 0 : index
    %295 = vector.load %arg6[%c0_90, %c0_91] : memref<32x128xbf16, #tpu.memory_space<vmem>>, vector<32x128xbf16>
    %296 = arith.truncf %257 : vector<8x32xf32> to vector<8x32xbf16>
    %cst_92 = arith.constant dense<0.000000e+00> : vector<8x128xf32>
    %297 = tpu.matmul %296, %295, %cst_92 {dimension_numbers = #tpu.dot_dimension_numbers<[1], [0], [0], [1], [0, 0, 1, 1], [], []>} : vector<8x32xbf16>, vector<32x128xbf16>, vector<8x128xf32> -> vector<8x128xf32>
    %298 = vector.extract_strided_slice %294 {offsets = [0, 0], sizes = [8, 32], strides = [1, 1]} : vector<8x128xf32> to vector<8x32xf32>
    %299 = vector.extract_strided_slice %297 {offsets = [0, 0], sizes = [8, 32], strides = [1, 1]} : vector<8x128xf32> to vector<8x32xf32>
    %300 = arith.addf %298, %299 : vector<8x32xf32>
    %301 = arith.negf %300 : vector<8x32xf32>
    %302 = math.exp %301 : vector<8x32xf32>
    %cst_93 = arith.constant 1.000000e+00 : f32
    %303 = vector.broadcast %cst_93 : f32 to vector<8x32xf32>
    %304 = arith.addf %303, %302 : vector<8x32xf32>
    %305 = arith.divf %303, %304 : vector<8x32xf32>
    %306 = vector.extract_strided_slice %294 {offsets = [0, 32], sizes = [8, 32], strides = [1, 1]} : vector<8x128xf32> to vector<8x32xf32>
    %307 = vector.extract_strided_slice %297 {offsets = [0, 32], sizes = [8, 32], strides = [1, 1]} : vector<8x128xf32> to vector<8x32xf32>
    %308 = arith.addf %306, %307 : vector<8x32xf32>
    %309 = arith.negf %308 : vector<8x32xf32>
    %310 = math.exp %309 : vector<8x32xf32>
    %cst_94 = arith.constant 1.000000e+00 : f32
    %311 = vector.broadcast %cst_94 : f32 to vector<8x32xf32>
    %312 = arith.addf %311, %310 : vector<8x32xf32>
    %313 = arith.divf %311, %312 : vector<8x32xf32>
    %314 = vector.extract_strided_slice %294 {offsets = [0, 64], sizes = [8, 32], strides = [1, 1]} : vector<8x128xf32> to vector<8x32xf32>
    %315 = vector.extract_strided_slice %297 {offsets = [0, 64], sizes = [8, 32], strides = [1, 1]} : vector<8x128xf32> to vector<8x32xf32>
    %316 = arith.addf %315, %19 : vector<8x32xf32>
    %317 = arith.mulf %305, %316 : vector<8x32xf32>
    %318 = arith.addf %314, %317 : vector<8x32xf32>
    %319 = math.tanh %318 : vector<8x32xf32>
    %cst_95 = arith.constant 1.000000e+00 : f32
    %320 = vector.broadcast %cst_95 : f32 to vector<8x32xf32>
    %321 = arith.subf %320, %313 : vector<8x32xf32>
    %322 = arith.mulf %321, %319 : vector<8x32xf32>
    %323 = arith.mulf %313, %257 : vector<8x32xf32>
    %324 = arith.addf %322, %323 : vector<8x32xf32>
    %325 = arith.index_cast %c3_i32 : i32 to index
    %c0_96 = arith.constant 0 : index
    %c0_97 = arith.constant 0 : index
    %326 = vector.load %arg2[%325, %c0_96, %c0_97] : memref<8x8x32xf32, #tpu.memory_space<vmem>>, vector<1x8x32xf32>
    %327 = vector.shape_cast %326 : vector<1x8x32xf32> to vector<8x32xf32>
    %328 = arith.index_cast %258 : i32 to index
    %c0_98 = arith.constant 0 : index
    %c0_99 = arith.constant 0 : index
    %329 = vector.load %arg2[%328, %c0_98, %c0_99] : memref<8x8x32xf32, #tpu.memory_space<vmem>>, vector<1x8x32xf32>
    %330 = vector.shape_cast %329 : vector<1x8x32xf32> to vector<8x32xf32>
    %331 = arith.subf %291, %254 : vector<8x32xf32>
    %332 = arith.mulf %327, %331 : vector<8x32xf32>
    %333 = arith.addf %254, %332 : vector<8x32xf32>
    %334 = arith.subf %324, %257 : vector<8x32xf32>
    %335 = arith.mulf %330, %334 : vector<8x32xf32>
    %336 = arith.addf %257, %335 : vector<8x32xf32>
    %c4_i32 = arith.constant 4 : i32
    %c7_i32_100 = arith.constant 7 : i32
    %337 = arith.subi %c7_i32_100, %c4_i32 : i32
    %338 = arith.index_cast %c4_i32 : i32 to index
    %c0_101 = arith.constant 0 : index
    %c0_102 = arith.constant 0 : index
    %339 = vector.load %arg10[%338, %c0_101, %c0_102] : memref<8x8x128xf32, #tpu.memory_space<vmem>>, vector<1x8x128xf32>
    %340 = vector.shape_cast %339 : vector<1x8x128xf32> to vector<8x128xf32>
    %c0_103 = arith.constant 0 : index
    %c0_104 = arith.constant 0 : index
    %341 = vector.load %arg5[%c0_103, %c0_104] : memref<32x128xbf16, #tpu.memory_space<vmem>>, vector<32x128xbf16>
    %342 = arith.truncf %333 : vector<8x32xf32> to vector<8x32xbf16>
    %cst_105 = arith.constant dense<0.000000e+00> : vector<8x128xf32>
    %343 = tpu.matmul %342, %341, %cst_105 {dimension_numbers = #tpu.dot_dimension_numbers<[1], [0], [0], [1], [0, 0, 1, 1], [], []>} : vector<8x32xbf16>, vector<32x128xbf16>, vector<8x128xf32> -> vector<8x128xf32>
    %344 = vector.extract_strided_slice %340 {offsets = [0, 0], sizes = [8, 32], strides = [1, 1]} : vector<8x128xf32> to vector<8x32xf32>
    %345 = vector.extract_strided_slice %343 {offsets = [0, 0], sizes = [8, 32], strides = [1, 1]} : vector<8x128xf32> to vector<8x32xf32>
    %346 = arith.addf %344, %345 : vector<8x32xf32>
    %347 = arith.negf %346 : vector<8x32xf32>
    %348 = math.exp %347 : vector<8x32xf32>
    %cst_106 = arith.constant 1.000000e+00 : f32
    %349 = vector.broadcast %cst_106 : f32 to vector<8x32xf32>
    %350 = arith.addf %349, %348 : vector<8x32xf32>
    %351 = arith.divf %349, %350 : vector<8x32xf32>
    %352 = vector.extract_strided_slice %340 {offsets = [0, 32], sizes = [8, 32], strides = [1, 1]} : vector<8x128xf32> to vector<8x32xf32>
    %353 = vector.extract_strided_slice %343 {offsets = [0, 32], sizes = [8, 32], strides = [1, 1]} : vector<8x128xf32> to vector<8x32xf32>
    %354 = arith.addf %352, %353 : vector<8x32xf32>
    %355 = arith.negf %354 : vector<8x32xf32>
    %356 = math.exp %355 : vector<8x32xf32>
    %cst_107 = arith.constant 1.000000e+00 : f32
    %357 = vector.broadcast %cst_107 : f32 to vector<8x32xf32>
    %358 = arith.addf %357, %356 : vector<8x32xf32>
    %359 = arith.divf %357, %358 : vector<8x32xf32>
    %360 = vector.extract_strided_slice %340 {offsets = [0, 64], sizes = [8, 32], strides = [1, 1]} : vector<8x128xf32> to vector<8x32xf32>
    %361 = vector.extract_strided_slice %343 {offsets = [0, 64], sizes = [8, 32], strides = [1, 1]} : vector<8x128xf32> to vector<8x32xf32>
    %362 = arith.addf %361, %16 : vector<8x32xf32>
    %363 = arith.mulf %351, %362 : vector<8x32xf32>
    %364 = arith.addf %360, %363 : vector<8x32xf32>
    %365 = math.tanh %364 : vector<8x32xf32>
    %cst_108 = arith.constant 1.000000e+00 : f32
    %366 = vector.broadcast %cst_108 : f32 to vector<8x32xf32>
    %367 = arith.subf %366, %359 : vector<8x32xf32>
    %368 = arith.mulf %367, %365 : vector<8x32xf32>
    %369 = arith.mulf %359, %333 : vector<8x32xf32>
    %370 = arith.addf %368, %369 : vector<8x32xf32>
    %371 = arith.index_cast %337 : i32 to index
    %c0_109 = arith.constant 0 : index
    %c0_110 = arith.constant 0 : index
    %372 = vector.load %arg11[%371, %c0_109, %c0_110] : memref<8x8x128xf32, #tpu.memory_space<vmem>>, vector<1x8x128xf32>
    %373 = vector.shape_cast %372 : vector<1x8x128xf32> to vector<8x128xf32>
    %c0_111 = arith.constant 0 : index
    %c0_112 = arith.constant 0 : index
    %374 = vector.load %arg6[%c0_111, %c0_112] : memref<32x128xbf16, #tpu.memory_space<vmem>>, vector<32x128xbf16>
    %375 = arith.truncf %336 : vector<8x32xf32> to vector<8x32xbf16>
    %cst_113 = arith.constant dense<0.000000e+00> : vector<8x128xf32>
    %376 = tpu.matmul %375, %374, %cst_113 {dimension_numbers = #tpu.dot_dimension_numbers<[1], [0], [0], [1], [0, 0, 1, 1], [], []>} : vector<8x32xbf16>, vector<32x128xbf16>, vector<8x128xf32> -> vector<8x128xf32>
    %377 = vector.extract_strided_slice %373 {offsets = [0, 0], sizes = [8, 32], strides = [1, 1]} : vector<8x128xf32> to vector<8x32xf32>
    %378 = vector.extract_strided_slice %376 {offsets = [0, 0], sizes = [8, 32], strides = [1, 1]} : vector<8x128xf32> to vector<8x32xf32>
    %379 = arith.addf %377, %378 : vector<8x32xf32>
    %380 = arith.negf %379 : vector<8x32xf32>
    %381 = math.exp %380 : vector<8x32xf32>
    %cst_114 = arith.constant 1.000000e+00 : f32
    %382 = vector.broadcast %cst_114 : f32 to vector<8x32xf32>
    %383 = arith.addf %382, %381 : vector<8x32xf32>
    %384 = arith.divf %382, %383 : vector<8x32xf32>
    %385 = vector.extract_strided_slice %373 {offsets = [0, 32], sizes = [8, 32], strides = [1, 1]} : vector<8x128xf32> to vector<8x32xf32>
    %386 = vector.extract_strided_slice %376 {offsets = [0, 32], sizes = [8, 32], strides = [1, 1]} : vector<8x128xf32> to vector<8x32xf32>
    %387 = arith.addf %385, %386 : vector<8x32xf32>
    %388 = arith.negf %387 : vector<8x32xf32>
    %389 = math.exp %388 : vector<8x32xf32>
    %cst_115 = arith.constant 1.000000e+00 : f32
    %390 = vector.broadcast %cst_115 : f32 to vector<8x32xf32>
    %391 = arith.addf %390, %389 : vector<8x32xf32>
    %392 = arith.divf %390, %391 : vector<8x32xf32>
    %393 = vector.extract_strided_slice %373 {offsets = [0, 64], sizes = [8, 32], strides = [1, 1]} : vector<8x128xf32> to vector<8x32xf32>
    %394 = vector.extract_strided_slice %376 {offsets = [0, 64], sizes = [8, 32], strides = [1, 1]} : vector<8x128xf32> to vector<8x32xf32>
    %395 = arith.addf %394, %19 : vector<8x32xf32>
    %396 = arith.mulf %384, %395 : vector<8x32xf32>
    %397 = arith.addf %393, %396 : vector<8x32xf32>
    %398 = math.tanh %397 : vector<8x32xf32>
    %cst_116 = arith.constant 1.000000e+00 : f32
    %399 = vector.broadcast %cst_116 : f32 to vector<8x32xf32>
    %400 = arith.subf %399, %392 : vector<8x32xf32>
    %401 = arith.mulf %400, %398 : vector<8x32xf32>
    %402 = arith.mulf %392, %336 : vector<8x32xf32>
    %403 = arith.addf %401, %402 : vector<8x32xf32>
    %404 = arith.index_cast %c4_i32 : i32 to index
    %c0_117 = arith.constant 0 : index
    %c0_118 = arith.constant 0 : index
    %405 = vector.load %arg2[%404, %c0_117, %c0_118] : memref<8x8x32xf32, #tpu.memory_space<vmem>>, vector<1x8x32xf32>
    %406 = vector.shape_cast %405 : vector<1x8x32xf32> to vector<8x32xf32>
    %407 = arith.index_cast %337 : i32 to index
    %c0_119 = arith.constant 0 : index
    %c0_120 = arith.constant 0 : index
    %408 = vector.load %arg2[%407, %c0_119, %c0_120] : memref<8x8x32xf32, #tpu.memory_space<vmem>>, vector<1x8x32xf32>
    %409 = vector.shape_cast %408 : vector<1x8x32xf32> to vector<8x32xf32>
    %410 = arith.subf %370, %333 : vector<8x32xf32>
    %411 = arith.mulf %406, %410 : vector<8x32xf32>
    %412 = arith.addf %333, %411 : vector<8x32xf32>
    %413 = arith.subf %403, %336 : vector<8x32xf32>
    %414 = arith.mulf %409, %413 : vector<8x32xf32>
    %415 = arith.addf %336, %414 : vector<8x32xf32>
    %c5_i32 = arith.constant 5 : i32
    %c7_i32_121 = arith.constant 7 : i32
    %416 = arith.subi %c7_i32_121, %c5_i32 : i32
    %417 = arith.index_cast %c5_i32 : i32 to index
    %c0_122 = arith.constant 0 : index
    %c0_123 = arith.constant 0 : index
    %418 = vector.load %arg10[%417, %c0_122, %c0_123] : memref<8x8x128xf32, #tpu.memory_space<vmem>>, vector<1x8x128xf32>
    %419 = vector.shape_cast %418 : vector<1x8x128xf32> to vector<8x128xf32>
    %c0_124 = arith.constant 0 : index
    %c0_125 = arith.constant 0 : index
    %420 = vector.load %arg5[%c0_124, %c0_125] : memref<32x128xbf16, #tpu.memory_space<vmem>>, vector<32x128xbf16>
    %421 = arith.truncf %412 : vector<8x32xf32> to vector<8x32xbf16>
    %cst_126 = arith.constant dense<0.000000e+00> : vector<8x128xf32>
    %422 = tpu.matmul %421, %420, %cst_126 {dimension_numbers = #tpu.dot_dimension_numbers<[1], [0], [0], [1], [0, 0, 1, 1], [], []>} : vector<8x32xbf16>, vector<32x128xbf16>, vector<8x128xf32> -> vector<8x128xf32>
    %423 = vector.extract_strided_slice %419 {offsets = [0, 0], sizes = [8, 32], strides = [1, 1]} : vector<8x128xf32> to vector<8x32xf32>
    %424 = vector.extract_strided_slice %422 {offsets = [0, 0], sizes = [8, 32], strides = [1, 1]} : vector<8x128xf32> to vector<8x32xf32>
    %425 = arith.addf %423, %424 : vector<8x32xf32>
    %426 = arith.negf %425 : vector<8x32xf32>
    %427 = math.exp %426 : vector<8x32xf32>
    %cst_127 = arith.constant 1.000000e+00 : f32
    %428 = vector.broadcast %cst_127 : f32 to vector<8x32xf32>
    %429 = arith.addf %428, %427 : vector<8x32xf32>
    %430 = arith.divf %428, %429 : vector<8x32xf32>
    %431 = vector.extract_strided_slice %419 {offsets = [0, 32], sizes = [8, 32], strides = [1, 1]} : vector<8x128xf32> to vector<8x32xf32>
    %432 = vector.extract_strided_slice %422 {offsets = [0, 32], sizes = [8, 32], strides = [1, 1]} : vector<8x128xf32> to vector<8x32xf32>
    %433 = arith.addf %431, %432 : vector<8x32xf32>
    %434 = arith.negf %433 : vector<8x32xf32>
    %435 = math.exp %434 : vector<8x32xf32>
    %cst_128 = arith.constant 1.000000e+00 : f32
    %436 = vector.broadcast %cst_128 : f32 to vector<8x32xf32>
    %437 = arith.addf %436, %435 : vector<8x32xf32>
    %438 = arith.divf %436, %437 : vector<8x32xf32>
    %439 = vector.extract_strided_slice %419 {offsets = [0, 64], sizes = [8, 32], strides = [1, 1]} : vector<8x128xf32> to vector<8x32xf32>
    %440 = vector.extract_strided_slice %422 {offsets = [0, 64], sizes = [8, 32], strides = [1, 1]} : vector<8x128xf32> to vector<8x32xf32>
    %441 = arith.addf %440, %16 : vector<8x32xf32>
    %442 = arith.mulf %430, %441 : vector<8x32xf32>
    %443 = arith.addf %439, %442 : vector<8x32xf32>
    %444 = math.tanh %443 : vector<8x32xf32>
    %cst_129 = arith.constant 1.000000e+00 : f32
    %445 = vector.broadcast %cst_129 : f32 to vector<8x32xf32>
    %446 = arith.subf %445, %438 : vector<8x32xf32>
    %447 = arith.mulf %446, %444 : vector<8x32xf32>
    %448 = arith.mulf %438, %412 : vector<8x32xf32>
    %449 = arith.addf %447, %448 : vector<8x32xf32>
    %450 = arith.index_cast %416 : i32 to index
    %c0_130 = arith.constant 0 : index
    %c0_131 = arith.constant 0 : index
    %451 = vector.load %arg11[%450, %c0_130, %c0_131] : memref<8x8x128xf32, #tpu.memory_space<vmem>>, vector<1x8x128xf32>
    %452 = vector.shape_cast %451 : vector<1x8x128xf32> to vector<8x128xf32>
    %c0_132 = arith.constant 0 : index
    %c0_133 = arith.constant 0 : index
    %453 = vector.load %arg6[%c0_132, %c0_133] : memref<32x128xbf16, #tpu.memory_space<vmem>>, vector<32x128xbf16>
    %454 = arith.truncf %415 : vector<8x32xf32> to vector<8x32xbf16>
    %cst_134 = arith.constant dense<0.000000e+00> : vector<8x128xf32>
    %455 = tpu.matmul %454, %453, %cst_134 {dimension_numbers = #tpu.dot_dimension_numbers<[1], [0], [0], [1], [0, 0, 1, 1], [], []>} : vector<8x32xbf16>, vector<32x128xbf16>, vector<8x128xf32> -> vector<8x128xf32>
    %456 = vector.extract_strided_slice %452 {offsets = [0, 0], sizes = [8, 32], strides = [1, 1]} : vector<8x128xf32> to vector<8x32xf32>
    %457 = vector.extract_strided_slice %455 {offsets = [0, 0], sizes = [8, 32], strides = [1, 1]} : vector<8x128xf32> to vector<8x32xf32>
    %458 = arith.addf %456, %457 : vector<8x32xf32>
    %459 = arith.negf %458 : vector<8x32xf32>
    %460 = math.exp %459 : vector<8x32xf32>
    %cst_135 = arith.constant 1.000000e+00 : f32
    %461 = vector.broadcast %cst_135 : f32 to vector<8x32xf32>
    %462 = arith.addf %461, %460 : vector<8x32xf32>
    %463 = arith.divf %461, %462 : vector<8x32xf32>
    %464 = vector.extract_strided_slice %452 {offsets = [0, 32], sizes = [8, 32], strides = [1, 1]} : vector<8x128xf32> to vector<8x32xf32>
    %465 = vector.extract_strided_slice %455 {offsets = [0, 32], sizes = [8, 32], strides = [1, 1]} : vector<8x128xf32> to vector<8x32xf32>
    %466 = arith.addf %464, %465 : vector<8x32xf32>
    %467 = arith.negf %466 : vector<8x32xf32>
    %468 = math.exp %467 : vector<8x32xf32>
    %cst_136 = arith.constant 1.000000e+00 : f32
    %469 = vector.broadcast %cst_136 : f32 to vector<8x32xf32>
    %470 = arith.addf %469, %468 : vector<8x32xf32>
    %471 = arith.divf %469, %470 : vector<8x32xf32>
    %472 = vector.extract_strided_slice %452 {offsets = [0, 64], sizes = [8, 32], strides = [1, 1]} : vector<8x128xf32> to vector<8x32xf32>
    %473 = vector.extract_strided_slice %455 {offsets = [0, 64], sizes = [8, 32], strides = [1, 1]} : vector<8x128xf32> to vector<8x32xf32>
    %474 = arith.addf %473, %19 : vector<8x32xf32>
    %475 = arith.mulf %463, %474 : vector<8x32xf32>
    %476 = arith.addf %472, %475 : vector<8x32xf32>
    %477 = math.tanh %476 : vector<8x32xf32>
    %cst_137 = arith.constant 1.000000e+00 : f32
    %478 = vector.broadcast %cst_137 : f32 to vector<8x32xf32>
    %479 = arith.subf %478, %471 : vector<8x32xf32>
    %480 = arith.mulf %479, %477 : vector<8x32xf32>
    %481 = arith.mulf %471, %415 : vector<8x32xf32>
    %482 = arith.addf %480, %481 : vector<8x32xf32>
    %483 = arith.index_cast %c5_i32 : i32 to index
    %c0_138 = arith.constant 0 : index
    %c0_139 = arith.constant 0 : index
    %484 = vector.load %arg2[%483, %c0_138, %c0_139] : memref<8x8x32xf32, #tpu.memory_space<vmem>>, vector<1x8x32xf32>
    %485 = vector.shape_cast %484 : vector<1x8x32xf32> to vector<8x32xf32>
    %486 = arith.index_cast %416 : i32 to index
    %c0_140 = arith.constant 0 : index
    %c0_141 = arith.constant 0 : index
    %487 = vector.load %arg2[%486, %c0_140, %c0_141] : memref<8x8x32xf32, #tpu.memory_space<vmem>>, vector<1x8x32xf32>
    %488 = vector.shape_cast %487 : vector<1x8x32xf32> to vector<8x32xf32>
    %489 = arith.subf %449, %412 : vector<8x32xf32>
    %490 = arith.mulf %485, %489 : vector<8x32xf32>
    %491 = arith.addf %412, %490 : vector<8x32xf32>
    %492 = arith.subf %482, %415 : vector<8x32xf32>
    %493 = arith.mulf %488, %492 : vector<8x32xf32>
    %494 = arith.addf %415, %493 : vector<8x32xf32>
    %c6_i32 = arith.constant 6 : i32
    %c7_i32_142 = arith.constant 7 : i32
    %495 = arith.subi %c7_i32_142, %c6_i32 : i32
    %496 = arith.index_cast %c6_i32 : i32 to index
    %c0_143 = arith.constant 0 : index
    %c0_144 = arith.constant 0 : index
    %497 = vector.load %arg10[%496, %c0_143, %c0_144] : memref<8x8x128xf32, #tpu.memory_space<vmem>>, vector<1x8x128xf32>
    %498 = vector.shape_cast %497 : vector<1x8x128xf32> to vector<8x128xf32>
    %c0_145 = arith.constant 0 : index
    %c0_146 = arith.constant 0 : index
    %499 = vector.load %arg5[%c0_145, %c0_146] : memref<32x128xbf16, #tpu.memory_space<vmem>>, vector<32x128xbf16>
    %500 = arith.truncf %491 : vector<8x32xf32> to vector<8x32xbf16>
    %cst_147 = arith.constant dense<0.000000e+00> : vector<8x128xf32>
    %501 = tpu.matmul %500, %499, %cst_147 {dimension_numbers = #tpu.dot_dimension_numbers<[1], [0], [0], [1], [0, 0, 1, 1], [], []>} : vector<8x32xbf16>, vector<32x128xbf16>, vector<8x128xf32> -> vector<8x128xf32>
    %502 = vector.extract_strided_slice %498 {offsets = [0, 0], sizes = [8, 32], strides = [1, 1]} : vector<8x128xf32> to vector<8x32xf32>
    %503 = vector.extract_strided_slice %501 {offsets = [0, 0], sizes = [8, 32], strides = [1, 1]} : vector<8x128xf32> to vector<8x32xf32>
    %504 = arith.addf %502, %503 : vector<8x32xf32>
    %505 = arith.negf %504 : vector<8x32xf32>
    %506 = math.exp %505 : vector<8x32xf32>
    %cst_148 = arith.constant 1.000000e+00 : f32
    %507 = vector.broadcast %cst_148 : f32 to vector<8x32xf32>
    %508 = arith.addf %507, %506 : vector<8x32xf32>
    %509 = arith.divf %507, %508 : vector<8x32xf32>
    %510 = vector.extract_strided_slice %498 {offsets = [0, 32], sizes = [8, 32], strides = [1, 1]} : vector<8x128xf32> to vector<8x32xf32>
    %511 = vector.extract_strided_slice %501 {offsets = [0, 32], sizes = [8, 32], strides = [1, 1]} : vector<8x128xf32> to vector<8x32xf32>
    %512 = arith.addf %510, %511 : vector<8x32xf32>
    %513 = arith.negf %512 : vector<8x32xf32>
    %514 = math.exp %513 : vector<8x32xf32>
    %cst_149 = arith.constant 1.000000e+00 : f32
    %515 = vector.broadcast %cst_149 : f32 to vector<8x32xf32>
    %516 = arith.addf %515, %514 : vector<8x32xf32>
    %517 = arith.divf %515, %516 : vector<8x32xf32>
    %518 = vector.extract_strided_slice %498 {offsets = [0, 64], sizes = [8, 32], strides = [1, 1]} : vector<8x128xf32> to vector<8x32xf32>
    %519 = vector.extract_strided_slice %501 {offsets = [0, 64], sizes = [8, 32], strides = [1, 1]} : vector<8x128xf32> to vector<8x32xf32>
    %520 = arith.addf %519, %16 : vector<8x32xf32>
    %521 = arith.mulf %509, %520 : vector<8x32xf32>
    %522 = arith.addf %518, %521 : vector<8x32xf32>
    %523 = math.tanh %522 : vector<8x32xf32>
    %cst_150 = arith.constant 1.000000e+00 : f32
    %524 = vector.broadcast %cst_150 : f32 to vector<8x32xf32>
    %525 = arith.subf %524, %517 : vector<8x32xf32>
    %526 = arith.mulf %525, %523 : vector<8x32xf32>
    %527 = arith.mulf %517, %491 : vector<8x32xf32>
    %528 = arith.addf %526, %527 : vector<8x32xf32>
    %529 = arith.index_cast %495 : i32 to index
    %c0_151 = arith.constant 0 : index
    %c0_152 = arith.constant 0 : index
    %530 = vector.load %arg11[%529, %c0_151, %c0_152] : memref<8x8x128xf32, #tpu.memory_space<vmem>>, vector<1x8x128xf32>
    %531 = vector.shape_cast %530 : vector<1x8x128xf32> to vector<8x128xf32>
    %c0_153 = arith.constant 0 : index
    %c0_154 = arith.constant 0 : index
    %532 = vector.load %arg6[%c0_153, %c0_154] : memref<32x128xbf16, #tpu.memory_space<vmem>>, vector<32x128xbf16>
    %533 = arith.truncf %494 : vector<8x32xf32> to vector<8x32xbf16>
    %cst_155 = arith.constant dense<0.000000e+00> : vector<8x128xf32>
    %534 = tpu.matmul %533, %532, %cst_155 {dimension_numbers = #tpu.dot_dimension_numbers<[1], [0], [0], [1], [0, 0, 1, 1], [], []>} : vector<8x32xbf16>, vector<32x128xbf16>, vector<8x128xf32> -> vector<8x128xf32>
    %535 = vector.extract_strided_slice %531 {offsets = [0, 0], sizes = [8, 32], strides = [1, 1]} : vector<8x128xf32> to vector<8x32xf32>
    %536 = vector.extract_strided_slice %534 {offsets = [0, 0], sizes = [8, 32], strides = [1, 1]} : vector<8x128xf32> to vector<8x32xf32>
    %537 = arith.addf %535, %536 : vector<8x32xf32>
    %538 = arith.negf %537 : vector<8x32xf32>
    %539 = math.exp %538 : vector<8x32xf32>
    %cst_156 = arith.constant 1.000000e+00 : f32
    %540 = vector.broadcast %cst_156 : f32 to vector<8x32xf32>
    %541 = arith.addf %540, %539 : vector<8x32xf32>
    %542 = arith.divf %540, %541 : vector<8x32xf32>
    %543 = vector.extract_strided_slice %531 {offsets = [0, 32], sizes = [8, 32], strides = [1, 1]} : vector<8x128xf32> to vector<8x32xf32>
    %544 = vector.extract_strided_slice %534 {offsets = [0, 32], sizes = [8, 32], strides = [1, 1]} : vector<8x128xf32> to vector<8x32xf32>
    %545 = arith.addf %543, %544 : vector<8x32xf32>
    %546 = arith.negf %545 : vector<8x32xf32>
    %547 = math.exp %546 : vector<8x32xf32>
    %cst_157 = arith.constant 1.000000e+00 : f32
    %548 = vector.broadcast %cst_157 : f32 to vector<8x32xf32>
    %549 = arith.addf %548, %547 : vector<8x32xf32>
    %550 = arith.divf %548, %549 : vector<8x32xf32>
    %551 = vector.extract_strided_slice %531 {offsets = [0, 64], sizes = [8, 32], strides = [1, 1]} : vector<8x128xf32> to vector<8x32xf32>
    %552 = vector.extract_strided_slice %534 {offsets = [0, 64], sizes = [8, 32], strides = [1, 1]} : vector<8x128xf32> to vector<8x32xf32>
    %553 = arith.addf %552, %19 : vector<8x32xf32>
    %554 = arith.mulf %542, %553 : vector<8x32xf32>
    %555 = arith.addf %551, %554 : vector<8x32xf32>
    %556 = math.tanh %555 : vector<8x32xf32>
    %cst_158 = arith.constant 1.000000e+00 : f32
    %557 = vector.broadcast %cst_158 : f32 to vector<8x32xf32>
    %558 = arith.subf %557, %550 : vector<8x32xf32>
    %559 = arith.mulf %558, %556 : vector<8x32xf32>
    %560 = arith.mulf %550, %494 : vector<8x32xf32>
    %561 = arith.addf %559, %560 : vector<8x32xf32>
    %562 = arith.index_cast %c6_i32 : i32 to index
    %c0_159 = arith.constant 0 : index
    %c0_160 = arith.constant 0 : index
    %563 = vector.load %arg2[%562, %c0_159, %c0_160] : memref<8x8x32xf32, #tpu.memory_space<vmem>>, vector<1x8x32xf32>
    %564 = vector.shape_cast %563 : vector<1x8x32xf32> to vector<8x32xf32>
    %565 = arith.index_cast %495 : i32 to index
    %c0_161 = arith.constant 0 : index
    %c0_162 = arith.constant 0 : index
    %566 = vector.load %arg2[%565, %c0_161, %c0_162] : memref<8x8x32xf32, #tpu.memory_space<vmem>>, vector<1x8x32xf32>
    %567 = vector.shape_cast %566 : vector<1x8x32xf32> to vector<8x32xf32>
    %568 = arith.subf %528, %491 : vector<8x32xf32>
    %569 = arith.mulf %564, %568 : vector<8x32xf32>
    %570 = arith.addf %491, %569 : vector<8x32xf32>
    %571 = arith.subf %561, %494 : vector<8x32xf32>
    %572 = arith.mulf %567, %571 : vector<8x32xf32>
    %573 = arith.addf %494, %572 : vector<8x32xf32>
    %c7_i32_163 = arith.constant 7 : i32
    %c7_i32_164 = arith.constant 7 : i32
    %574 = arith.subi %c7_i32_164, %c7_i32_163 : i32
    %575 = arith.index_cast %c7_i32_163 : i32 to index
    %c0_165 = arith.constant 0 : index
    %c0_166 = arith.constant 0 : index
    %576 = vector.load %arg10[%575, %c0_165, %c0_166] : memref<8x8x128xf32, #tpu.memory_space<vmem>>, vector<1x8x128xf32>
    %577 = vector.shape_cast %576 : vector<1x8x128xf32> to vector<8x128xf32>
    %c0_167 = arith.constant 0 : index
    %c0_168 = arith.constant 0 : index
    %578 = vector.load %arg5[%c0_167, %c0_168] : memref<32x128xbf16, #tpu.memory_space<vmem>>, vector<32x128xbf16>
    %579 = arith.truncf %570 : vector<8x32xf32> to vector<8x32xbf16>
    %cst_169 = arith.constant dense<0.000000e+00> : vector<8x128xf32>
    %580 = tpu.matmul %579, %578, %cst_169 {dimension_numbers = #tpu.dot_dimension_numbers<[1], [0], [0], [1], [0, 0, 1, 1], [], []>} : vector<8x32xbf16>, vector<32x128xbf16>, vector<8x128xf32> -> vector<8x128xf32>
    %581 = vector.extract_strided_slice %577 {offsets = [0, 0], sizes = [8, 32], strides = [1, 1]} : vector<8x128xf32> to vector<8x32xf32>
    %582 = vector.extract_strided_slice %580 {offsets = [0, 0], sizes = [8, 32], strides = [1, 1]} : vector<8x128xf32> to vector<8x32xf32>
    %583 = arith.addf %581, %582 : vector<8x32xf32>
    %584 = arith.negf %583 : vector<8x32xf32>
    %585 = math.exp %584 : vector<8x32xf32>
    %cst_170 = arith.constant 1.000000e+00 : f32
    %586 = vector.broadcast %cst_170 : f32 to vector<8x32xf32>
    %587 = arith.addf %586, %585 : vector<8x32xf32>
    %588 = arith.divf %586, %587 : vector<8x32xf32>
    %589 = vector.extract_strided_slice %577 {offsets = [0, 32], sizes = [8, 32], strides = [1, 1]} : vector<8x128xf32> to vector<8x32xf32>
    %590 = vector.extract_strided_slice %580 {offsets = [0, 32], sizes = [8, 32], strides = [1, 1]} : vector<8x128xf32> to vector<8x32xf32>
    %591 = arith.addf %589, %590 : vector<8x32xf32>
    %592 = arith.negf %591 : vector<8x32xf32>
    %593 = math.exp %592 : vector<8x32xf32>
    %cst_171 = arith.constant 1.000000e+00 : f32
    %594 = vector.broadcast %cst_171 : f32 to vector<8x32xf32>
    %595 = arith.addf %594, %593 : vector<8x32xf32>
    %596 = arith.divf %594, %595 : vector<8x32xf32>
    %597 = vector.extract_strided_slice %577 {offsets = [0, 64], sizes = [8, 32], strides = [1, 1]} : vector<8x128xf32> to vector<8x32xf32>
    %598 = vector.extract_strided_slice %580 {offsets = [0, 64], sizes = [8, 32], strides = [1, 1]} : vector<8x128xf32> to vector<8x32xf32>
    %599 = arith.addf %598, %16 : vector<8x32xf32>
    %600 = arith.mulf %588, %599 : vector<8x32xf32>
    %601 = arith.addf %597, %600 : vector<8x32xf32>
    %602 = math.tanh %601 : vector<8x32xf32>
    %cst_172 = arith.constant 1.000000e+00 : f32
    %603 = vector.broadcast %cst_172 : f32 to vector<8x32xf32>
    %604 = arith.subf %603, %596 : vector<8x32xf32>
    %605 = arith.mulf %604, %602 : vector<8x32xf32>
    %606 = arith.mulf %596, %570 : vector<8x32xf32>
    %607 = arith.addf %605, %606 : vector<8x32xf32>
    %608 = arith.index_cast %574 : i32 to index
    %c0_173 = arith.constant 0 : index
    %c0_174 = arith.constant 0 : index
    %609 = vector.load %arg11[%608, %c0_173, %c0_174] : memref<8x8x128xf32, #tpu.memory_space<vmem>>, vector<1x8x128xf32>
    %610 = vector.shape_cast %609 : vector<1x8x128xf32> to vector<8x128xf32>
    %c0_175 = arith.constant 0 : index
    %c0_176 = arith.constant 0 : index
    %611 = vector.load %arg6[%c0_175, %c0_176] : memref<32x128xbf16, #tpu.memory_space<vmem>>, vector<32x128xbf16>
    %612 = arith.truncf %573 : vector<8x32xf32> to vector<8x32xbf16>
    %cst_177 = arith.constant dense<0.000000e+00> : vector<8x128xf32>
    %613 = tpu.matmul %612, %611, %cst_177 {dimension_numbers = #tpu.dot_dimension_numbers<[1], [0], [0], [1], [0, 0, 1, 1], [], []>} : vector<8x32xbf16>, vector<32x128xbf16>, vector<8x128xf32> -> vector<8x128xf32>
    %614 = vector.extract_strided_slice %610 {offsets = [0, 0], sizes = [8, 32], strides = [1, 1]} : vector<8x128xf32> to vector<8x32xf32>
    %615 = vector.extract_strided_slice %613 {offsets = [0, 0], sizes = [8, 32], strides = [1, 1]} : vector<8x128xf32> to vector<8x32xf32>
    %616 = arith.addf %614, %615 : vector<8x32xf32>
    %617 = arith.negf %616 : vector<8x32xf32>
    %618 = math.exp %617 : vector<8x32xf32>
    %cst_178 = arith.constant 1.000000e+00 : f32
    %619 = vector.broadcast %cst_178 : f32 to vector<8x32xf32>
    %620 = arith.addf %619, %618 : vector<8x32xf32>
    %621 = arith.divf %619, %620 : vector<8x32xf32>
    %622 = vector.extract_strided_slice %610 {offsets = [0, 32], sizes = [8, 32], strides = [1, 1]} : vector<8x128xf32> to vector<8x32xf32>
    %623 = vector.extract_strided_slice %613 {offsets = [0, 32], sizes = [8, 32], strides = [1, 1]} : vector<8x128xf32> to vector<8x32xf32>
    %624 = arith.addf %622, %623 : vector<8x32xf32>
    %625 = arith.negf %624 : vector<8x32xf32>
    %626 = math.exp %625 : vector<8x32xf32>
    %cst_179 = arith.constant 1.000000e+00 : f32
    %627 = vector.broadcast %cst_179 : f32 to vector<8x32xf32>
    %628 = arith.addf %627, %626 : vector<8x32xf32>
    %629 = arith.divf %627, %628 : vector<8x32xf32>
    %630 = vector.extract_strided_slice %610 {offsets = [0, 64], sizes = [8, 32], strides = [1, 1]} : vector<8x128xf32> to vector<8x32xf32>
    %631 = vector.extract_strided_slice %613 {offsets = [0, 64], sizes = [8, 32], strides = [1, 1]} : vector<8x128xf32> to vector<8x32xf32>
    %632 = arith.addf %631, %19 : vector<8x32xf32>
    %633 = arith.mulf %621, %632 : vector<8x32xf32>
    %634 = arith.addf %630, %633 : vector<8x32xf32>
    %635 = math.tanh %634 : vector<8x32xf32>
    %cst_180 = arith.constant 1.000000e+00 : f32
    %636 = vector.broadcast %cst_180 : f32 to vector<8x32xf32>
    %637 = arith.subf %636, %629 : vector<8x32xf32>
    %638 = arith.mulf %637, %635 : vector<8x32xf32>
    %639 = arith.mulf %629, %573 : vector<8x32xf32>
    %640 = arith.addf %638, %639 : vector<8x32xf32>
    %641 = arith.index_cast %c7_i32_163 : i32 to index
    %c0_181 = arith.constant 0 : index
    %c0_182 = arith.constant 0 : index
    %642 = vector.load %arg2[%641, %c0_181, %c0_182] : memref<8x8x32xf32, #tpu.memory_space<vmem>>, vector<1x8x32xf32>
    %643 = vector.shape_cast %642 : vector<1x8x32xf32> to vector<8x32xf32>
    %644 = arith.index_cast %574 : i32 to index
    %c0_183 = arith.constant 0 : index
    %c0_184 = arith.constant 0 : index
    %645 = vector.load %arg2[%644, %c0_183, %c0_184] : memref<8x8x32xf32, #tpu.memory_space<vmem>>, vector<1x8x32xf32>
    %646 = vector.shape_cast %645 : vector<1x8x32xf32> to vector<8x32xf32>
    %647 = arith.subf %607, %570 : vector<8x32xf32>
    %648 = arith.mulf %643, %647 : vector<8x32xf32>
    %649 = arith.addf %570, %648 : vector<8x32xf32>
    %650 = arith.subf %640, %573 : vector<8x32xf32>
    %651 = arith.mulf %646, %650 : vector<8x32xf32>
    %652 = arith.addf %573, %651 : vector<8x32xf32>
    %c8_i32 = arith.constant 8 : i32
    %653 = arith.addf %649, %652 : vector<8x32xf32>
    %c0_185 = arith.constant 0 : index
    %c0_186 = arith.constant 0 : index
    %c0_187 = arith.constant 0 : index
    %654 = vector.load %arg9[%c0_185, %c0_186, %c0_187] : memref<1x8x32xf32, #tpu.memory_space<vmem>>, vector<1x8x32xf32>
    %655 = vector.shape_cast %654 : vector<1x8x32xf32> to vector<8x32xf32>
    %656 = vector.shape_cast %653 : vector<8x32xf32> to vector<1x8x32xf32>
    tpu.vector_store %arg9[%c0_185, %c0_186, %c0_187], %656 {strides = array<i32>} : memref<1x8x32xf32, #tpu.memory_space<vmem>>, vector<1x8x32xf32>,
    return
  }
  func.func @transform_0(%arg0: i32) -> (i32, i32, i32) {
    %c0_i32 = arith.constant 0 : i32
    %c0_i32_0 = arith.constant 0 : i32
    %c0_i32_1 = arith.constant 0 : i32
    return %c0_i32, %arg0, %c0_i32_0 : i32, i32, i32
  }
  func.func @transform_1(%arg0: i32) -> (i32, i32, i32) {
    %c0_i32 = arith.constant 0 : i32
    %c0_i32_0 = arith.constant 0 : i32
    %c0_i32_1 = arith.constant 0 : i32
    return %c0_i32, %arg0, %c0_i32_0 : i32, i32, i32
  }
  func.func @transform_2(%arg0: i32) -> (i32, i32) {
    %c0_i32 = arith.constant 0 : i32
    %c0_i32_0 = arith.constant 0 : i32
    %c0_i32_1 = arith.constant 0 : i32
    return %c0_i32, %c0_i32_0 : i32, i32
  }
  func.func @transform_3(%arg0: i32) -> (i32, i32) {
    %c0_i32 = arith.constant 0 : i32
    %c0_i32_0 = arith.constant 0 : i32
    %c0_i32_1 = arith.constant 0 : i32
    return %c0_i32, %c0_i32_0 : i32, i32
  }
  func.func @transform_4(%arg0: i32) -> (i32, i32) {
    %c0_i32 = arith.constant 0 : i32
    %c0_i32_0 = arith.constant 0 : i32
    %c0_i32_1 = arith.constant 0 : i32
    return %c0_i32, %c0_i32_0 : i32, i32
  }
  func.func @transform_5(%arg0: i32) -> (i32, i32) {
    %c0_i32 = arith.constant 0 : i32
    %c0_i32_0 = arith.constant 0 : i32
    %c0_i32_1 = arith.constant 0 : i32
    return %c0_i32, %c0_i32_0 : i32, i32
  }
  func.func @transform_6(%arg0: i32) -> (i32, i32) {
    %c0_i32 = arith.constant 0 : i32
    %c0_i32_0 = arith.constant 0 : i32
    %c0_i32_1 = arith.constant 0 : i32
    return %c0_i32, %c0_i32_0 : i32, i32
  }
  func.func @transform_7(%arg0: i32) -> (i32, i32) {
    %c0_i32 = arith.constant 0 : i32
    %c0_i32_0 = arith.constant 0 : i32
    %c0_i32_1 = arith.constant 0 : i32
    return %c0_i32, %c0_i32_0 : i32, i32
  }
  func.func @transform_8(%arg0: i32) -> (i32, i32, i32) {
    %c0_i32 = arith.constant 0 : i32
    %c0_i32_0 = arith.constant 0 : i32
    %c0_i32_1 = arith.constant 0 : i32
    return %c0_i32, %arg0, %c0_i32_0 : i32, i32, i32
  }
}

</mosaic_0001>

<llo_original>
// kernel: tpu_custom_call.1
$region0: #{tpu_custom_call.1}
  #allocation0 [shape = 'u32[]', space=smem, size = 0x4, offset = 0x4, fixed_abs, tag = 'smem constant byte address 0x4 - core index']
  #allocation1 [shape = 'u32[144,128]{1,0:T(1,128)}', space=vmem, size = 0x12000, scoped, tag = 'internal scratch']
  #allocation2 [shape = 'f32[8,8,128]{2,1,0:T(8,128)}', space=vmem, size = 0x8000, scoped, tag = 'scratch operand']
  #allocation3 [shape = 'f32[8,8,128]{2,1,0:T(8,128)}', space=vmem, size = 0x8000, scoped, tag = 'scratch operand']
  %s0 = inlined_call_operand.hbm [shape: f32[8,16,32], index: 0, kind: input, shape index: {}]
  %s1 = inlined_call_operand.hbm [shape: f32[8,16,32], index: 1, kind: input, shape index: {}]
  %s2 = inlined_call_operand.hbm [shape: bf16[32,256], index: 2, kind: input, shape index: {}]
  %s3 = inlined_call_operand.vmem [shape: f32[1,256], index: 3, kind: input, shape index: {}]
  %s4 = inlined_call_operand.hbm [shape: bf16[32,128], index: 4, kind: input, shape index: {}]
  %s5 = inlined_call_operand.vmem [shape: bf16[32,128], index: 5, kind: input, shape index: {}]
  %s6 = inlined_call_operand.vmem [shape: f32[1,32], index: 6, kind: input, shape index: {}]
  %s7 = inlined_call_operand.vmem [shape: f32[1,32], index: 7, kind: input, shape index: {}]
  %s8 = inlined_call_operand.hbm [shape: f32[1,16,32], index: 8, kind: output, shape index: {}]
  %s9 = sld [smem:[#allocation0]]
  $region81: #{tpu_custom_call.1} parent=0
    _
  %s11 = ssub.s32 1, %s9
  %s12 = scalar_select 0, %s11, %s9
  $region1: #{tpu_custom_call.1} parent=0
    #allocation4 [shape = 'u8[65536]{0}', space=vmem, size = 0x10000, scoped, tag = 'input window, operand 0']
    #allocation5 [shape = 's32[2]{0}', space=sflag, size = 0x8, scoped, tag = 'scoped memory for tpu_custom_call.1']
    #allocation6 [shape = 's32[2]{0}', space=sflag, size = 0x8, scoped, tag = 'scoped memory for tpu_custom_call.1']
    #allocation7 [shape = 'u8[65536]{0}', space=vmem, size = 0x10000, scoped, tag = 'input window, operand 1']
    #allocation8 [shape = 's32[2]{0}', space=sflag, size = 0x8, scoped, tag = 'scoped memory for tpu_custom_call.1']
    #allocation9 [shape = 'u8[16384]{0}', space=vmem, size = 0x4000, scoped, tag = 'input window, operand 2, single buffered']
    #allocation10 [shape = 'u8[8192]{0}', space=vmem, size = 0x2000, scoped, tag = 'input window, operand 4, single buffered']
    #allocation11 [shape = 's32[1]{0}', space=sflag, size = 0x4, scoped, tag = 'scoped memory for tpu_custom_call.1']
    #allocation12 [shape = 'u8[8192]{0}', space=vmem, size = 0x2000, scoped, tag = 'output window, operand 0']
    %13 = vsyncpa [#allocation5], 0
    %s14 = scalar_lea.sflag [#allocation5], 1
    %15 = vsyncpa %s14, 0
    %16 = vsyncpa [#allocation8], 0
    %s17 = scalar_lea.sflag [#allocation8], 1
    %18 = vsyncpa %s17, 0
    %19 = vsyncpa [#allocation11], 0
    %20 = vsyncpa [#allocation6], 0
    %s21 = scalar_lea.sflag [#allocation6], 1
    %22 = vsyncpa %s21, 0
    loop: start=0, step=1, limit=4
    $region2: #{tpu_custom_call.1} parent=1 // loop_pre_header
      _
    $region3: #{tpu_custom_call.1} parent=1 // loop_header
      %s24 = sphi 0, %s28
      %p25 = scmp.ge.s32.totalorder %s24, 4
      %s34 = sphi 0, %s36
      %s37 = sphi 0, %s34
      %s38 = sphi 0, %s37
      %s54 = sphi 0, %s38
      %s60 = sphi 0, %s62
      %s63 = sphi 0, %s60
      %s64 = sphi 0, %s63
      %s80 = sphi 0, %s64
      %s84 = sphi 0, %s84
      %s86 = sphi 0, %s84
      %s87 = sphi 0, %s86
      %s101 = sphi 0, %s87
      %s105 = sphi 0, %s105
      %s107 = sphi 0, %s105
      %s108 = sphi 0, %s107
      %s122 = sphi 0, %s108
      %s126 = sphi 0, %s126
      %s128 = sphi 0, %s126
      %s129 = sphi 0, %s128
      %s143 = sphi 0, %s129
      %s147 = sphi 0, %s147
      %s149 = sphi 0, %s147
      %s150 = sphi 0, %s149
      %s164 = sphi 0, %s150
      %s168 = sphi 0, %s168
      %s170 = sphi 0, %s168
      %s171 = sphi 0, %s170
      %s185 = sphi 0, %s171
      %s189 = sphi 0, %s189
      %s191 = sphi 0, %s189
      %s192 = sphi 0, %s191
      %s206 = sphi 0, %s192
      %s212 = sphi 0, %s214
      %s215 = sphi 0, %s212
      %s216 = sphi 0, %s215
      %s232 = sphi 0, %s216
    $region4: #{tpu_custom_call.1} parent=1 // loop_header_branch
      %27 = sbr.rel (%p25) target = $region8
    $region5: #{tpu_custom_call.1} parent=1 // loop_body
      %s29 = ssub.s32 %s24, 1
      %s30 = ssub.s32 %s24, 2
      %s31 = sadd.s32 %s24, 1
      %s32 = ssub.s32 %s24, %s31
      %p33 = scmp.eq.s32.totalorder %s32, 0
      %s35 = sadd.s32 %s34, 1
      %s36 = scalar_select %p33, %s34, %s35
      %p39 = pneg %p33
      %p40 = scmp.eq.s32.totalorder %s24, 1
      %p41 = por %p39, %p40
      %p42 = scmp.ne.s32.totalorder %s34, %s37
      %p43 = scmp.eq.s32.totalorder %s24, 0
      %p44 = por %p42, %p43
      %p45 = scmp.ne.s32.totalorder %s34, %s37
      %p46 = scmp.eq.s32.totalorder %s29, 1
      %p47 = por %p45, %p46
      %p48 = scmp.ne.s32.totalorder %s37, %s38
      %p49 = scmp.eq.s32.totalorder %s29, 0
      %p50 = por %p48, %p49
      %p51 = scmp.ne.s32.totalorder %s37, %s38
      %p52 = scmp.eq.s32.totalorder %s30, 1
      %p53 = por %p51, %p52
      %p55 = scmp.ne.s32.totalorder %s38, %s54
      %p56 = scmp.eq.s32.totalorder %s30, 0
      %p57 = por %p55, %p56
      %s58 = ssub.s32 %s24, %s31
      %p59 = scmp.eq.s32.totalorder %s58, 0
      %s61 = sadd.s32 %s60, 1
      %s62 = scalar_select %p59, %s60, %s61
      %p65 = pneg %p59
      %p66 = scmp.eq.s32.totalorder %s24, 1
      %p67 = por %p65, %p66
      %p68 = scmp.ne.s32.totalorder %s60, %s63
      %p69 = scmp.eq.s32.totalorder %s24, 0
      %p70 = por %p68, %p69
      %p71 = scmp.ne.s32.totalorder %s60, %s63
      %p72 = scmp.eq.s32.totalorder %s29, 1
      %p73 = por %p71, %p72
      %p74 = scmp.ne.s32.totalorder %s63, %s64
      %p75 = scmp.eq.s32.totalorder %s29, 0
      %p76 = por %p74, %p75
      %p77 = scmp.ne.s32.totalorder %s63, %s64
      %p78 = scmp.eq.s32.totalorder %s30, 1
      %p79 = por %p77, %p78
      %p81 = scmp.ne.s32.totalorder %s64, %s80
      %p82 = scmp.eq.s32.totalorder %s30, 0
      %p83 = por %p81, %p82
      %s85 = sadd.s32 %s84, 1
      %p88 = scmp.eq.s32.totalorder %s24, 1
      %p89 = scmp.ne.s32.totalorder %s84, %s86
      %p90 = scmp.eq.s32.totalorder %s24, 0
      %p91 = por %p89, %p90
      %p92 = scmp.ne.s32.totalorder %s84, %s86
      %p93 = scmp.eq.s32.totalorder %s29, 1
      %p94 = por %p92, %p93
      %p95 = scmp.ne.s32.totalorder %s86, %s87
      %p96 = scmp.eq.s32.totalorder %s29, 0
      %p97 = por %p95, %p96
      %p98 = scmp.ne.s32.totalorder %s86, %s87
      %p99 = scmp.eq.s32.totalorder %s30, 1
      %p100 = por %p98, %p99
      %p102 = scmp.ne.s32.totalorder %s87, %s101
      %p103 = scmp.eq.s32.totalorder %s30, 0
      %p104 = por %p102, %p103
      %s106 = sadd.s32 %s105, 1
      %p109 = scmp.eq.s32.totalorder %s24, 1
      %p110 = scmp.ne.s32.totalorder %s105, %s107
      %p111 = scmp.eq.s32.totalorder %s24, 0
      %p112 = por %p110, %p111
      %p113 = scmp.ne.s32.totalorder %s105, %s107
      %p114 = scmp.eq.s32.totalorder %s29, 1
      %p115 = por %p113, %p114
      %p116 = scmp.ne.s32.totalorder %s107, %s108
      %p117 = scmp.eq.s32.totalorder %s29, 0
      %p118 = por %p116, %p117
      %p119 = scmp.ne.s32.totalorder %s107, %s108
      %p120 = scmp.eq.s32.totalorder %s30, 1
      %p121 = por %p119, %p120
      %p123 = scmp.ne.s32.totalorder %s108, %s122
      %p124 = scmp.eq.s32.totalorder %s30, 0
      %p125 = por %p123, %p124
      %s127 = sadd.s32 %s126, 1
      %p130 = scmp.eq.s32.totalorder %s24, 1
      %p131 = scmp.ne.s32.totalorder %s126, %s128
      %p132 = scmp.eq.s32.totalorder %s24, 0
      %p133 = por %p131, %p132
      %p134 = scmp.ne.s32.totalorder %s126, %s128
      %p135 = scmp.eq.s32.totalorder %s29, 1
      %p136 = por %p134, %p135
      %p137 = scmp.ne.s32.totalorder %s128, %s129
      %p138 = scmp.eq.s32.totalorder %s29, 0
      %p139 = por %p137, %p138
      %p140 = scmp.ne.s32.totalorder %s128, %s129
      %p141 = scmp.eq.s32.totalorder %s30, 1
      %p142 = por %p140, %p141
      %p144 = scmp.ne.s32.totalorder %s129, %s143
      %p145 = scmp.eq.s32.totalorder %s30, 0
      %p146 = por %p144, %p145
      %s148 = sadd.s32 %s147, 1
      %p151 = scmp.eq.s32.totalorder %s24, 1
      %p152 = scmp.ne.s32.totalorder %s147, %s149
      %p153 = scmp.eq.s32.totalorder %s24, 0
      %p154 = por %p152, %p153
      %p155 = scmp.ne.s32.totalorder %s147, %s149
      %p156 = scmp.eq.s32.totalorder %s29, 1
      %p157 = por %p155, %p156
      %p158 = scmp.ne.s32.totalorder %s149, %s150
      %p159 = scmp.eq.s32.totalorder %s29, 0
      %p160 = por %p158, %p159
      %p161 = scmp.ne.s32.totalorder %s149, %s150
      %p162 = scmp.eq.s32.totalorder %s30, 1
      %p163 = por %p161, %p162
      %p165 = scmp.ne.s32.totalorder %s150, %s164
      %p166 = scmp.eq.s32.totalorder %s30, 0
      %p167 = por %p165, %p166
      %s169 = sadd.s32 %s168, 1
      %p172 = scmp.eq.s32.totalorder %s24, 1
      %p173 = scmp.ne.s32.totalorder %s168, %s170
      %p174 = scmp.eq.s32.totalorder %s24, 0
      %p175 = por %p173, %p174
      %p176 = scmp.ne.s32.totalorder %s168, %s170
      %p177 = scmp.eq.s32.totalorder %s29, 1
      %p178 = por %p176, %p177
      %p179 = scmp.ne.s32.totalorder %s170, %s171
      %p180 = scmp.eq.s32.totalorder %s29, 0
      %p181 = por %p179, %p180
      %p182 = scmp.ne.s32.totalorder %s170, %s171
      %p183 = scmp.eq.s32.totalorder %s30, 1
      %p184 = por %p182, %p183
      %p186 = scmp.ne.s32.totalorder %s171, %s185
      %p187 = scmp.eq.s32.totalorder %s30, 0
      %p188 = por %p186, %p187
      %s190 = sadd.s32 %s189, 1
      %p193 = scmp.eq.s32.totalorder %s24, 1
      %p194 = scmp.ne.s32.totalorder %s189, %s191
      %p195 = scmp.eq.s32.totalorder %s24, 0
      %p196 = por %p194, %p195
      %p197 = scmp.ne.s32.totalorder %s189, %s191
      %p198 = scmp.eq.s32.totalorder %s29, 1
      %p199 = por %p197, %p198
      %p200 = scmp.ne.s32.totalorder %s191, %s192
      %p201 = scmp.eq.s32.totalorder %s29, 0
      %p202 = por %p200, %p201
      %p203 = scmp.ne.s32.totalorder %s191, %s192
      %p204 = scmp.eq.s32.totalorder %s30, 1
      %p205 = por %p203, %p204
      %p207 = scmp.ne.s32.totalorder %s192, %s206
      %p208 = scmp.eq.s32.totalorder %s30, 0
      %p209 = por %p207, %p208
      %s210 = ssub.s32 %s24, %s31
      %p211 = scmp.eq.s32.totalorder %s210, 0
      %s213 = sadd.s32 %s212, 1
      %s214 = scalar_select %p211, %s212, %s213
      %p217 = pneg %p211
      %p218 = scmp.eq.s32.totalorder %s24, 1
      %p219 = por %p217, %p218
      %p220 = scmp.ne.s32.totalorder %s212, %s215
      %p221 = scmp.eq.s32.totalorder %s24, 0
      %p222 = por %p220, %p221
      %p223 = scmp.ne.s32.totalorder %s212, %s215
      %p224 = scmp.eq.s32.totalorder %s29, 1
      %p225 = por %p223, %p224
      %p226 = scmp.ne.s32.totalorder %s215, %s216
      %p227 = scmp.eq.s32.totalorder %s29, 0
      %p228 = por %p226, %p227
      %p229 = scmp.ne.s32.totalorder %s215, %s216
      %p230 = scmp.eq.s32.totalorder %s30, 1
      %p231 = por %p229, %p230
      %p233 = scmp.ne.s32.totalorder %s216, %s232
      %p234 = scmp.eq.s32.totalorder %s30, 0
      %p235 = por %p233, %p234
      %p236 = scmp.le.s32.totalorder 1, %s24
      %p237 = scmp.lt.s32.totalorder %s24, 3
      %p238 = pnand %p236, %p237
      %p239 = pneg %p238
      // Predicated region
      $region9: #{tpu_custom_call.1} parent=5 // pred_check
        _
      $region10: #{tpu_custom_call.1} parent=5 // pred_check_branch
        %241 = sbr.rel (%p238) target = $region12
      $region11: #{tpu_custom_call.1} parent=5 // pred_region
        %s242 = ssub.s32 %s24, 1
        // Predicated region
        $region13: #{tpu_custom_call.1} parent=11 // pred_check
          %p243 = pneg %p97
        $region14: #{tpu_custom_call.1} parent=11 // pred_check_branch
          %245 = sbr.rel (%p243) target = $region16
        $region15: #{tpu_custom_call.1} parent=11 // pred_region
          %s247 = ssub.s32 512, 512
          %248 = vsyncadd [#allocation8], %s247
          %s249 = sshll.u32 [#allocation9], 4
          %s250 = int_to_ptr.vmem [resolvable:$true] %s249
          %255 = dma.hbm_to_vmem [thread:$0]  %s2, 512, %s250, [#allocation8], 128, 128, 8
        $region16: #{tpu_custom_call.1} parent=11 // pred_fallthru
          _
        // Predicated region
        $region17: #{tpu_custom_call.1} parent=11 // pred_check
          %p256 = pneg %p118
        $region18: #{tpu_custom_call.1} parent=11 // pred_check_branch
          %258 = sbr.rel (%p256) target = $region20
        $region19: #{tpu_custom_call.1} parent=11 // pred_region
          _
        $region20: #{tpu_custom_call.1} parent=11 // pred_fallthru
          _
        // Predicated region
        $region21: #{tpu_custom_call.1} parent=11 // pred_check
          %p259 = pneg %p139
        $region22: #{tpu_custom_call.1} parent=11 // pred_check_branch
          %261 = sbr.rel (%p259) target = $region24
        $region23: #{tpu_custom_call.1} parent=11 // pred_region
          %s263 = ssub.s32 256, 256
          %264 = vsyncadd [#allocation11], %s263
          %s265 = sshll.u32 [#allocation10], 4
          %s266 = int_to_ptr.vmem [resolvable:$true] %s265
          %271 = dma.hbm_to_vmem [thread:$0]  %s4, 256, %s266, [#allocation11], 64, 64, 4
        $region24: #{tpu_custom_call.1} parent=11 // pred_fallthru
          _
        // Predicated region
        $region25: #{tpu_custom_call.1} parent=11 // pred_check
          %p272 = pneg %p160
        $region26: #{tpu_custom_call.1} parent=11 // pred_check_branch
          %274 = sbr.rel (%p272) target = $region28
        $region27: #{tpu_custom_call.1} parent=11 // pred_region
          _
        $region28: #{tpu_custom_call.1} parent=11 // pred_fallthru
          _
        // Predicated region
        $region29: #{tpu_custom_call.1} parent=11 // pred_check
          %p275 = pneg %p181
        $region30: #{tpu_custom_call.1} parent=11 // pred_check_branch
          %277 = sbr.rel (%p275) target = $region32
        $region31: #{tpu_custom_call.1} parent=11 // pred_region
          _
        $region32: #{tpu_custom_call.1} parent=11 // pred_fallthru
          _
        // Predicated region
        $region33: #{tpu_custom_call.1} parent=11 // pred_check
          %p278 = pneg %p202
        $region34: #{tpu_custom_call.1} parent=11 // pred_check_branch
          %280 = sbr.rel (%p278) target = $region36
        $region35: #{tpu_custom_call.1} parent=11 // pred_region
          _
        $region36: #{tpu_custom_call.1} parent=11 // pred_fallthru
          _
      $region12: #{tpu_custom_call.1} parent=5 // pred_fallthru
        _
      %p281 = scmp.lt.s32.totalorder %s24, 2
      // Predicated region
      $region37: #{tpu_custom_call.1} parent=5 // pred_check
        %p282 = pneg %p281
      $region38: #{tpu_custom_call.1} parent=5 // pred_check_branch
        %284 = sbr.rel (%p282) target = $region40
      $region39: #{tpu_custom_call.1} parent=5 // pred_region
        // Predicated region
        $region41: #{tpu_custom_call.1} parent=39 // pred_check
          %p285 = pneg %p44
        $region42: #{tpu_custom_call.1} parent=39 // pred_check_branch
          %287 = sbr.rel (%p285) target = $region44
        $region43: #{tpu_custom_call.1} parent=39 // pred_region
          %s288 = sand.u32 %s34, 1
          %s289 = scalar_lea.sflag [#allocation5], %s288
          %s290 = sand.u32 %s34, 1
          %s291 = smul.addr %s290, 64
          %s292 = scalar_lea.vmem [#allocation4], %s291
          %s294 = ssub.s32 1024, 1024
          %295 = vsyncadd %s289, %s294
          %s296 = smul.addr %s24, 128
          %s297 = scalar_lea.hbm %s0, %s296
          %s298 = sshll.u32 %s292, 4
          %s299 = int_to_ptr.vmem [resolvable:$true] %s298
          %304 = dma.hbm_to_vmem [thread:$0]  %s297, 1024, %s299, %s289, 256, 128, 8
        $region44: #{tpu_custom_call.1} parent=39 // pred_fallthru
          _
        // Predicated region
        $region45: #{tpu_custom_call.1} parent=39 // pred_check
          %p305 = pneg %p70
        $region46: #{tpu_custom_call.1} parent=39 // pred_check_branch
          %307 = sbr.rel (%p305) target = $region48
        $region47: #{tpu_custom_call.1} parent=39 // pred_region
          %s308 = sand.u32 %s24, 1
          %s309 = scalar_lea.sflag [#allocation8], %s308
          %s310 = sand.u32 %s60, 1
          %s311 = smul.addr %s310, 64
          %s312 = scalar_lea.vmem [#allocation7], %s311
          %s314 = ssub.s32 1024, 1024
          %315 = vsyncadd %s309, %s314
          %s316 = smul.addr %s24, 128
          %s317 = scalar_lea.hbm %s1, %s316
          %s318 = sshll.u32 %s312, 4
          %s319 = int_to_ptr.vmem [resolvable:$true] %s318
          %324 = dma.hbm_to_vmem [thread:$0]  %s317, 1024, %s319, %s309, 256, 128, 8
        $region48: #{tpu_custom_call.1} parent=39 // pred_fallthru
          _
      $region40: #{tpu_custom_call.1} parent=5 // pred_fallthru
        _
      %p325 = scmp.le.s32.totalorder 1, %s24
      %p326 = scmp.lt.s32.totalorder %s24, 3
      %p327 = pnand %p325, %p326
      %p328 = pneg %p327
      // Predicated region
      $region49: #{tpu_custom_call.1} parent=5 // pred_check
        _
      $region50: #{tpu_custom_call.1} parent=5 // pred_check_branch
        %330 = sbr.rel (%p327) target = $region52
      $region51: #{tpu_custom_call.1} parent=5 // pred_region
        %s331 = ssub.s32 %s24, 1
        %s332 = sand.u32 %s37, 1
        %s333 = scalar_lea.sflag [#allocation5], %s332
        %s334 = sand.u32 %s37, 1
        %s335 = smul.addr %s334, 64
        %s336 = scalar_lea.vmem [#allocation4], %s335
        // Predicated region
        $region53: #{tpu_custom_call.1} parent=51 // pred_check
          %p337 = pneg %p50
        $region54: #{tpu_custom_call.1} parent=51 // pred_check_branch
          %339 = sbr.rel (%p337) target = $region56
        $region55: #{tpu_custom_call.1} parent=51 // pred_region
          %340 = dma.done %s333, 1024
        $region56: #{tpu_custom_call.1} parent=51 // pred_fallthru
          _
        %s341 = sand.u32 %s29, 1
        %s342 = scalar_lea.sflag [#allocation8], %s341
        %s343 = sand.u32 %s63, 1
        %s344 = smul.addr %s343, 64
        %s345 = scalar_lea.vmem [#allocation7], %s344
        // Predicated region
        $region57: #{tpu_custom_call.1} parent=51 // pred_check
          %p346 = pneg %p76
        $region58: #{tpu_custom_call.1} parent=51 // pred_check_branch
          %348 = sbr.rel (%p346) target = $region60
        $region59: #{tpu_custom_call.1} parent=51 // pred_region
          %349 = dma.done %s342, 1024
        $region60: #{tpu_custom_call.1} parent=51 // pred_fallthru
          _
        // Predicated region
        $region61: #{tpu_custom_call.1} parent=51 // pred_check
          %p350 = pneg %p97
        $region62: #{tpu_custom_call.1} parent=51 // pred_check_branch
          %352 = sbr.rel (%p350) target = $region64
        $region63: #{tpu_custom_call.1} parent=51 // pred_region
          %353 = dma.done [#allocation8], 512
        $region64: #{tpu_custom_call.1} parent=51 // pred_fallthru
          _
        // Predicated region
        $region65: #{tpu_custom_call.1} parent=51 // pred_check
          %p354 = pneg %p139
        $region66: #{tpu_custom_call.1} parent=51 // pred_check_branch
          %356 = sbr.rel (%p354) target = $region68
        $region67: #{tpu_custom_call.1} parent=51 // pred_region
          %357 = dma.done [#allocation11], 256
        $region68: #{tpu_custom_call.1} parent=51 // pred_fallthru
          _
        %s358 = sand.u32 %s37, 1
        %s359 = scalar_lea.sflag [#allocation5], %s358
        %s360 = sand.u32 %s37, 1
        %s361 = smul.addr %s360, 64
        %s362 = scalar_lea.vmem [#allocation4], %s361
        %p363 = pneg %p50
        %p364 = pneg %p47
        %s365 = sand.u32 %s29, 1
        %s366 = scalar_lea.sflag [#allocation8], %s365
        %s367 = sand.u32 %s63, 1
        %s368 = smul.addr %s367, 64
        %s369 = scalar_lea.vmem [#allocation7], %s368
        %p370 = pneg %p76
        %p371 = pneg %p73
        %p372 = pneg %p97
        %p373 = pneg %p94
        %p374 = pneg %p118
        %p375 = pneg %p115
        %p376 = pneg %p139
        %p377 = pneg %p136
        %p378 = pneg %p160
        %p379 = pneg %p157
        %p380 = pneg %p181
        %p381 = pneg %p178
        %p382 = pneg %p202
        %p383 = pneg %p199
        %p384 = pneg %p228
        %p385 = pneg %p225
        %s386 = sand.u32 %s215, 1
        %s387 = scalar_lea.sflag [#allocation6], %s386
        %s388 = sand.u32 %s215, 1
        %s389 = smul.addr %s388, 8
        %s390 = scalar_lea.vmem [#allocation12], %s389
        %v392 = vld [vmem:[%s336] sm:$0xff]
        %v393 = vld [vmem:[%s336 + $0x8] sm:$0xff]
        %v394 = vld [vmem:[%s336 + $0x10] sm:$0xff]
        %v395 = vld [vmem:[%s336 + $0x18] sm:$0xff]
        %v396 = vld [vmem:[%s336 + $0x20] sm:$0xff]
        %v397 = vld [vmem:[%s336 + $0x28] sm:$0xff]
        %v398 = vld [vmem:[%s336 + $0x30] sm:$0xff]
        %v399 = vld [vmem:[%s336 + $0x38] sm:$0xff]
        %v400 = vpack.c.bf16 %v393, %v392
        %v401 = vpack.c.bf16 %v395, %v394
        %v402 = vpack.c.bf16 %v397, %v396
        %v403 = vpack.c.bf16 %v399, %v398
        %v404 = vld [vmem:[#allocation9] sm:$0xff]
        %v405 = vld [vmem:[#allocation9 + $0x8] sm:$0xff]
        %v406 = vld [vmem:[#allocation9 + $0x10] sm:$0xff]
        %v407 = vld [vmem:[#allocation9 + $0x18] sm:$0xff]
        %v408 = vld [vmem:[%s3] sm:$0x3]
        %v410 = vlaneseq
        %v411 = vshrl.u32 %v410, 7
        %v412 = vsub.s32 0, %v411
        %v413 = vrot.slane %v408, %v412
        %v414 = vlaneseq
        %v415 = vshrl.u32 %v414, 7
        %v416 = vsub.s32 1, %v415
        %v417 = vrot.slane %v408, %v416
        %v424 = vunpack.c.l.b16 %v404
        %v425 = vunpack.c.h.b16 %v404
        %v426 = vunpack.c.l.b16 %v405
        %v427 = vunpack.c.h.b16 %v405
        %v428 = vunpack.c.l.b16 %v406
        %v429 = vunpack.c.h.b16 %v406
        %v430 = vunpack.c.l.b16 %v407
        %v431 = vunpack.c.h.b16 %v407
        %v432 = vpack.c.b16 %v426, %v424
        %v433 = vpack.c.b16 %v427, %v425
        %v434 = vpack.c.b16 %v430, %v428
        %v435 = vpack.c.b16 %v431, %v429
        %vm440 = vcmask 261120
        %v442 = vsel %vm440, %v400, 0
        %v445 = vsel %vm440, %v401, 0
        %v448 = vsel %vm440, %v402, 0
        %v451 = vsel %vm440, %v403, 0
        %453 = vmatprep.subr.bf16.mxu0 %v433
        %454 = vmatpush1.bf16.msra.mxu0 %v432
        %455 = vmatprep.subr.bf16.mxu0 %v435
        %456 = vmatpush1.bf16.msra.mxu0 %v434
        %457 = vmatprep.subr.bf16.mxu0 0
        %458 = vmatpush1.bf16.msra.mxu0 0
        %459 = vmatprep.subr.bf16.mxu0 0
        %460 = vmatpush1.bf16.msra.mxu0 0
        %461 = vmatprep.subr.bf16.mxu0 0
        %462 = vmatpush1.bf16.msra.mxu0 0
        %463 = vmatprep.subr.bf16.mxu0 0
        %464 = vmatpush1.bf16.msra.mxu0 0
        %465 = vmatprep.subr.bf16.mxu0 0
        %466 = vmatpush1.bf16.msra.mxu0 0
        %467 = vmatprep.subr.bf16.mxu0 0
        %468 = vmatpush1.bf16.msra.mxu0 0
        %469 = vmatprep.subr.bf16.mxu0 0
        %470 = vmatpush1.bf16.msra.mxu0 0
        %471 = vmatprep.subr.bf16.mxu0 0
        %472 = vmatpush1.bf16.msra.mxu0 0
        %473 = vmatprep.subr.bf16.mxu0 0
        %474 = vmatpush1.bf16.msra.mxu0 0
        %475 = vmatprep.subr.bf16.mxu0 0
        %476 = vmatpush1.bf16.msra.mxu0 0
        %477 = vmatprep.subr.bf16.mxu0 0
        %478 = vmatpush1.bf16.msra.mxu0 0
        %479 = vmatprep.subr.bf16.mxu0 0
        %480 = vmatpush1.bf16.msra.mxu0 0
        %481 = vmatprep.subr.bf16.mxu0 0
        %482 = vmatpush1.bf16.msra.mxu0 0
        %483 = vmatprep.subr.bf16.mxu0 0
        %484 = vmatpush1.bf16.msra.mxu0 0
        %485 = vmatprep.mubr.bf16.mxu0 0
        %486 = vmatmul.mubr.bf16.gmra.mrb[0].mxu0 %v442
        %v487 = vpop.f32.mrb[0].mxu0
        %v488 = vadd.f32 %v413, %v487
        %v489 = vpop.f32.mrb[0].mxu0
        %v490 = vadd.f32 %v417, %v489
        %v491 = vpop.f32.mrb[0].mxu0
        %v492 = vadd.f32 %v413, %v491
        %v493 = vpop.f32.mrb[0].mxu0
        %v494 = vadd.f32 %v417, %v493
        %495 = vmatprep.mubr.bf16.mxu0 0
        %496 = vmatmul.mubr.bf16.gmra.mrb[0].mxu0 %v445
        %v497 = vpop.f32.mrb[0].mxu0
        %v498 = vadd.f32 %v413, %v497
        %v499 = vpop.f32.mrb[0].mxu0
        %v500 = vadd.f32 %v417, %v499
        %v501 = vpop.f32.mrb[0].mxu0
        %v502 = vadd.f32 %v413, %v501
        %v503 = vpop.f32.mrb[0].mxu0
        %v504 = vadd.f32 %v417, %v503
        %505 = vmatprep.mubr.bf16.mxu0 0
        %506 = vmatmul.mubr.bf16.gmra.mrb[0].mxu0 %v448
        %v507 = vpop.f32.mrb[0].mxu0
        %v508 = vadd.f32 %v413, %v507
        %v509 = vpop.f32.mrb[0].mxu0
        %v510 = vadd.f32 %v417, %v509
        %v511 = vpop.f32.mrb[0].mxu0
        %v512 = vadd.f32 %v413, %v511
        %v513 = vpop.f32.mrb[0].mxu0
        %v514 = vadd.f32 %v417, %v513
        %515 = vmatprep.mubr.bf16.mxu0 0
        %516 = vmatmul.mubr.bf16.gmra.mrb[0].mxu0 %v451
        %v517 = vpop.f32.mrb[0].mxu0
        %v518 = vadd.f32 %v413, %v517
        %v519 = vpop.f32.mrb[0].mxu0
        %v520 = vadd.f32 %v417, %v519
        %v521 = vpop.f32.mrb[0].mxu0
        %v522 = vadd.f32 %v413, %v521
        %v523 = vpop.f32.mrb[0].mxu0
        %v524 = vadd.f32 %v417, %v523
        %525 = vdwg.mxu0
        %526 = vst [vmem:[#allocation2] sm:$0xff] %v488
        %527 = vst [vmem:[#allocation2 + $0x8] sm:$0xff] %v492
        %528 = vst [vmem:[#allocation2 + $0x10] sm:$0xff] %v498
        %529 = vst [vmem:[#allocation2 + $0x18] sm:$0xff] %v502
        %530 = vst [vmem:[#allocation2 + $0x20] sm:$0xff] %v508
        %531 = vst [vmem:[#allocation2 + $0x28] sm:$0xff] %v512
        %532 = vst [vmem:[#allocation2 + $0x30] sm:$0xff] %v518
        %533 = vst [vmem:[#allocation2 + $0x38] sm:$0xff] %v522
        %534 = vst [vmem:[#allocation3] sm:$0xff] %v490
        %535 = vst [vmem:[#allocation3 + $0x8] sm:$0xff] %v494
        %536 = vst [vmem:[#allocation3 + $0x10] sm:$0xff] %v500
        %537 = vst [vmem:[#allocation3 + $0x18] sm:$0xff] %v504
        %538 = vst [vmem:[#allocation3 + $0x20] sm:$0xff] %v510
        %539 = vst [vmem:[#allocation3 + $0x28] sm:$0xff] %v514
        %540 = vst [vmem:[#allocation3 + $0x30] sm:$0xff] %v520
        %541 = vst [vmem:[#allocation3 + $0x38] sm:$0xff] %v524
        %v542 = vld [vmem:[%s6] sm:$0x1]
        %v544 = vlaneseq
        %v545 = vshrl.u32 %v544, 7
        %v546 = vsub.s32 0, %v545
        %v547 = vrot.slane %v542, %v546
        %v548 = vld [vmem:[%s7] sm:$0x1]
        %v550 = vlaneseq
        %v551 = vshrl.u32 %v550, 7
        %v552 = vsub.s32 0, %v551
        %v553 = vrot.slane %v548, %v552
        %v554 = vld [vmem:[#allocation2] sm:$0xff]
        %v555 = vld [vmem:[#allocation10] sm:$0xf]
        %v556 = vld [vmem:[#allocation10 + $0x4] sm:$0xf]
        %v557 = vld [vmem:[#allocation10 + $0x8] sm:$0xf]
        %v558 = vld [vmem:[#allocation10 + $0xc] sm:$0xf]
        %v563 = vunpack.c.l.b16 %v555
        %v564 = vunpack.c.l.b16 %v556
        %v565 = vunpack.c.l.b16 %v557
        %v566 = vunpack.c.l.b16 %v558
        %v567 = vpack.c.b16 %v564, %v563
        %v568 = vpack.c.b16 %v566, %v565
        %v572 = vsel %vm440, 0, 0
        %574 = vmatprep.subr.bf16.mxu0 0
        %575 = vmatpush1.bf16.msra.mxu0 %v567
        %576 = vmatprep.subr.bf16.mxu0 0
        %577 = vmatpush1.bf16.msra.mxu0 %v568
        %578 = vmatprep.subr.bf16.mxu0 0
        %579 = vmatpush1.bf16.msra.mxu0 0
        %580 = vmatprep.subr.bf16.mxu0 0
        %581 = vmatpush1.bf16.msra.mxu0 0
        %582 = vmatprep.subr.bf16.mxu0 0
        %583 = vmatpush1.bf16.msra.mxu0 0
        %584 = vmatprep.subr.bf16.mxu0 0
        %585 = vmatpush1.bf16.msra.mxu0 0
        %586 = vmatprep.subr.bf16.mxu0 0
        %587 = vmatpush1.bf16.msra.mxu0 0
        %588 = vmatprep.subr.bf16.mxu0 0
        %589 = vmatpush1.bf16.msra.mxu0 0
        %590 = vmatprep.subr.bf16.mxu0 0
        %591 = vmatpush1.bf16.msra.mxu0 0
        %592 = vmatprep.subr.bf16.mxu0 0
        %593 = vmatpush1.bf16.msra.mxu0 0
        %594 = vmatprep.subr.bf16.mxu0 0
        %595 = vmatpush1.bf16.msra.mxu0 0
        %596 = vmatprep.subr.bf16.mxu0 0
        %597 = vmatpush1.bf16.msra.mxu0 0
        %598 = vmatprep.subr.bf16.mxu0 0
        %599 = vmatpush1.bf16.msra.mxu0 0
        %600 = vmatprep.subr.bf16.mxu0 0
        %601 = vmatpush1.bf16.msra.mxu0 0
        %602 = vmatprep.subr.bf16.mxu0 0
        %603 = vmatpush1.bf16.msra.mxu0 0
        %604 = vmatprep.subr.bf16.mxu0 0
        %605 = vmatpush1.bf16.msra.mxu0 0
        %606 = vmatprep.mubr.bf16.mxu0 0
        %607 = vmatmul.mubr.bf16.gmra.mrb[0].mxu0 %v572
        %v608 = vpop.f32.mrb[0].mxu0
        %v609 = vadd.f32 0.0, %v608
        %v610 = vpop.f32.mrb[0].mxu0
        %v611 = vpop.f32.mrb[0].mxu0
        %v612 = vpop.f32.mrb[0].mxu0
        %613 = vdwg.mxu0
        %v614 = vadd.f32 %v554, %v609
        %v615 = vxor.u32 %v614, 2147483648
        %v616 = vmul.f32 %v615, 1.442695
        %v617 = vpow.pop %v616
        %v618 = vadd.f32 %v617, 1.0
        %v619 = vrcp.pop %v618
        %v620 = vmul.f32 1.0, %v619
        %621 = vrot.lane.b32.xlu0 %v547, 64
        %v622 = vpop.permute.xlu0 %621
        %v624 = vadd.f32 %v609, %v622
        %626 = vrot.lane.b32.xlu0 %v624, 64
        %v627 = vpop.permute.xlu0 %626
        %v629 = vmul.f32 %v620, %v627
        %631 = vrot.lane.b32.xlu0 %v629, 64
        %v632 = vpop.permute.xlu0 %631
        %v634 = vadd.f32 %v554, %v632
        %v635 = vtanh.pop %v634
        %v636 = vsub.f32 1.0, %v620
        %638 = vrot.lane.b32.xlu0 %v635, 96
        %v639 = vpop.permute.xlu0 %638
        %v641 = vmul.f32 %v636, %v639
        %v642 = vmul.f32 %v620, 0.0
        %v643 = vadd.f32 %v641, %v642
        %s644 = scalar_lea.vmem [#allocation3], 56
        %v645 = vld [vmem:[%s644] sm:$0xff]
        %v646 = vld [vmem:[%s5] sm:$0xf]
        %v647 = vld [vmem:[%s5 + $0x4] sm:$0xf]
        %v648 = vld [vmem:[%s5 + $0x8] sm:$0xf]
        %v649 = vld [vmem:[%s5 + $0xc] sm:$0xf]
        %v654 = vunpack.c.l.b16 %v646
        %v655 = vunpack.c.l.b16 %v647
        %v656 = vunpack.c.l.b16 %v648
        %v657 = vunpack.c.l.b16 %v649
        %v658 = vpack.c.b16 %v655, %v654
        %v659 = vpack.c.b16 %v657, %v656
        %662 = vmatprep.subr.bf16.mxu0 0
        %663 = vmatpush1.bf16.msra.mxu0 %v658
        %664 = vmatprep.subr.bf16.mxu0 0
        %665 = vmatpush1.bf16.msra.mxu0 %v659
        %666 = vmatprep.subr.bf16.mxu0 0
        %667 = vmatpush1.bf16.msra.mxu0 0
        %668 = vmatprep.subr.bf16.mxu0 0
        %669 = vmatpush1.bf16.msra.mxu0 0
        %670 = vmatprep.subr.bf16.mxu0 0
        %671 = vmatpush1.bf16.msra.mxu0 0
        %672 = vmatprep.subr.bf16.mxu0 0
        %673 = vmatpush1.bf16.msra.mxu0 0
        %674 = vmatprep.subr.bf16.mxu0 0
        %675 = vmatpush1.bf16.msra.mxu0 0
        %676 = vmatprep.subr.bf16.mxu0 0
        %677 = vmatpush1.bf16.msra.mxu0 0
        %678 = vmatprep.subr.bf16.mxu0 0
        %679 = vmatpush1.bf16.msra.mxu0 0
        %680 = vmatprep.subr.bf16.mxu0 0
        %681 = vmatpush1.bf16.msra.mxu0 0
        %682 = vmatprep.subr.bf16.mxu0 0
        %683 = vmatpush1.bf16.msra.mxu0 0
        %684 = vmatprep.subr.bf16.mxu0 0
        %685 = vmatpush1.bf16.msra.mxu0 0
        %686 = vmatprep.subr.bf16.mxu0 0
        %687 = vmatpush1.bf16.msra.mxu0 0
        %688 = vmatprep.subr.bf16.mxu0 0
        %689 = vmatpush1.bf16.msra.mxu0 0
        %690 = vmatprep.subr.bf16.mxu0 0
        %691 = vmatpush1.bf16.msra.mxu0 0
        %692 = vmatprep.subr.bf16.mxu0 0
        %693 = vmatpush1.bf16.msra.mxu0 0
        %694 = vmatprep.mubr.bf16.mxu0 0
        %695 = vmatmul.mubr.bf16.gmra.mrb[0].mxu0 %v572
        %v696 = vpop.f32.mrb[0].mxu0
        %v697 = vadd.f32 0.0, %v696
        %v698 = vpop.f32.mrb[0].mxu0
        %v699 = vpop.f32.mrb[0].mxu0
        %v700 = vpop.f32.mrb[0].mxu0
        %701 = vdwg.mxu0
        %v702 = vadd.f32 %v645, %v697
        %v703 = vxor.u32 %v702, 2147483648
        %v704 = vmul.f32 %v703, 1.442695
        %v705 = vpow.pop %v704
        %v706 = vadd.f32 %v705, 1.0
        %v707 = vrcp.pop %v706
        %v708 = vmul.f32 1.0, %v707
        %709 = vrot.lane.b32.xlu0 %v553, 64
        %v710 = vpop.permute.xlu0 %709
        %v712 = vadd.f32 %v697, %v710
        %714 = vrot.lane.b32.xlu0 %v712, 64
        %v715 = vpop.permute.xlu0 %714
        %v717 = vmul.f32 %v708, %v715
        %719 = vrot.lane.b32.xlu0 %v717, 64
        %v720 = vpop.permute.xlu0 %719
        %v722 = vadd.f32 %v645, %v720
        %v723 = vtanh.pop %v722
        %v724 = vsub.f32 1.0, %v708
        %726 = vrot.lane.b32.xlu0 %v723, 96
        %v727 = vpop.permute.xlu0 %726
        %v729 = vmul.f32 %v724, %v727
        %v730 = vmul.f32 %v708, 0.0
        %v731 = vadd.f32 %v729, %v730
        %v732 = vld [vmem:[%s345] sm:$0xff]
        %s733 = scalar_lea.vmem %s345, 56 [#allocation7]
        %v734 = vld [vmem:[%s733] sm:$0xff]
        %736 = vrot.lane.b32.xlu0 %v643, 96
        %v737 = vpop.permute.xlu0 %736
        %v739 = vmul.f32 %v732, %v737
        %v740 = vadd.f32 %v739, 0.0
        %742 = vrot.lane.b32.xlu0 %v731, 96
        %v743 = vpop.permute.xlu0 %742
        %v745 = vmul.f32 %v734, %v743
        %v746 = vadd.f32 %v745, 0.0
        %s747 = scalar_lea.vmem [#allocation2], 8
        %v748 = vld [vmem:[%s747] sm:$0xff]
        %v749 = vpack.c.bf16 %v740, %v740
        %v751 = vsel %vm440, %v749, 0
        %753 = vmatprep.subr.bf16.mxu0 0
        %754 = vmatpush1.bf16.msra.mxu0 %v567
        %755 = vmatprep.subr.bf16.mxu0 0
        %756 = vmatpush1.bf16.msra.mxu0 %v568
        %757 = vmatprep.subr.bf16.mxu0 0
        %758 = vmatpush1.bf16.msra.mxu0 0
        %759 = vmatprep.subr.bf16.mxu0 0
        %760 = vmatpush1.bf16.msra.mxu0 0
        %761 = vmatprep.subr.bf16.mxu0 0
        %762 = vmatpush1.bf16.msra.mxu0 0
        %763 = vmatprep.subr.bf16.mxu0 0
        %764 = vmatpush1.bf16.msra.mxu0 0
        %765 = vmatprep.subr.bf16.mxu0 0
        %766 = vmatpush1.bf16.msra.mxu0 0
        %767 = vmatprep.subr.bf16.mxu0 0
        %768 = vmatpush1.bf16.msra.mxu0 0
        %769 = vmatprep.subr.bf16.mxu0 0
        %770 = vmatpush1.bf16.msra.mxu0 0
        %771 = vmatprep.subr.bf16.mxu0 0
        %772 = vmatpush1.bf16.msra.mxu0 0
        %773 = vmatprep.subr.bf16.mxu0 0
        %774 = vmatpush1.bf16.msra.mxu0 0
        %775 = vmatprep.subr.bf16.mxu0 0
        %776 = vmatpush1.bf16.msra.mxu0 0
        %777 = vmatprep.subr.bf16.mxu0 0
        %778 = vmatpush1.bf16.msra.mxu0 0
        %779 = vmatprep.subr.bf16.mxu0 0
        %780 = vmatpush1.bf16.msra.mxu0 0
        %781 = vmatprep.subr.bf16.mxu0 0
        %782 = vmatpush1.bf16.msra.mxu0 0
        %783 = vmatprep.subr.bf16.mxu0 0
        %784 = vmatpush1.bf16.msra.mxu0 0
        %785 = vmatprep.mubr.bf16.mxu0 0
        %786 = vmatmul.mubr.bf16.gmra.mrb[0].mxu0 %v751
        %v787 = vpop.f32.mrb[0].mxu0
        %v788 = vadd.f32 0.0, %v787
        %v789 = vpop.f32.mrb[0].mxu0
        %v790 = vpop.f32.mrb[0].mxu0
        %v791 = vpop.f32.mrb[0].mxu0
        %792 = vdwg.mxu0
        %v793 = vadd.f32 %v748, %v788
        %v794 = vxor.u32 %v793, 2147483648
        %v795 = vmul.f32 %v794, 1.442695
        %v796 = vpow.pop %v795
        %v797 = vadd.f32 %v796, 1.0
        %v798 = vrcp.pop %v797
        %v799 = vmul.f32 1.0, %v798
        %v800 = vadd.f32 %v788, %v622
        %802 = vrot.lane.b32.xlu0 %v800, 64
        %v803 = vpop.permute.xlu0 %802
        %v805 = vmul.f32 %v799, %v803
        %807 = vrot.lane.b32.xlu0 %v805, 64
        %v808 = vpop.permute.xlu0 %807
        %v810 = vadd.f32 %v748, %v808
        %v811 = vtanh.pop %v810
        %v812 = vsub.f32 1.0, %v799
        %814 = vrot.lane.b32.xlu0 %v811, 96
        %v815 = vpop.permute.xlu0 %814
        %v817 = vmul.f32 %v812, %v815
        %819 = vrot.lane.b32.xlu0 %v740, 32
        %v820 = vpop.permute.xlu0 %819
        %v822 = vmul.f32 %v799, %v820
        %v823 = vadd.f32 %v817, %v822
        %s824 = scalar_lea.vmem [#allocation3], 48
        %v825 = vld [vmem:[%s824] sm:$0xff]
        %v826 = vpack.c.bf16 %v746, %v746
        %v828 = vsel %vm440, %v826, 0
        %830 = vmatprep.subr.bf16.mxu0 0
        %831 = vmatpush1.bf16.msra.mxu0 %v658
        %832 = vmatprep.subr.bf16.mxu0 0
        %833 = vmatpush1.bf16.msra.mxu0 %v659
        %834 = vmatprep.subr.bf16.mxu0 0
        %835 = vmatpush1.bf16.msra.mxu0 0
        %836 = vmatprep.subr.bf16.mxu0 0
        %837 = vmatpush1.bf16.msra.mxu0 0
        %838 = vmatprep.subr.bf16.mxu0 0
        %839 = vmatpush1.bf16.msra.mxu0 0
        %840 = vmatprep.subr.bf16.mxu0 0
        %841 = vmatpush1.bf16.msra.mxu0 0
        %842 = vmatprep.subr.bf16.mxu0 0
        %843 = vmatpush1.bf16.msra.mxu0 0
        %844 = vmatprep.subr.bf16.mxu0 0
        %845 = vmatpush1.bf16.msra.mxu0 0
        %846 = vmatprep.subr.bf16.mxu0 0
        %847 = vmatpush1.bf16.msra.mxu0 0
        %848 = vmatprep.subr.bf16.mxu0 0
        %849 = vmatpush1.bf16.msra.mxu0 0
        %850 = vmatprep.subr.bf16.mxu0 0
        %851 = vmatpush1.bf16.msra.mxu0 0
        %852 = vmatprep.subr.bf16.mxu0 0
        %853 = vmatpush1.bf16.msra.mxu0 0
        %854 = vmatprep.subr.bf16.mxu0 0
        %855 = vmatpush1.bf16.msra.mxu0 0
        %856 = vmatprep.subr.bf16.mxu0 0
        %857 = vmatpush1.bf16.msra.mxu0 0
        %858 = vmatprep.subr.bf16.mxu0 0
        %859 = vmatpush1.bf16.msra.mxu0 0
        %860 = vmatprep.subr.bf16.mxu0 0
        %861 = vmatpush1.bf16.msra.mxu0 0
        %862 = vmatprep.mubr.bf16.mxu0 0
        %863 = vmatmul.mubr.bf16.gmra.mrb[0].mxu0 %v828
        %v864 = vpop.f32.mrb[0].mxu0
        %v865 = vadd.f32 0.0, %v864
        %v866 = vpop.f32.mrb[0].mxu0
        %v867 = vpop.f32.mrb[0].mxu0
        %v868 = vpop.f32.mrb[0].mxu0
        %869 = vdwg.mxu0
        %v870 = vadd.f32 %v825, %v865
        %v871 = vxor.u32 %v870, 2147483648
        %v872 = vmul.f32 %v871, 1.442695
        %v873 = vpow.pop %v872
        %v874 = vadd.f32 %v873, 1.0
        %v875 = vrcp.pop %v874
        %v876 = vmul.f32 1.0, %v875
        %v877 = vadd.f32 %v865, %v710
        %879 = vrot.lane.b32.xlu0 %v877, 64
        %v880 = vpop.permute.xlu0 %879
        %v882 = vmul.f32 %v876, %v880
        %884 = vrot.lane.b32.xlu0 %v882, 64
        %v885 = vpop.permute.xlu0 %884
        %v887 = vadd.f32 %v825, %v885
        %v888 = vtanh.pop %v887
        %v889 = vsub.f32 1.0, %v876
        %891 = vrot.lane.b32.xlu0 %v888, 96
        %v892 = vpop.permute.xlu0 %891
        %v894 = vmul.f32 %v889, %v892
        %896 = vrot.lane.b32.xlu0 %v746, 32
        %v897 = vpop.permute.xlu0 %896
        %v899 = vmul.f32 %v876, %v897
        %v900 = vadd.f32 %v894, %v899
        %s901 = scalar_lea.vmem %s345, 8 [#allocation7]
        %v902 = vld [vmem:[%s901] sm:$0xff]
        %s903 = scalar_lea.vmem %s345, 48 [#allocation7]
        %v904 = vld [vmem:[%s903] sm:$0xff]
        %v905 = vsub.f32 %v823, %v820
        %907 = vrot.lane.b32.xlu0 %v905, 96
        %v908 = vpop.permute.xlu0 %907
        %v910 = vmul.f32 %v902, %v908
        %v911 = vadd.f32 %v740, %v910
        %v912 = vsub.f32 %v900, %v897
        %914 = vrot.lane.b32.xlu0 %v912, 96
        %v915 = vpop.permute.xlu0 %914
        %v917 = vmul.f32 %v904, %v915
        %v918 = vadd.f32 %v746, %v917
        %s919 = scalar_lea.vmem [#allocation2], 16
        %v920 = vld [vmem:[%s919] sm:$0xff]
        %v921 = vpack.c.bf16 %v911, %v911
        %v923 = vsel %vm440, %v921, 0
        %925 = vmatprep.subr.bf16.mxu0 0
        %926 = vmatpush1.bf16.msra.mxu0 %v567
        %927 = vmatprep.subr.bf16.mxu0 0
        %928 = vmatpush1.bf16.msra.mxu0 %v568
        %929 = vmatprep.subr.bf16.mxu0 0
        %930 = vmatpush1.bf16.msra.mxu0 0
        %931 = vmatprep.subr.bf16.mxu0 0
        %932 = vmatpush1.bf16.msra.mxu0 0
        %933 = vmatprep.subr.bf16.mxu0 0
        %934 = vmatpush1.bf16.msra.mxu0 0
        %935 = vmatprep.subr.bf16.mxu0 0
        %936 = vmatpush1.bf16.msra.mxu0 0
        %937 = vmatprep.subr.bf16.mxu0 0
        %938 = vmatpush1.bf16.msra.mxu0 0
        %939 = vmatprep.subr.bf16.mxu0 0
        %940 = vmatpush1.bf16.msra.mxu0 0
        %941 = vmatprep.subr.bf16.mxu0 0
        %942 = vmatpush1.bf16.msra.mxu0 0
        %943 = vmatprep.subr.bf16.mxu0 0
        %944 = vmatpush1.bf16.msra.mxu0 0
        %945 = vmatprep.subr.bf16.mxu0 0
        %946 = vmatpush1.bf16.msra.mxu0 0
        %947 = vmatprep.subr.bf16.mxu0 0
        %948 = vmatpush1.bf16.msra.mxu0 0
        %949 = vmatprep.subr.bf16.mxu0 0
        %950 = vmatpush1.bf16.msra.mxu0 0
        %951 = vmatprep.subr.bf16.mxu0 0
        %952 = vmatpush1.bf16.msra.mxu0 0
        %953 = vmatprep.subr.bf16.mxu0 0
        %954 = vmatpush1.bf16.msra.mxu0 0
        %955 = vmatprep.subr.bf16.mxu0 0
        %956 = vmatpush1.bf16.msra.mxu0 0
        %957 = vmatprep.mubr.bf16.mxu0 0
        %958 = vmatmul.mubr.bf16.gmra.mrb[0].mxu0 %v923
        %v959 = vpop.f32.mrb[0].mxu0
        %v960 = vadd.f32 0.0, %v959
        %v961 = vpop.f32.mrb[0].mxu0
        %v962 = vpop.f32.mrb[0].mxu0
        %v963 = vpop.f32.mrb[0].mxu0
        %964 = vdwg.mxu0
        %v965 = vadd.f32 %v920, %v960
        %v966 = vxor.u32 %v965, 2147483648
        %v967 = vmul.f32 %v966, 1.442695
        %v968 = vpow.pop %v967
        %v969 = vadd.f32 %v968, 1.0
        %v970 = vrcp.pop %v969
        %v971 = vmul.f32 1.0, %v970
        %v972 = vadd.f32 %v960, %v622
        %974 = vrot.lane.b32.xlu0 %v972, 64
        %v975 = vpop.permute.xlu0 %974
        %v977 = vmul.f32 %v971, %v975
        %979 = vrot.lane.b32.xlu0 %v977, 64
        %v980 = vpop.permute.xlu0 %979
        %v982 = vadd.f32 %v920, %v980
        %v983 = vtanh.pop %v982
        %v984 = vsub.f32 1.0, %v971
        %986 = vrot.lane.b32.xlu0 %v983, 96
        %v987 = vpop.permute.xlu0 %986
        %v989 = vmul.f32 %v984, %v987
        %991 = vrot.lane.b32.xlu0 %v911, 32
        %v992 = vpop.permute.xlu0 %991
        %v994 = vmul.f32 %v971, %v992
        %v995 = vadd.f32 %v989, %v994
        %s996 = scalar_lea.vmem [#allocation3], 40
        %v997 = vld [vmem:[%s996] sm:$0xff]
        %v998 = vpack.c.bf16 %v918, %v918
        %v1000 = vsel %vm440, %v998, 0
        %1002 = vmatprep.subr.bf16.mxu0 0
        %1003 = vmatpush1.bf16.msra.mxu0 %v658
        %1004 = vmatprep.subr.bf16.mxu0 0
        %1005 = vmatpush1.bf16.msra.mxu0 %v659
        %1006 = vmatprep.subr.bf16.mxu0 0
        %1007 = vmatpush1.bf16.msra.mxu0 0
        %1008 = vmatprep.subr.bf16.mxu0 0
        %1009 = vmatpush1.bf16.msra.mxu0 0
        %1010 = vmatprep.subr.bf16.mxu0 0
        %1011 = vmatpush1.bf16.msra.mxu0 0
        %1012 = vmatprep.subr.bf16.mxu0 0
        %1013 = vmatpush1.bf16.msra.mxu0 0
        %1014 = vmatprep.subr.bf16.mxu0 0
        %1015 = vmatpush1.bf16.msra.mxu0 0
        %1016 = vmatprep.subr.bf16.mxu0 0
        %1017 = vmatpush1.bf16.msra.mxu0 0
        %1018 = vmatprep.subr.bf16.mxu0 0
        %1019 = vmatpush1.bf16.msra.mxu0 0
        %1020 = vmatprep.subr.bf16.mxu0 0
        %1021 = vmatpush1.bf16.msra.mxu0 0
        %1022 = vmatprep.subr.bf16.mxu0 0
        %1023 = vmatpush1.bf16.msra.mxu0 0
        %1024 = vmatprep.subr.bf16.mxu0 0
        %1025 = vmatpush1.bf16.msra.mxu0 0
        %1026 = vmatprep.subr.bf16.mxu0 0
        %1027 = vmatpush1.bf16.msra.mxu0 0
        %1028 = vmatprep.subr.bf16.mxu0 0
        %1029 = vmatpush1.bf16.msra.mxu0 0
        %1030 = vmatprep.subr.bf16.mxu0 0
        %1031 = vmatpush1.bf16.msra.mxu0 0
        %1032 = vmatprep.subr.bf16.mxu0 0
        %1033 = vmatpush1.bf16.msra.mxu0 0
        %1034 = vmatprep.mubr.bf16.mxu0 0
        %1035 = vmatmul.mubr.bf16.gmra.mrb[0].mxu0 %v1000
        %v1036 = vpop.f32.mrb[0].mxu0
        %v1037 = vadd.f32 0.0, %v1036
        %v1038 = vpop.f32.mrb[0].mxu0
        %v1039 = vpop.f32.mrb[0].mxu0
        %v1040 = vpop.f32.mrb[0].mxu0
        %1041 = vdwg.mxu0
        %v1042 = vadd.f32 %v997, %v1037
        %v1043 = vxor.u32 %v1042, 2147483648
        %v1044 = vmul.f32 %v1043, 1.442695
        %v1045 = vpow.pop %v1044
        %v1046 = vadd.f32 %v1045, 1.0
        %v1047 = vrcp.pop %v1046
        %v1048 = vmul.f32 1.0, %v1047
        %v1049 = vadd.f32 %v1037, %v710
        %1051 = vrot.lane.b32.xlu0 %v1049, 64
        %v1052 = vpop.permute.xlu0 %1051
        %v1054 = vmul.f32 %v1048, %v1052
        %1056 = vrot.lane.b32.xlu0 %v1054, 64
        %v1057 = vpop.permute.xlu0 %1056
        %v1059 = vadd.f32 %v997, %v1057
        %v1060 = vtanh.pop %v1059
        %v1061 = vsub.f32 1.0, %v1048
        %1063 = vrot.lane.b32.xlu0 %v1060, 96
        %v1064 = vpop.permute.xlu0 %1063
        %v1066 = vmul.f32 %v1061, %v1064
        %1068 = vrot.lane.b32.xlu0 %v918, 32
        %v1069 = vpop.permute.xlu0 %1068
        %v1071 = vmul.f32 %v1048, %v1069
        %v1072 = vadd.f32 %v1066, %v1071
        %s1073 = scalar_lea.vmem %s345, 16 [#allocation7]
        %v1074 = vld [vmem:[%s1073] sm:$0xff]
        %s1075 = scalar_lea.vmem %s345, 40 [#allocation7]
        %v1076 = vld [vmem:[%s1075] sm:$0xff]
        %v1077 = vsub.f32 %v995, %v992
        %1079 = vrot.lane.b32.xlu0 %v1077, 96
        %v1080 = vpop.permute.xlu0 %1079
        %v1082 = vmul.f32 %v1074, %v1080
        %v1083 = vadd.f32 %v911, %v1082
        %v1084 = vsub.f32 %v1072, %v1069
        %1086 = vrot.lane.b32.xlu0 %v1084, 96
        %v1087 = vpop.permute.xlu0 %1086
        %v1089 = vmul.f32 %v1076, %v1087
        %v1090 = vadd.f32 %v918, %v1089
        %s1091 = scalar_lea.vmem [#allocation2], 24
        %v1092 = vld [vmem:[%s1091] sm:$0xff]
        %v1093 = vpack.c.bf16 %v1083, %v1083
        %v1095 = vsel %vm440, %v1093, 0
        %1097 = vmatprep.subr.bf16.mxu0 0
        %1098 = vmatpush1.bf16.msra.mxu0 %v567
        %1099 = vmatprep.subr.bf16.mxu0 0
        %1100 = vmatpush1.bf16.msra.mxu0 %v568
        %1101 = vmatprep.subr.bf16.mxu0 0
        %1102 = vmatpush1.bf16.msra.mxu0 0
        %1103 = vmatprep.subr.bf16.mxu0 0
        %1104 = vmatpush1.bf16.msra.mxu0 0
        %1105 = vmatprep.subr.bf16.mxu0 0
        %1106 = vmatpush1.bf16.msra.mxu0 0
        %1107 = vmatprep.subr.bf16.mxu0 0
        %1108 = vmatpush1.bf16.msra.mxu0 0
        %1109 = vmatprep.subr.bf16.mxu0 0
        %1110 = vmatpush1.bf16.msra.mxu0 0
        %1111 = vmatprep.subr.bf16.mxu0 0
        %1112 = vmatpush1.bf16.msra.mxu0 0
        %1113 = vmatprep.subr.bf16.mxu0 0
        %1114 = vmatpush1.bf16.msra.mxu0 0
        %1115 = vmatprep.subr.bf16.mxu0 0
        %1116 = vmatpush1.bf16.msra.mxu0 0
        %1117 = vmatprep.subr.bf16.mxu0 0
        %1118 = vmatpush1.bf16.msra.mxu0 0
        %1119 = vmatprep.subr.bf16.mxu0 0
        %1120 = vmatpush1.bf16.msra.mxu0 0
        %1121 = vmatprep.subr.bf16.mxu0 0
        %1122 = vmatpush1.bf16.msra.mxu0 0
        %1123 = vmatprep.subr.bf16.mxu0 0
        %1124 = vmatpush1.bf16.msra.mxu0 0
        %1125 = vmatprep.subr.bf16.mxu0 0
        %1126 = vmatpush1.bf16.msra.mxu0 0
        %1127 = vmatprep.subr.bf16.mxu0 0
        %1128 = vmatpush1.bf16.msra.mxu0 0
        %1129 = vmatprep.mubr.bf16.mxu0 0
        %1130 = vmatmul.mubr.bf16.gmra.mrb[0].mxu0 %v1095
        %v1131 = vpop.f32.mrb[0].mxu0
        %v1132 = vadd.f32 0.0, %v1131
        %v1133 = vpop.f32.mrb[0].mxu0
        %v1134 = vpop.f32.mrb[0].mxu0
        %v1135 = vpop.f32.mrb[0].mxu0
        %1136 = vdwg.mxu0
        %v1137 = vadd.f32 %v1092, %v1132
        %v1138 = vxor.u32 %v1137, 2147483648
        %v1139 = vmul.f32 %v1138, 1.442695
        %v1140 = vpow.pop %v1139
        %v1141 = vadd.f32 %v1140, 1.0
        %v1142 = vrcp.pop %v1141
        %v1143 = vmul.f32 1.0, %v1142
        %v1144 = vadd.f32 %v1132, %v622
        %1146 = vrot.lane.b32.xlu0 %v1144, 64
        %v1147 = vpop.permute.xlu0 %1146
        %v1149 = vmul.f32 %v1143, %v1147
        %1151 = vrot.lane.b32.xlu0 %v1149, 64
        %v1152 = vpop.permute.xlu0 %1151
        %v1154 = vadd.f32 %v1092, %v1152
        %v1155 = vtanh.pop %v1154
        %v1156 = vsub.f32 1.0, %v1143
        %1158 = vrot.lane.b32.xlu0 %v1155, 96
        %v1159 = vpop.permute.xlu0 %1158
        %v1161 = vmul.f32 %v1156, %v1159
        %1163 = vrot.lane.b32.xlu0 %v1083, 32
        %v1164 = vpop.permute.xlu0 %1163
        %v1166 = vmul.f32 %v1143, %v1164
        %v1167 = vadd.f32 %v1161, %v1166
        %s1168 = scalar_lea.vmem [#allocation3], 32
        %v1169 = vld [vmem:[%s1168] sm:$0xff]
        %v1170 = vpack.c.bf16 %v1090, %v1090
        %v1172 = vsel %vm440, %v1170, 0
        %1174 = vmatprep.subr.bf16.mxu0 0
        %1175 = vmatpush1.bf16.msra.mxu0 %v658
        %1176 = vmatprep.subr.bf16.mxu0 0
        %1177 = vmatpush1.bf16.msra.mxu0 %v659
        %1178 = vmatprep.subr.bf16.mxu0 0
        %1179 = vmatpush1.bf16.msra.mxu0 0
        %1180 = vmatprep.subr.bf16.mxu0 0
        %1181 = vmatpush1.bf16.msra.mxu0 0
        %1182 = vmatprep.subr.bf16.mxu0 0
        %1183 = vmatpush1.bf16.msra.mxu0 0
        %1184 = vmatprep.subr.bf16.mxu0 0
        %1185 = vmatpush1.bf16.msra.mxu0 0
        %1186 = vmatprep.subr.bf16.mxu0 0
        %1187 = vmatpush1.bf16.msra.mxu0 0
        %1188 = vmatprep.subr.bf16.mxu0 0
        %1189 = vmatpush1.bf16.msra.mxu0 0
        %1190 = vmatprep.subr.bf16.mxu0 0
        %1191 = vmatpush1.bf16.msra.mxu0 0
        %1192 = vmatprep.subr.bf16.mxu0 0
        %1193 = vmatpush1.bf16.msra.mxu0 0
        %1194 = vmatprep.subr.bf16.mxu0 0
        %1195 = vmatpush1.bf16.msra.mxu0 0
        %1196 = vmatprep.subr.bf16.mxu0 0
        %1197 = vmatpush1.bf16.msra.mxu0 0
        %1198 = vmatprep.subr.bf16.mxu0 0
        %1199 = vmatpush1.bf16.msra.mxu0 0
        %1200 = vmatprep.subr.bf16.mxu0 0
        %1201 = vmatpush1.bf16.msra.mxu0 0
        %1202 = vmatprep.subr.bf16.mxu0 0
        %1203 = vmatpush1.bf16.msra.mxu0 0
        %1204 = vmatprep.subr.bf16.mxu0 0
        %1205 = vmatpush1.bf16.msra.mxu0 0
        %1206 = vmatprep.mubr.bf16.mxu0 0
        %1207 = vmatmul.mubr.bf16.gmra.mrb[0].mxu0 %v1172
        %v1208 = vpop.f32.mrb[0].mxu0
        %v1209 = vadd.f32 0.0, %v1208
        %v1210 = vpop.f32.mrb[0].mxu0
        %v1211 = vpop.f32.mrb[0].mxu0
        %v1212 = vpop.f32.mrb[0].mxu0
        %1213 = vdwg.mxu0
        %v1214 = vadd.f32 %v1169, %v1209
        %v1215 = vxor.u32 %v1214, 2147483648
        %v1216 = vmul.f32 %v1215, 1.442695
        %v1217 = vpow.pop %v1216
        %v1218 = vadd.f32 %v1217, 1.0
        %v1219 = vrcp.pop %v1218
        %v1220 = vmul.f32 1.0, %v1219
        %v1221 = vadd.f32 %v1209, %v710
        %1223 = vrot.lane.b32.xlu0 %v1221, 64
        %v1224 = vpop.permute.xlu0 %1223
        %v1226 = vmul.f32 %v1220, %v1224
        %1228 = vrot.lane.b32.xlu0 %v1226, 64
        %v1229 = vpop.permute.xlu0 %1228
        %v1231 = vadd.f32 %v1169, %v1229
        %v1232 = vtanh.pop %v1231
        %v1233 = vsub.f32 1.0, %v1220
        %1235 = vrot.lane.b32.xlu0 %v1232, 96
        %v1236 = vpop.permute.xlu0 %1235
        %v1238 = vmul.f32 %v1233, %v1236
        %1240 = vrot.lane.b32.xlu0 %v1090, 32
        %v1241 = vpop.permute.xlu0 %1240
        %v1243 = vmul.f32 %v1220, %v1241
        %v1244 = vadd.f32 %v1238, %v1243
        %s1245 = scalar_lea.vmem %s345, 24 [#allocation7]
        %v1246 = vld [vmem:[%s1245] sm:$0xff]
        %s1247 = scalar_lea.vmem %s345, 32 [#allocation7]
        %v1248 = vld [vmem:[%s1247] sm:$0xff]
        %v1249 = vsub.f32 %v1167, %v1164
        %1251 = vrot.lane.b32.xlu0 %v1249, 96
        %v1252 = vpop.permute.xlu0 %1251
        %v1254 = vmul.f32 %v1246, %v1252
        %v1255 = vadd.f32 %v1083, %v1254
        %v1256 = vsub.f32 %v1244, %v1241
        %1258 = vrot.lane.b32.xlu0 %v1256, 96
        %v1259 = vpop.permute.xlu0 %1258
        %v1261 = vmul.f32 %v1248, %v1259
        %v1262 = vadd.f32 %v1090, %v1261
        %s1263 = scalar_lea.vmem [#allocation2], 32
        %v1264 = vld [vmem:[%s1263] sm:$0xff]
        %v1265 = vpack.c.bf16 %v1255, %v1255
        %v1267 = vsel %vm440, %v1265, 0
        %1269 = vmatprep.subr.bf16.mxu0 0
        %1270 = vmatpush1.bf16.msra.mxu0 %v567
        %1271 = vmatprep.subr.bf16.mxu0 0
        %1272 = vmatpush1.bf16.msra.mxu0 %v568
        %1273 = vmatprep.subr.bf16.mxu0 0
        %1274 = vmatpush1.bf16.msra.mxu0 0
        %1275 = vmatprep.subr.bf16.mxu0 0
        %1276 = vmatpush1.bf16.msra.mxu0 0
        %1277 = vmatprep.subr.bf16.mxu0 0
        %1278 = vmatpush1.bf16.msra.mxu0 0
        %1279 = vmatprep.subr.bf16.mxu0 0
        %1280 = vmatpush1.bf16.msra.mxu0 0
        %1281 = vmatprep.subr.bf16.mxu0 0
        %1282 = vmatpush1.bf16.msra.mxu0 0
        %1283 = vmatprep.subr.bf16.mxu0 0
        %1284 = vmatpush1.bf16.msra.mxu0 0
        %1285 = vmatprep.subr.bf16.mxu0 0
        %1286 = vmatpush1.bf16.msra.mxu0 0
        %1287 = vmatprep.subr.bf16.mxu0 0
        %1288 = vmatpush1.bf16.msra.mxu0 0
        %1289 = vmatprep.subr.bf16.mxu0 0
        %1290 = vmatpush1.bf16.msra.mxu0 0
        %1291 = vmatprep.subr.bf16.mxu0 0
        %1292 = vmatpush1.bf16.msra.mxu0 0
        %1293 = vmatprep.subr.bf16.mxu0 0
        %1294 = vmatpush1.bf16.msra.mxu0 0
        %1295 = vmatprep.subr.bf16.mxu0 0
        %1296 = vmatpush1.bf16.msra.mxu0 0
        %1297 = vmatprep.subr.bf16.mxu0 0
        %1298 = vmatpush1.bf16.msra.mxu0 0
        %1299 = vmatprep.subr.bf16.mxu0 0
        %1300 = vmatpush1.bf16.msra.mxu0 0
        %1301 = vmatprep.mubr.bf16.mxu0 0
        %1302 = vmatmul.mubr.bf16.gmra.mrb[0].mxu0 %v1267
        %v1303 = vpop.f32.mrb[0].mxu0
        %v1304 = vadd.f32 0.0, %v1303
        %v1305 = vpop.f32.mrb[0].mxu0
        %v1306 = vpop.f32.mrb[0].mxu0
        %v1307 = vpop.f32.mrb[0].mxu0
        %1308 = vdwg.mxu0
        %v1309 = vadd.f32 %v1264, %v1304
        %v1310 = vxor.u32 %v1309, 2147483648
        %v1311 = vmul.f32 %v1310, 1.442695
        %v1312 = vpow.pop %v1311
        %v1313 = vadd.f32 %v1312, 1.0
        %v1314 = vrcp.pop %v1313
        %v1315 = vmul.f32 1.0, %v1314
        %v1316 = vadd.f32 %v1304, %v622
        %1318 = vrot.lane.b32.xlu0 %v1316, 64
        %v1319 = vpop.permute.xlu0 %1318
        %v1321 = vmul.f32 %v1315, %v1319
        %1323 = vrot.lane.b32.xlu0 %v1321, 64
        %v1324 = vpop.permute.xlu0 %1323
        %v1326 = vadd.f32 %v1264, %v1324
        %v1327 = vtanh.pop %v1326
        %v1328 = vsub.f32 1.0, %v1315
        %1330 = vrot.lane.b32.xlu0 %v1327, 96
        %v1331 = vpop.permute.xlu0 %1330
        %v1333 = vmul.f32 %v1328, %v1331
        %1335 = vrot.lane.b32.xlu0 %v1255, 32
        %v1336 = vpop.permute.xlu0 %1335
        %v1338 = vmul.f32 %v1315, %v1336
        %v1339 = vadd.f32 %v1333, %v1338
        %s1340 = scalar_lea.vmem [#allocation3], 24
        %v1341 = vld [vmem:[%s1340] sm:$0xff]
        %v1342 = vpack.c.bf16 %v1262, %v1262
        %v1344 = vsel %vm440, %v1342, 0
        %1346 = vmatprep.subr.bf16.mxu0 0
        %1347 = vmatpush1.bf16.msra.mxu0 %v658
        %1348 = vmatprep.subr.bf16.mxu0 0
        %1349 = vmatpush1.bf16.msra.mxu0 %v659
        %1350 = vmatprep.subr.bf16.mxu0 0
        %1351 = vmatpush1.bf16.msra.mxu0 0
        %1352 = vmatprep.subr.bf16.mxu0 0
        %1353 = vmatpush1.bf16.msra.mxu0 0
        %1354 = vmatprep.subr.bf16.mxu0 0
        %1355 = vmatpush1.bf16.msra.mxu0 0
        %1356 = vmatprep.subr.bf16.mxu0 0
        %1357 = vmatpush1.bf16.msra.mxu0 0
        %1358 = vmatprep.subr.bf16.mxu0 0
        %1359 = vmatpush1.bf16.msra.mxu0 0
        %1360 = vmatprep.subr.bf16.mxu0 0
        %1361 = vmatpush1.bf16.msra.mxu0 0
        %1362 = vmatprep.subr.bf16.mxu0 0
        %1363 = vmatpush1.bf16.msra.mxu0 0
        %1364 = vmatprep.subr.bf16.mxu0 0
        %1365 = vmatpush1.bf16.msra.mxu0 0
        %1366 = vmatprep.subr.bf16.mxu0 0
        %1367 = vmatpush1.bf16.msra.mxu0 0
        %1368 = vmatprep.subr.bf16.mxu0 0
        %1369 = vmatpush1.bf16.msra.mxu0 0
        %1370 = vmatprep.subr.bf16.mxu0 0
        %1371 = vmatpush1.bf16.msra.mxu0 0
        %1372 = vmatprep.subr.bf16.mxu0 0
        %1373 = vmatpush1.bf16.msra.mxu0 0
        %1374 = vmatprep.subr.bf16.mxu0 0
        %1375 = vmatpush1.bf16.msra.mxu0 0
        %1376 = vmatprep.subr.bf16.mxu0 0
        %1377 = vmatpush1.bf16.msra.mxu0 0
        %1378 = vmatprep.mubr.bf16.mxu0 0
        %1379 = vmatmul.mubr.bf16.gmra.mrb[0].mxu0 %v1344
        %v1380 = vpop.f32.mrb[0].mxu0
        %v1381 = vadd.f32 0.0, %v1380
        %v1382 = vpop.f32.mrb[0].mxu0
        %v1383 = vpop.f32.mrb[0].mxu0
        %v1384 = vpop.f32.mrb[0].mxu0
        %1385 = vdwg.mxu0
        %v1386 = vadd.f32 %v1341, %v1381
        %v1387 = vxor.u32 %v1386, 2147483648
        %v1388 = vmul.f32 %v1387, 1.442695
        %v1389 = vpow.pop %v1388
        %v1390 = vadd.f32 %v1389, 1.0
        %v1391 = vrcp.pop %v1390
        %v1392 = vmul.f32 1.0, %v1391
        %v1393 = vadd.f32 %v1381, %v710
        %1395 = vrot.lane.b32.xlu0 %v1393, 64
        %v1396 = vpop.permute.xlu0 %1395
        %v1398 = vmul.f32 %v1392, %v1396
        %1400 = vrot.lane.b32.xlu0 %v1398, 64
        %v1401 = vpop.permute.xlu0 %1400
        %v1403 = vadd.f32 %v1341, %v1401
        %v1404 = vtanh.pop %v1403
        %v1405 = vsub.f32 1.0, %v1392
        %1407 = vrot.lane.b32.xlu0 %v1404, 96
        %v1408 = vpop.permute.xlu0 %1407
        %v1410 = vmul.f32 %v1405, %v1408
        %1412 = vrot.lane.b32.xlu0 %v1262, 32
        %v1413 = vpop.permute.xlu0 %1412
        %v1415 = vmul.f32 %v1392, %v1413
        %v1416 = vadd.f32 %v1410, %v1415
        %v1417 = vsub.f32 %v1339, %v1336
        %1419 = vrot.lane.b32.xlu0 %v1417, 96
        %v1420 = vpop.permute.xlu0 %1419
        %v1422 = vmul.f32 %v1248, %v1420
        %v1423 = vadd.f32 %v1255, %v1422
        %v1424 = vsub.f32 %v1416, %v1413
        %1426 = vrot.lane.b32.xlu0 %v1424, 96
        %v1427 = vpop.permute.xlu0 %1426
        %v1429 = vmul.f32 %v1246, %v1427
        %v1430 = vadd.f32 %v1262, %v1429
        %s1431 = scalar_lea.vmem [#allocation2], 40
        %v1432 = vld [vmem:[%s1431] sm:$0xff]
        %v1433 = vpack.c.bf16 %v1423, %v1423
        %v1435 = vsel %vm440, %v1433, 0
        %1437 = vmatprep.subr.bf16.mxu0 0
        %1438 = vmatpush1.bf16.msra.mxu0 %v567
        %1439 = vmatprep.subr.bf16.mxu0 0
        %1440 = vmatpush1.bf16.msra.mxu0 %v568
        %1441 = vmatprep.subr.bf16.mxu0 0
        %1442 = vmatpush1.bf16.msra.mxu0 0
        %1443 = vmatprep.subr.bf16.mxu0 0
        %1444 = vmatpush1.bf16.msra.mxu0 0
        %1445 = vmatprep.subr.bf16.mxu0 0
        %1446 = vmatpush1.bf16.msra.mxu0 0
        %1447 = vmatprep.subr.bf16.mxu0 0
        %1448 = vmatpush1.bf16.msra.mxu0 0
        %1449 = vmatprep.subr.bf16.mxu0 0
        %1450 = vmatpush1.bf16.msra.mxu0 0
        %1451 = vmatprep.subr.bf16.mxu0 0
        %1452 = vmatpush1.bf16.msra.mxu0 0
        %1453 = vmatprep.subr.bf16.mxu0 0
        %1454 = vmatpush1.bf16.msra.mxu0 0
        %1455 = vmatprep.subr.bf16.mxu0 0
        %1456 = vmatpush1.bf16.msra.mxu0 0
        %1457 = vmatprep.subr.bf16.mxu0 0
        %1458 = vmatpush1.bf16.msra.mxu0 0
        %1459 = vmatprep.subr.bf16.mxu0 0
        %1460 = vmatpush1.bf16.msra.mxu0 0
        %1461 = vmatprep.subr.bf16.mxu0 0
        %1462 = vmatpush1.bf16.msra.mxu0 0
        %1463 = vmatprep.subr.bf16.mxu0 0
        %1464 = vmatpush1.bf16.msra.mxu0 0
        %1465 = vmatprep.subr.bf16.mxu0 0
        %1466 = vmatpush1.bf16.msra.mxu0 0
        %1467 = vmatprep.subr.bf16.mxu0 0
        %1468 = vmatpush1.bf16.msra.mxu0 0
        %1469 = vmatprep.mubr.bf16.mxu0 0
        %1470 = vmatmul.mubr.bf16.gmra.mrb[0].mxu0 %v1435
        %v1471 = vpop.f32.mrb[0].mxu0
        %v1472 = vadd.f32 0.0, %v1471
        %v1473 = vpop.f32.mrb[0].mxu0
        %v1474 = vpop.f32.mrb[0].mxu0
        %v1475 = vpop.f32.mrb[0].mxu0
        %1476 = vdwg.mxu0
        %v1477 = vadd.f32 %v1432, %v1472
        %v1478 = vxor.u32 %v1477, 2147483648
        %v1479 = vmul.f32 %v1478, 1.442695
        %v1480 = vpow.pop %v1479
        %v1481 = vadd.f32 %v1480, 1.0
        %v1482 = vrcp.pop %v1481
        %v1483 = vmul.f32 1.0, %v1482
        %v1484 = vadd.f32 %v1472, %v622
        %1486 = vrot.lane.b32.xlu0 %v1484, 64
        %v1487 = vpop.permute.xlu0 %1486
        %v1489 = vmul.f32 %v1483, %v1487
        %1491 = vrot.lane.b32.xlu0 %v1489, 64
        %v1492 = vpop.permute.xlu0 %1491
        %v1494 = vadd.f32 %v1432, %v1492
        %v1495 = vtanh.pop %v1494
        %v1496 = vsub.f32 1.0, %v1483
        %1498 = vrot.lane.b32.xlu0 %v1495, 96
        %v1499 = vpop.permute.xlu0 %1498
        %v1501 = vmul.f32 %v1496, %v1499
        %1503 = vrot.lane.b32.xlu0 %v1423, 32
        %v1504 = vpop.permute.xlu0 %1503
        %v1506 = vmul.f32 %v1483, %v1504
        %v1507 = vadd.f32 %v1501, %v1506
        %s1508 = scalar_lea.vmem [#allocation3], 16
        %v1509 = vld [vmem:[%s1508] sm:$0xff]
        %v1510 = vpack.c.bf16 %v1430, %v1430
        %v1512 = vsel %vm440, %v1510, 0
        %1514 = vmatprep.subr.bf16.mxu0 0
        %1515 = vmatpush1.bf16.msra.mxu0 %v658
        %1516 = vmatprep.subr.bf16.mxu0 0
        %1517 = vmatpush1.bf16.msra.mxu0 %v659
        %1518 = vmatprep.subr.bf16.mxu0 0
        %1519 = vmatpush1.bf16.msra.mxu0 0
        %1520 = vmatprep.subr.bf16.mxu0 0
        %1521 = vmatpush1.bf16.msra.mxu0 0
        %1522 = vmatprep.subr.bf16.mxu0 0
        %1523 = vmatpush1.bf16.msra.mxu0 0
        %1524 = vmatprep.subr.bf16.mxu0 0
        %1525 = vmatpush1.bf16.msra.mxu0 0
        %1526 = vmatprep.subr.bf16.mxu0 0
        %1527 = vmatpush1.bf16.msra.mxu0 0
        %1528 = vmatprep.subr.bf16.mxu0 0
        %1529 = vmatpush1.bf16.msra.mxu0 0
        %1530 = vmatprep.subr.bf16.mxu0 0
        %1531 = vmatpush1.bf16.msra.mxu0 0
        %1532 = vmatprep.subr.bf16.mxu0 0
        %1533 = vmatpush1.bf16.msra.mxu0 0
        %1534 = vmatprep.subr.bf16.mxu0 0
        %1535 = vmatpush1.bf16.msra.mxu0 0
        %1536 = vmatprep.subr.bf16.mxu0 0
        %1537 = vmatpush1.bf16.msra.mxu0 0
        %1538 = vmatprep.subr.bf16.mxu0 0
        %1539 = vmatpush1.bf16.msra.mxu0 0
        %1540 = vmatprep.subr.bf16.mxu0 0
        %1541 = vmatpush1.bf16.msra.mxu0 0
        %1542 = vmatprep.subr.bf16.mxu0 0
        %1543 = vmatpush1.bf16.msra.mxu0 0
        %1544 = vmatprep.subr.bf16.mxu0 0
        %1545 = vmatpush1.bf16.msra.mxu0 0
        %1546 = vmatprep.mubr.bf16.mxu0 0
        %1547 = vmatmul.mubr.bf16.gmra.mrb[0].mxu0 %v1512
        %v1548 = vpop.f32.mrb[0].mxu0
        %v1549 = vadd.f32 0.0, %v1548
        %v1550 = vpop.f32.mrb[0].mxu0
        %v1551 = vpop.f32.mrb[0].mxu0
        %v1552 = vpop.f32.mrb[0].mxu0
        %1553 = vdwg.mxu0
        %v1554 = vadd.f32 %v1509, %v1549
        %v1555 = vxor.u32 %v1554, 2147483648
        %v1556 = vmul.f32 %v1555, 1.442695
        %v1557 = vpow.pop %v1556
        %v1558 = vadd.f32 %v1557, 1.0
        %v1559 = vrcp.pop %v1558
        %v1560 = vmul.f32 1.0, %v1559
        %v1561 = vadd.f32 %v1549, %v710
        %1563 = vrot.lane.b32.xlu0 %v1561, 64
        %v1564 = vpop.permute.xlu0 %1563
        %v1566 = vmul.f32 %v1560, %v1564
        %1568 = vrot.lane.b32.xlu0 %v1566, 64
        %v1569 = vpop.permute.xlu0 %1568
        %v1571 = vadd.f32 %v1509, %v1569
        %v1572 = vtanh.pop %v1571
        %v1573 = vsub.f32 1.0, %v1560
        %1575 = vrot.lane.b32.xlu0 %v1572, 96
        %v1576 = vpop.permute.xlu0 %1575
        %v1578 = vmul.f32 %v1573, %v1576
        %1580 = vrot.lane.b32.xlu0 %v1430, 32
        %v1581 = vpop.permute.xlu0 %1580
        %v1583 = vmul.f32 %v1560, %v1581
        %v1584 = vadd.f32 %v1578, %v1583
        %v1585 = vsub.f32 %v1507, %v1504
        %1587 = vrot.lane.b32.xlu0 %v1585, 96
        %v1588 = vpop.permute.xlu0 %1587
        %v1590 = vmul.f32 %v1076, %v1588
        %v1591 = vadd.f32 %v1423, %v1590
        %v1592 = vsub.f32 %v1584, %v1581
        %1594 = vrot.lane.b32.xlu0 %v1592, 96
        %v1595 = vpop.permute.xlu0 %1594
        %v1597 = vmul.f32 %v1074, %v1595
        %v1598 = vadd.f32 %v1430, %v1597
        %s1599 = scalar_lea.vmem [#allocation2], 48
        %v1600 = vld [vmem:[%s1599] sm:$0xff]
        %v1601 = vpack.c.bf16 %v1591, %v1591
        %v1603 = vsel %vm440, %v1601, 0
        %1605 = vmatprep.subr.bf16.mxu0 0
        %1606 = vmatpush1.bf16.msra.mxu0 %v567
        %1607 = vmatprep.subr.bf16.mxu0 0
        %1608 = vmatpush1.bf16.msra.mxu0 %v568
        %1609 = vmatprep.subr.bf16.mxu0 0
        %1610 = vmatpush1.bf16.msra.mxu0 0
        %1611 = vmatprep.subr.bf16.mxu0 0
        %1612 = vmatpush1.bf16.msra.mxu0 0
        %1613 = vmatprep.subr.bf16.mxu0 0
        %1614 = vmatpush1.bf16.msra.mxu0 0
        %1615 = vmatprep.subr.bf16.mxu0 0
        %1616 = vmatpush1.bf16.msra.mxu0 0
        %1617 = vmatprep.subr.bf16.mxu0 0
        %1618 = vmatpush1.bf16.msra.mxu0 0
        %1619 = vmatprep.subr.bf16.mxu0 0
        %1620 = vmatpush1.bf16.msra.mxu0 0
        %1621 = vmatprep.subr.bf16.mxu0 0
        %1622 = vmatpush1.bf16.msra.mxu0 0
        %1623 = vmatprep.subr.bf16.mxu0 0
        %1624 = vmatpush1.bf16.msra.mxu0 0
        %1625 = vmatprep.subr.bf16.mxu0 0
        %1626 = vmatpush1.bf16.msra.mxu0 0
        %1627 = vmatprep.subr.bf16.mxu0 0
        %1628 = vmatpush1.bf16.msra.mxu0 0
        %1629 = vmatprep.subr.bf16.mxu0 0
        %1630 = vmatpush1.bf16.msra.mxu0 0
        %1631 = vmatprep.subr.bf16.mxu0 0
        %1632 = vmatpush1.bf16.msra.mxu0 0
        %1633 = vmatprep.subr.bf16.mxu0 0
        %1634 = vmatpush1.bf16.msra.mxu0 0
        %1635 = vmatprep.subr.bf16.mxu0 0
        %1636 = vmatpush1.bf16.msra.mxu0 0
        %1637 = vmatprep.mubr.bf16.mxu0 0
        %1638 = vmatmul.mubr.bf16.gmra.mrb[0].mxu0 %v1603
        %v1639 = vpop.f32.mrb[0].mxu0
        %v1640 = vadd.f32 0.0, %v1639
        %v1641 = vpop.f32.mrb[0].mxu0
        %v1642 = vpop.f32.mrb[0].mxu0
        %v1643 = vpop.f32.mrb[0].mxu0
        %1644 = vdwg.mxu0
        %v1645 = vadd.f32 %v1600, %v1640
        %v1646 = vxor.u32 %v1645, 2147483648
        %v1647 = vmul.f32 %v1646, 1.442695
        %v1648 = vpow.pop %v1647
        %v1649 = vadd.f32 %v1648, 1.0
        %v1650 = vrcp.pop %v1649
        %v1651 = vmul.f32 1.0, %v1650
        %v1652 = vadd.f32 %v1640, %v622
        %1654 = vrot.lane.b32.xlu0 %v1652, 64
        %v1655 = vpop.permute.xlu0 %1654
        %v1657 = vmul.f32 %v1651, %v1655
        %1659 = vrot.lane.b32.xlu0 %v1657, 64
        %v1660 = vpop.permute.xlu0 %1659
        %v1662 = vadd.f32 %v1600, %v1660
        %v1663 = vtanh.pop %v1662
        %v1664 = vsub.f32 1.0, %v1651
        %1666 = vrot.lane.b32.xlu0 %v1663, 96
        %v1667 = vpop.permute.xlu0 %1666
        %v1669 = vmul.f32 %v1664, %v1667
        %1671 = vrot.lane.b32.xlu0 %v1591, 32
        %v1672 = vpop.permute.xlu0 %1671
        %v1674 = vmul.f32 %v1651, %v1672
        %v1675 = vadd.f32 %v1669, %v1674
        %s1676 = scalar_lea.vmem [#allocation3], 8
        %v1677 = vld [vmem:[%s1676] sm:$0xff]
        %v1678 = vpack.c.bf16 %v1598, %v1598
        %v1680 = vsel %vm440, %v1678, 0
        %1682 = vmatprep.subr.bf16.mxu0 0
        %1683 = vmatpush1.bf16.msra.mxu0 %v658
        %1684 = vmatprep.subr.bf16.mxu0 0
        %1685 = vmatpush1.bf16.msra.mxu0 %v659
        %1686 = vmatprep.subr.bf16.mxu0 0
        %1687 = vmatpush1.bf16.msra.mxu0 0
        %1688 = vmatprep.subr.bf16.mxu0 0
        %1689 = vmatpush1.bf16.msra.mxu0 0
        %1690 = vmatprep.subr.bf16.mxu0 0
        %1691 = vmatpush1.bf16.msra.mxu0 0
        %1692 = vmatprep.subr.bf16.mxu0 0
        %1693 = vmatpush1.bf16.msra.mxu0 0
        %1694 = vmatprep.subr.bf16.mxu0 0
        %1695 = vmatpush1.bf16.msra.mxu0 0
        %1696 = vmatprep.subr.bf16.mxu0 0
        %1697 = vmatpush1.bf16.msra.mxu0 0
        %1698 = vmatprep.subr.bf16.mxu0 0
        %1699 = vmatpush1.bf16.msra.mxu0 0
        %1700 = vmatprep.subr.bf16.mxu0 0
        %1701 = vmatpush1.bf16.msra.mxu0 0
        %1702 = vmatprep.subr.bf16.mxu0 0
        %1703 = vmatpush1.bf16.msra.mxu0 0
        %1704 = vmatprep.subr.bf16.mxu0 0
        %1705 = vmatpush1.bf16.msra.mxu0 0
        %1706 = vmatprep.subr.bf16.mxu0 0
        %1707 = vmatpush1.bf16.msra.mxu0 0
        %1708 = vmatprep.subr.bf16.mxu0 0
        %1709 = vmatpush1.bf16.msra.mxu0 0
        %1710 = vmatprep.subr.bf16.mxu0 0
        %1711 = vmatpush1.bf16.msra.mxu0 0
        %1712 = vmatprep.subr.bf16.mxu0 0
        %1713 = vmatpush1.bf16.msra.mxu0 0
        %1714 = vmatprep.mubr.bf16.mxu0 0
        %1715 = vmatmul.mubr.bf16.gmra.mrb[0].mxu0 %v1680
        %v1716 = vpop.f32.mrb[0].mxu0
        %v1717 = vadd.f32 0.0, %v1716
        %v1718 = vpop.f32.mrb[0].mxu0
        %v1719 = vpop.f32.mrb[0].mxu0
        %v1720 = vpop.f32.mrb[0].mxu0
        %1721 = vdwg.mxu0
        %v1722 = vadd.f32 %v1677, %v1717
        %v1723 = vxor.u32 %v1722, 2147483648
        %v1724 = vmul.f32 %v1723, 1.442695
        %v1725 = vpow.pop %v1724
        %v1726 = vadd.f32 %v1725, 1.0
        %v1727 = vrcp.pop %v1726
        %v1728 = vmul.f32 1.0, %v1727
        %v1729 = vadd.f32 %v1717, %v710
        %1731 = vrot.lane.b32.xlu0 %v1729, 64
        %v1732 = vpop.permute.xlu0 %1731
        %v1734 = vmul.f32 %v1728, %v1732
        %1736 = vrot.lane.b32.xlu0 %v1734, 64
        %v1737 = vpop.permute.xlu0 %1736
        %v1739 = vadd.f32 %v1677, %v1737
        %v1740 = vtanh.pop %v1739
        %v1741 = vsub.f32 1.0, %v1728
        %1743 = vrot.lane.b32.xlu0 %v1740, 96
        %v1744 = vpop.permute.xlu0 %1743
        %v1746 = vmul.f32 %v1741, %v1744
        %1748 = vrot.lane.b32.xlu0 %v1598, 32
        %v1749 = vpop.permute.xlu0 %1748
        %v1751 = vmul.f32 %v1728, %v1749
        %v1752 = vadd.f32 %v1746, %v1751
        %v1753 = vsub.f32 %v1675, %v1672
        %1755 = vrot.lane.b32.xlu0 %v1753, 96
        %v1756 = vpop.permute.xlu0 %1755
        %v1758 = vmul.f32 %v904, %v1756
        %v1759 = vadd.f32 %v1591, %v1758
        %v1760 = vsub.f32 %v1752, %v1749
        %1762 = vrot.lane.b32.xlu0 %v1760, 96
        %v1763 = vpop.permute.xlu0 %1762
        %v1765 = vmul.f32 %v902, %v1763
        %v1766 = vadd.f32 %v1598, %v1765
        %s1767 = scalar_lea.vmem [#allocation2], 56
        %v1768 = vld [vmem:[%s1767] sm:$0xff]
        %v1769 = vpack.c.bf16 %v1759, %v1759
        %v1771 = vsel %vm440, %v1769, 0
        %1773 = vmatprep.subr.bf16.mxu0 0
        %1774 = vmatpush1.bf16.msra.mxu0 %v567
        %1775 = vmatprep.subr.bf16.mxu0 0
        %1776 = vmatpush1.bf16.msra.mxu0 %v568
        %1777 = vmatprep.subr.bf16.mxu0 0
        %1778 = vmatpush1.bf16.msra.mxu0 0
        %1779 = vmatprep.subr.bf16.mxu0 0
        %1780 = vmatpush1.bf16.msra.mxu0 0
        %1781 = vmatprep.subr.bf16.mxu0 0
        %1782 = vmatpush1.bf16.msra.mxu0 0
        %1783 = vmatprep.subr.bf16.mxu0 0
        %1784 = vmatpush1.bf16.msra.mxu0 0
        %1785 = vmatprep.subr.bf16.mxu0 0
        %1786 = vmatpush1.bf16.msra.mxu0 0
        %1787 = vmatprep.subr.bf16.mxu0 0
        %1788 = vmatpush1.bf16.msra.mxu0 0
        %1789 = vmatprep.subr.bf16.mxu0 0
        %1790 = vmatpush1.bf16.msra.mxu0 0
        %1791 = vmatprep.subr.bf16.mxu0 0
        %1792 = vmatpush1.bf16.msra.mxu0 0
        %1793 = vmatprep.subr.bf16.mxu0 0
        %1794 = vmatpush1.bf16.msra.mxu0 0
        %1795 = vmatprep.subr.bf16.mxu0 0
        %1796 = vmatpush1.bf16.msra.mxu0 0
        %1797 = vmatprep.subr.bf16.mxu0 0
        %1798 = vmatpush1.bf16.msra.mxu0 0
        %1799 = vmatprep.subr.bf16.mxu0 0
        %1800 = vmatpush1.bf16.msra.mxu0 0
        %1801 = vmatprep.subr.bf16.mxu0 0
        %1802 = vmatpush1.bf16.msra.mxu0 0
        %1803 = vmatprep.subr.bf16.mxu0 0
        %1804 = vmatpush1.bf16.msra.mxu0 0
        %1805 = vmatprep.mubr.bf16.mxu0 0
        %1806 = vmatmul.mubr.bf16.gmra.mrb[0].mxu0 %v1771
        %v1807 = vpop.f32.mrb[0].mxu0
        %v1808 = vadd.f32 0.0, %v1807
        %v1809 = vpop.f32.mrb[0].mxu0
        %v1810 = vpop.f32.mrb[0].mxu0
        %v1811 = vpop.f32.mrb[0].mxu0
        %1812 = vdwg.mxu0
        %v1813 = vadd.f32 %v1768, %v1808
        %v1814 = vxor.u32 %v1813, 2147483648
        %v1815 = vmul.f32 %v1814, 1.442695
        %v1816 = vpow.pop %v1815
        %v1817 = vadd.f32 %v1816, 1.0
        %v1818 = vrcp.pop %v1817
        %v1819 = vmul.f32 1.0, %v1818
        %v1820 = vadd.f32 %v1808, %v622
        %1822 = vrot.lane.b32.xlu0 %v1820, 64
        %v1823 = vpop.permute.xlu0 %1822
        %v1825 = vmul.f32 %v1819, %v1823
        %1827 = vrot.lane.b32.xlu0 %v1825, 64
        %v1828 = vpop.permute.xlu0 %1827
        %v1830 = vadd.f32 %v1768, %v1828
        %v1831 = vtanh.pop %v1830
        %v1832 = vsub.f32 1.0, %v1819
        %1834 = vrot.lane.b32.xlu0 %v1831, 96
        %v1835 = vpop.permute.xlu0 %1834
        %v1837 = vmul.f32 %v1832, %v1835
        %1839 = vrot.lane.b32.xlu0 %v1759, 32
        %v1840 = vpop.permute.xlu0 %1839
        %v1842 = vmul.f32 %v1819, %v1840
        %v1843 = vadd.f32 %v1837, %v1842
        %v1844 = vld [vmem:[#allocation3] sm:$0xff]
        %v1845 = vpack.c.bf16 %v1766, %v1766
        %v1847 = vsel %vm440, %v1845, 0
        %1849 = vmatprep.subr.bf16.mxu0 0
        %1850 = vmatpush1.bf16.msra.mxu0 %v658
        %1851 = vmatprep.subr.bf16.mxu0 0
        %1852 = vmatpush1.bf16.msra.mxu0 %v659
        %1853 = vmatprep.subr.bf16.mxu0 0
        %1854 = vmatpush1.bf16.msra.mxu0 0
        %1855 = vmatprep.subr.bf16.mxu0 0
        %1856 = vmatpush1.bf16.msra.mxu0 0
        %1857 = vmatprep.subr.bf16.mxu0 0
        %1858 = vmatpush1.bf16.msra.mxu0 0
        %1859 = vmatprep.subr.bf16.mxu0 0
        %1860 = vmatpush1.bf16.msra.mxu0 0
        %1861 = vmatprep.subr.bf16.mxu0 0
        %1862 = vmatpush1.bf16.msra.mxu0 0
        %1863 = vmatprep.subr.bf16.mxu0 0
        %1864 = vmatpush1.bf16.msra.mxu0 0
        %1865 = vmatprep.subr.bf16.mxu0 0
        %1866 = vmatpush1.bf16.msra.mxu0 0
        %1867 = vmatprep.subr.bf16.mxu0 0
        %1868 = vmatpush1.bf16.msra.mxu0 0
        %1869 = vmatprep.subr.bf16.mxu0 0
        %1870 = vmatpush1.bf16.msra.mxu0 0
        %1871 = vmatprep.subr.bf16.mxu0 0
        %1872 = vmatpush1.bf16.msra.mxu0 0
        %1873 = vmatprep.subr.bf16.mxu0 0
        %1874 = vmatpush1.bf16.msra.mxu0 0
        %1875 = vmatprep.subr.bf16.mxu0 0
        %1876 = vmatpush1.bf16.msra.mxu0 0
        %1877 = vmatprep.subr.bf16.mxu0 0
        %1878 = vmatpush1.bf16.msra.mxu0 0
        %1879 = vmatprep.subr.bf16.mxu0 0
        %1880 = vmatpush1.bf16.msra.mxu0 0
        %1881 = vmatprep.mubr.bf16.mxu0 0
        %1882 = vmatmul.mubr.bf16.gmra.mrb[0].mxu0 %v1847
        %v1883 = vpop.f32.mrb[0].mxu0
        %v1884 = vadd.f32 0.0, %v1883
        %v1885 = vpop.f32.mrb[0].mxu0
        %v1886 = vpop.f32.mrb[0].mxu0
        %v1887 = vpop.f32.mrb[0].mxu0
        %1888 = vdwg.mxu0
        %v1889 = vadd.f32 %v1844, %v1884
        %v1890 = vxor.u32 %v1889, 2147483648
        %v1891 = vmul.f32 %v1890, 1.442695
        %v1892 = vpow.pop %v1891
        %v1893 = vadd.f32 %v1892, 1.0
        %v1894 = vrcp.pop %v1893
        %v1895 = vmul.f32 1.0, %v1894
        %v1896 = vadd.f32 %v1884, %v710
        %1898 = vrot.lane.b32.xlu0 %v1896, 64
        %v1899 = vpop.permute.xlu0 %1898
        %v1901 = vmul.f32 %v1895, %v1899
        %1903 = vrot.lane.b32.xlu0 %v1901, 64
        %v1904 = vpop.permute.xlu0 %1903
        %v1906 = vadd.f32 %v1844, %v1904
        %v1907 = vtanh.pop %v1906
        %v1908 = vsub.f32 1.0, %v1895
        %1910 = vrot.lane.b32.xlu0 %v1907, 96
        %v1911 = vpop.permute.xlu0 %1910
        %v1913 = vmul.f32 %v1908, %v1911
        %1915 = vrot.lane.b32.xlu0 %v1766, 32
        %v1916 = vpop.permute.xlu0 %1915
        %v1918 = vmul.f32 %v1895, %v1916
        %v1919 = vadd.f32 %v1913, %v1918
        %v1920 = vsub.f32 %v1843, %v1840
        %1922 = vrot.lane.b32.xlu0 %v1920, 96
        %v1923 = vpop.permute.xlu0 %1922
        %v1925 = vmul.f32 %v734, %v1923
        %v1926 = vadd.f32 %v1759, %v1925
        %v1927 = vsub.f32 %v1919, %v1916
        %1929 = vrot.lane.b32.xlu0 %v1927, 96
        %v1930 = vpop.permute.xlu0 %1929
        %v1932 = vmul.f32 %v732, %v1930
        %v1933 = vadd.f32 %v1766, %v1932
        %v1934 = vadd.f32 %v1926, %v1933
        %1935 = vst.msk [vmem:[%s390] sm:$0xff] %vm440, %v1934
        %s1936 = sand.u32 %s215, 1
        %s1937 = scalar_lea.sflag [#allocation6], %s1936
        %s1938 = sand.u32 %s215, 1
        %s1939 = smul.addr %s1938, 8
        %s1940 = scalar_lea.vmem [#allocation12], %s1939
        // Predicated region
        $region69: #{tpu_custom_call.1} parent=51 // pred_check
          %p1941 = pneg %p225
        $region70: #{tpu_custom_call.1} parent=51 // pred_check_branch
          %1943 = sbr.rel (%p1941) target = $region72
        $region71: #{tpu_custom_call.1} parent=51 // pred_region
          %s1945 = ssub.s32 128, 128
          %1946 = vsyncadd %s1937, %s1945
          %s1947 = smul.addr %s29, 128
          %s1948 = scalar_lea.hbm %s8, %s1947
          %s1950 = sshll.u32 %s1940, 4
          %s1951 = int_to_ptr.vmem [resolvable:$true] %s1950
          %1953 = dma.vmem_to_hbm [thread:$0]  %s1951, 128, %s1948, %s1937
        $region72: #{tpu_custom_call.1} parent=51 // pred_fallthru
          _
      $region52: #{tpu_custom_call.1} parent=5 // pred_fallthru
        _
      %p1954 = scmp.le.s32.totalorder 2, %s24
      // Predicated region
      $region73: #{tpu_custom_call.1} parent=5 // pred_check
        %p1955 = pneg %p1954
      $region74: #{tpu_custom_call.1} parent=5 // pred_check_branch
        %1957 = sbr.rel (%p1955) target = $region76
      $region75: #{tpu_custom_call.1} parent=5 // pred_region
        %s1958 = ssub.s32 %s24, 2
        // Predicated region
        $region77: #{tpu_custom_call.1} parent=75 // pred_check
          %p1959 = pneg %p231
        $region78: #{tpu_custom_call.1} parent=75 // pred_check_branch
          %1961 = sbr.rel (%p1959) target = $region80
        $region79: #{tpu_custom_call.1} parent=75 // pred_region
          %s1962 = sand.u32 %s216, 1
          %s1963 = scalar_lea.sflag [#allocation6], %s1962
          %s1964 = sand.u32 %s216, 1
          %s1965 = smul.addr %s1964, 8
          %s1966 = scalar_lea.vmem [#allocation12], %s1965
          %1967 = dma.done %s1963, 128
        $region80: #{tpu_custom_call.1} parent=75 // pred_fallthru
          _
      $region76: #{tpu_custom_call.1} parent=5 // pred_fallthru
        _
    $region6: #{tpu_custom_call.1} parent=1 // loop_footer
      %s28 = sadd.s32 1, %s24
    $region7: #{tpu_custom_call.1} parent=1 // loop_footer_branch
      %23 = sbr.rel target = $region3
    $region8: #{tpu_custom_call.1} parent=1 // loop_exit
      _
    %1968 = vsyncpa [#allocation5], 1
    %s1969 = scalar_lea.sflag [#allocation5], 1
    %1970 = vsyncpa %s1969, 1
    %1971 = vsyncpa [#allocation8], 1
    %s1972 = scalar_lea.sflag [#allocation8], 1
    %1973 = vsyncpa %s1972, 1
    %1974 = vsyncpa [#allocation11], 1
    %1975 = vsyncpa [#allocation6], 1
    %s1976 = scalar_lea.sflag [#allocation6], 1
    %1977 = vsyncpa %s1976, 1

</llo_original>
